<compile_context>
chip_gen: v7x
topology: tpu7x:2x2x1
jax: 0.10.0
libtpu: 0.0.40
codegen_flags: <defaults>
</compile_context>

<pallas_src>
import functools

import jax
import jax.numpy as jnp
from jax.experimental import pallas as pl
from jax.experimental.pallas import tpu as pltpu

# Small synthetic configuration (consistent with the module's __init__).
VOCAB = 32     # vocab_size == len(vocab)
EMBED = 16     # embedding_dim
HIDDEN = 32    # hidden_dim
BATCH = 2
MAX_SEQ = 8
LN_EPS = 1e-5  # PyTorch LayerNorm default
LEAK = 0.3


def _layernorm(x, gamma, beta, inv_n):
    # Two independent cross-lane reductions (sum, sum of squares); the XLU can
    # issue them back-to-back instead of serializing mean -> centered variance.
    s = jnp.sum(x, axis=-1, keepdims=True)
    ss = jnp.sum(x * x, axis=-1, keepdims=True)
    mu = s * inv_n
    var = jnp.maximum(ss * inv_n - mu * mu, 0.0)
    return (x - mu) * jax.lax.rsqrt(var + LN_EPS) * gamma + beta


def decoder_kernel(featg_ref, emb_ih_ref, whh_ref, blstm_ref, emb_ref,
                   w1_ref, b1_ref, g1_ref, be1_ref,
                   w2_ref, b2_ref, g2_ref, be2_ref,
                   q_ref, h_out_ref, e_out_ref, pred_ref,
                   *, max_seq, hidden, vocab, embed):
    bsz = featg_ref.shape[0]

    emb_ih = emb_ih_ref[...]        # (V, 4H) bf16  = embed @ W_ih^T (g cols x2)
    w_hh = whh_ref[...]             # (H, 4H) bf16  = W_hh^T          (g cols x2)
    emb = emb_ref[...]              # (V, E)  f32   embedding table (for e_out)
    w1 = w1_ref[...]                # (H, V)  bf16  weight-normed linear
    w2 = w2_ref[...]                # (V, V)  bf16  weight-normed linear1

    # Hoist bias / LayerNorm-param broadcasts out of the unrolled loop
    # (JAX does not CSE broadcast_in_dim).
    b_lstm = jnp.broadcast_to(blstm_ref[...], (bsz, 4 * hidden))
    b1 = jnp.broadcast_to(b1_ref[...], (bsz, vocab))
    g1 = jnp.broadcast_to(g1_ref[...], (bsz, vocab))
    be1 = jnp.broadcast_to(be1_ref[...], (bsz, vocab))
    b2 = jnp.broadcast_to(b2_ref[...], (bsz, vocab))
    g2 = jnp.broadcast_to(g2_ref[...], (bsz, vocab))
    be2 = jnp.broadcast_to(be2_ref[...], (bsz, vocab))

    iota_v = jax.lax.broadcasted_iota(jnp.int32, (1, vocab), 1)
    inv_v = 1.0 / vocab

    h = jnp.zeros((bsz, hidden), jnp.float32)
    c = jnp.zeros((bsz, hidden), jnp.float32)
    in_gates = featg_ref[...]       # (B, 4H) f32: features @ W_ih^T (pre-scaled)

    preds = []

    # Static unroll over decode steps: inherently sequential (each step's input
    # gates come from the embedding of the previous step's prediction).
    for m in range(max_seq):
        # gates = x @ W_ih^T + h @ W_hh^T + b   (sum of dots; MRB-friendly).
        gates = (in_gates
                 + jnp.dot(h.astype(jnp.bfloat16), w_hh,
                           preferred_element_type=jnp.float32)
                 + b_lstm)
        # Single EUP dispatch: g gate recovered via tanh(x) = 2*sigmoid(2x)-1
        # (g-gate pre-activations were scaled by 2 in the wrapper).
        sg = jax.nn.sigmoid(gates)
        i_g = sg[:, 0 * hidden:1 * hidden]
        f_g = sg[:, 1 * hidden:2 * hidden]
        g_g = 2.0 * sg[:, 2 * hidden:3 * hidden] - 1.0
        o_g = sg[:, 3 * hidden:4 * hidden]
        c = f_g * c + i_g * g_g
        h = o_g * jnp.tanh(c)
        h_out_ref[m] = h                                             # (B, H)

        # weight-normed Linear -> LayerNorm -> LeakyReLU(0.3)
        z1 = jnp.dot(h.astype(jnp.bfloat16), w1,
                     preferred_element_type=jnp.float32) + b1        # (B, V)
        a1 = _layernorm(z1, g1, be1, inv_v)
        a1 = jnp.where(a1 > 0, a1, LEAK * a1)

        # weight-normed Linear1 -> LayerNorm1 (softmax applied in the wrapper;
        # argmax below is invariant under softmax).
        z2 = jnp.dot(a1.astype(jnp.bfloat16), w2,
                     preferred_element_type=jnp.float32) + b2        # (B, V)
        z2 = _layernorm(z2, g2, be2, inv_v)
        q_ref[m] = z2                                                # logits

        # Greedy action + one-hot feedback.
        mx = jnp.max(z2, axis=-1, keepdims=True)                     # (B, 1)
        idx = jnp.min(jnp.where(z2 >= mx, iota_v, vocab),
                      axis=-1, keepdims=True)                        # (B, 1)
        onehot = (iota_v == idx).astype(jnp.float32)                 # (B, V)
        preds.append(idx)

        # Next-step input gates straight from the embedding-fused ih weights
        # (one MXU trip on the recurrence chain).
        in_gates = jnp.dot(onehot.astype(jnp.bfloat16), emb_ih,
                           preferred_element_type=jnp.float32)       # (B, 4H)

        # Embedding values for the generated_embed output (off the chain,
        # exact f32 row selection).
        e_out_ref[m] = jnp.dot(onehot, emb,
                               preferred_element_type=jnp.float32)   # (B, E)

    pred_ref[...] = jnp.concatenate(preds, axis=-1)                  # (B, S)


def _weight_norm(v, g):
    # nn.utils.weight_norm default dim=0: per-output-row direction * magnitude.
    return g * v / jnp.linalg.norm(v, axis=1, keepdims=True)


def init_params(key):
    ks = jax.random.split(key, 12)
    s = 0.1
    p = {
        "embed":  s * jax.random.normal(ks[0], (VOCAB, EMBED), jnp.float32),
        "w_ih":   s * jax.random.normal(ks[1], (4 * HIDDEN, EMBED), jnp.float32),
        "w_hh":   s * jax.random.normal(ks[2], (4 * HIDDEN, HIDDEN), jnp.float32),
        "b_ih":   s * jax.random.normal(ks[3], (4 * HIDDEN,), jnp.float32),
        "b_hh":   s * jax.random.normal(ks[4], (4 * HIDDEN,), jnp.float32),
        "lin_v":  s * jax.random.normal(ks[5], (VOCAB, HIDDEN), jnp.float32),
        "lin_g":  1.0 + s * jax.random.normal(ks[6], (VOCAB, 1), jnp.float32),
        "lin_b":  s * jax.random.normal(ks[7], (VOCAB,), jnp.float32),
        "lin1_v": s * jax.random.normal(ks[8], (VOCAB, VOCAB), jnp.float32),
        "lin1_g": 1.0 + s * jax.random.normal(ks[9], (VOCAB, 1), jnp.float32),
        "lin1_b": s * jax.random.normal(ks[10], (VOCAB,), jnp.float32),
        # LayerNorm / LayerNorm1 params (PyTorch init: ones / zeros).
        "ln_g":  jnp.ones((VOCAB,), jnp.float32),
        "ln_b":  jnp.zeros((VOCAB,), jnp.float32),
        "ln1_g": jnp.ones((VOCAB,), jnp.float32),
        "ln1_b": jnp.zeros((VOCAB,), jnp.float32),
    }
    return p


@jax.jit
def decoder_forward(features, captions, params):
    bs = features.shape[0]
    max_seq = captions.shape[1]

    emb_table = params["embed"]                                      # (V, E)

    # --- LSTM parameter glue: transpose to [in, out], pre-scale the g-gate
    #     columns by 2 (tanh -> sigmoid folding), fold embedding into W_ih. ---
    gscale = jnp.concatenate(
        [jnp.ones((HIDDEN,)), jnp.ones((HIDDEN,)),
         2.0 * jnp.ones((HIDDEN,)), jnp.ones((HIDDEN,))]).reshape(1, -1)
    w_ih_t = params["w_ih"].T * gscale                               # (E, 4H)
    w_hh_t = params["w_hh"].T * gscale                               # (H, 4H)
    b_lstm = ((params["b_ih"] + params["b_hh"]).reshape(1, -1)) * gscale

    emb_ih = jnp.dot(emb_table, w_ih_t)                              # (V, 4H)
    feat_gates0 = jnp.dot(features, w_ih_t)                          # (B, 4H)

    # --- weight-normed linears (transposed to [in, out]) ---
    w1_t = _weight_norm(params["lin_v"], params["lin_g"]).T          # (H, V)
    b1 = params["lin_b"].reshape(1, -1)
    w2_t = _weight_norm(params["lin1_v"], params["lin1_g"]).T        # (V, V)
    b2 = params["lin1_b"].reshape(1, -1)
    ln_g, ln_b = params["ln_g"].reshape(1, -1), params["ln_b"].reshape(1, -1)
    ln1_g, ln1_b = params["ln1_g"].reshape(1, -1), params["ln1_b"].reshape(1, -1)

    # bf16 MXU operands (f32 accumulation in-kernel).
    emb_ih_bf = emb_ih.astype(jnp.bfloat16)
    w_hh_bf = w_hh_t.astype(jnp.bfloat16)
    w1_bf = w1_t.astype(jnp.bfloat16)
    w2_bf = w2_t.astype(jnp.bfloat16)

    kernel = functools.partial(decoder_kernel, max_seq=max_seq,
                               hidden=HIDDEN, vocab=VOCAB, embed=EMBED)

    full2 = lambda shp: pl.BlockSpec(shp, lambda i: (0, 0))
    full3 = lambda shp: pl.BlockSpec(shp, lambda i: (0, 0, 0))

    in_specs = [
        full2((bs, 4 * HIDDEN)),                         # feat_gates0
        full2((VOCAB, 4 * HIDDEN)),                      # emb_ih (bf16)
        full2((HIDDEN, 4 * HIDDEN)),                     # W_hh^T (bf16)
        full2((1, 4 * HIDDEN)),                          # LSTM bias
        full2((VOCAB, EMBED)),                           # embedding table (f32)
        full2((HIDDEN, VOCAB)), full2((1, VOCAB)),       # linear W^T, b
        full2((1, VOCAB)), full2((1, VOCAB)),            # layernorm gamma, beta
        full2((VOCAB, VOCAB)), full2((1, VOCAB)),        # linear1 W^T, b
        full2((1, VOCAB)), full2((1, VOCAB)),            # layernorm1 gamma, beta
    ]
    # Step-major outputs: each per-step store lands at lane offset 0.
    out_specs = (
        full3((max_seq, bs, VOCAB)),                     # logits (pre-softmax)
        full3((max_seq, bs, HIDDEN)),                    # hidden states
        full3((max_seq, bs, EMBED)),                     # generated embeddings
        full2((bs, max_seq)),                            # greedy token ids
    )
    out_shape = (
        jax.ShapeDtypeStruct((max_seq, bs, VOCAB), jnp.float32),
        jax.ShapeDtypeStruct((max_seq, bs, HIDDEN), jnp.float32),
        jax.ShapeDtypeStruct((max_seq, bs, EMBED), jnp.float32),
        jax.ShapeDtypeStruct((bs, max_seq), jnp.int32),
    )

    z2_sm, h_sm, e_sm, pred = pl.pallas_call(
        kernel,
        grid=(1,),
        in_specs=in_specs,
        out_specs=out_specs,
        out_shape=out_shape,
        compiler_params=pltpu.CompilerParams(
            dimension_semantics=("arbitrary",)),
    )(feat_gates0, emb_ih_bf, w_hh_bf, b_lstm, emb_table,
      w1_bf, b1, ln_g, ln_b, w2_bf, b2, ln1_g, ln1_b)

    # Softmax applied outside the kernel (exact reciprocal), then reshape to
    # the reference output layout (B, S, 1, 1, *).
    q_vals = jax.nn.softmax(jnp.transpose(z2_sm, (1, 0, 2)), axis=-1)
    q_vals = q_vals.reshape(bs, max_seq, 1, 1, VOCAB)
    hid_state_t = jnp.transpose(h_sm, (1, 0, 2)).reshape(bs, max_seq, 1, 1, HIDDEN)
    generated_embed = jnp.transpose(e_sm, (1, 0, 2)).reshape(bs, max_seq, 1, 1, EMBED)
    predicted_list = pred.astype(jnp.float32).reshape(bs, max_seq, 1)
    return q_vals, hid_state_t, generated_embed, predicted_list


if __name__ == "__main__":
    key = jax.random.PRNGKey(0)
    k_param, k_feat, k_cap = jax.random.split(key, 3)

    params = init_params(k_param)
    features = jax.random.normal(k_feat, (BATCH, EMBED), jnp.float32)
    captions = jax.random.randint(k_cap, (BATCH, MAX_SEQ), 0, VOCAB, jnp.int32)

    outs = decoder_forward(features, captions, params)
    outs = jax.block_until_ready(outs)

    q_vals, hid_state_t, generated_embed, predicted_list = outs
    assert q_vals.shape == (BATCH, MAX_SEQ, 1, 1, VOCAB)
    assert hid_state_t.shape == (BATCH, MAX_SEQ, 1, 1, HIDDEN)
    assert generated_embed.shape == (BATCH, MAX_SEQ, 1, 1, EMBED)
    assert predicted_list.shape == (BATCH, MAX_SEQ, 1)
    # softmax rows must sum to ~1 (exact softmax applied in the wrapper).
    assert bool(jnp.allclose(q_vals.sum(-1), 1.0, atol=1e-3))
    # predictions are valid vocab indices.
    assert bool(jnp.all((predicted_list >= 0) & (predicted_list < VOCAB)))
    # predictions are consistent with the returned Q-value argmax.
    assert bool(jnp.all(jnp.argmax(q_vals[:, :, 0, 0, :], axis=-1)
                        == predicted_list[:, :, 0].astype(jnp.int32)))

    print("KERNEL_OK")
</pallas_src>

<mosaic_0001>
module attributes {stable_mosaic.version = 11 : i64} {
  func.func @decoder_kernel(%arg0: i32, %arg1: memref<2x128xf32, #tpu.memory_space<vmem>>, %arg2: memref<32x128xbf16, #tpu.memory_space<vmem>>, %arg3: memref<32x128xbf16, #tpu.memory_space<vmem>>, %arg4: memref<1x128xf32, #tpu.memory_space<vmem>>, %arg5: memref<32x16xf32, #tpu.memory_space<vmem>>, %arg6: memref<32x32xbf16, #tpu.memory_space<vmem>>, %arg7: memref<1x32xf32, #tpu.memory_space<vmem>>, %arg8: memref<1x32xf32, #tpu.memory_space<vmem>>, %arg9: memref<1x32xf32, #tpu.memory_space<vmem>>, %arg10: memref<32x32xbf16, #tpu.memory_space<vmem>>, %arg11: memref<1x32xf32, #tpu.memory_space<vmem>>, %arg12: memref<1x32xf32, #tpu.memory_space<vmem>>, %arg13: memref<1x32xf32, #tpu.memory_space<vmem>>, %arg14: memref<8x2x32xf32, #tpu.memory_space<vmem>>, %arg15: memref<8x2x32xf32, #tpu.memory_space<vmem>>, %arg16: memref<8x2x16xf32, #tpu.memory_space<vmem>>, %arg17: memref<2x8xi32, #tpu.memory_space<vmem>>) attributes {dimension_semantics = [#tpu.dimension_semantics<arbitrary>], iteration_bounds = array<i64: 1>, scalar_prefetch = 0 : i64, scratch_operands = 0 : i64, tpu.core_type = #tpu.core_type<tc>, window_params = [{pipeline_mode = #tpu.pipeline_mode<synchronous>, transform_indices = @transform_0, window_bounds = array<i64: 2, 128>}, {pipeline_mode = #tpu.pipeline_mode<synchronous>, transform_indices = @transform_1, window_bounds = array<i64: 32, 128>}, {pipeline_mode = #tpu.pipeline_mode<synchronous>, transform_indices = @transform_2, window_bounds = array<i64: 32, 128>}, {pipeline_mode = #tpu.pipeline_mode<synchronous>, transform_indices = @transform_3, window_bounds = array<i64: 1, 128>}, {pipeline_mode = #tpu.pipeline_mode<synchronous>, transform_indices = @transform_4, window_bounds = array<i64: 32, 16>}, {pipeline_mode = #tpu.pipeline_mode<synchronous>, transform_indices = @transform_5, window_bounds = array<i64: 32, 32>}, {pipeline_mode = #tpu.pipeline_mode<synchronous>, transform_indices = @transform_6, window_bounds = array<i64: 1, 32>}, {pipeline_mode = #tpu.pipeline_mode<synchronous>, transform_indices = @transform_7, window_bounds = array<i64: 1, 32>}, {pipeline_mode = #tpu.pipeline_mode<synchronous>, transform_indices = @transform_8, window_bounds = array<i64: 1, 32>}, {pipeline_mode = #tpu.pipeline_mode<synchronous>, transform_indices = @transform_9, window_bounds = array<i64: 32, 32>}, {pipeline_mode = #tpu.pipeline_mode<synchronous>, transform_indices = @transform_10, window_bounds = array<i64: 1, 32>}, {pipeline_mode = #tpu.pipeline_mode<synchronous>, transform_indices = @transform_11, window_bounds = array<i64: 1, 32>}, {pipeline_mode = #tpu.pipeline_mode<synchronous>, transform_indices = @transform_12, window_bounds = array<i64: 1, 32>}, {pipeline_mode = #tpu.pipeline_mode<synchronous>, transform_indices = @transform_13, window_bounds = array<i64: 8, 2, 32>}, {pipeline_mode = #tpu.pipeline_mode<synchronous>, transform_indices = @transform_14, window_bounds = array<i64: 8, 2, 32>}, {pipeline_mode = #tpu.pipeline_mode<synchronous>, transform_indices = @transform_15, window_bounds = array<i64: 8, 2, 16>}, {pipeline_mode = #tpu.pipeline_mode<synchronous>, transform_indices = @transform_16, window_bounds = array<i64: 2, 8>}]} {
    %c0 = arith.constant 0 : index
    %c0_0 = arith.constant 0 : index
    %0 = vector.load %arg2[%c0, %c0_0] : memref<32x128xbf16, #tpu.memory_space<vmem>>, vector<32x128xbf16>
    %c0_1 = arith.constant 0 : index
    %c0_2 = arith.constant 0 : index
    %1 = vector.load %arg3[%c0_1, %c0_2] : memref<32x128xbf16, #tpu.memory_space<vmem>>, vector<32x128xbf16>
    %c0_3 = arith.constant 0 : index
    %c0_4 = arith.constant 0 : index
    %2 = vector.load %arg5[%c0_3, %c0_4] : memref<32x16xf32, #tpu.memory_space<vmem>>, vector<32x16xf32>
    %c0_5 = arith.constant 0 : index
    %c0_6 = arith.constant 0 : index
    %3 = vector.load %arg6[%c0_5, %c0_6] : memref<32x32xbf16, #tpu.memory_space<vmem>>, vector<32x32xbf16>
    %c0_7 = arith.constant 0 : index
    %c0_8 = arith.constant 0 : index
    %4 = vector.load %arg10[%c0_7, %c0_8] : memref<32x32xbf16, #tpu.memory_space<vmem>>, vector<32x32xbf16>
    %c0_9 = arith.constant 0 : index
    %c0_10 = arith.constant 0 : index
    %5 = vector.load %arg4[%c0_9, %c0_10] : memref<1x128xf32, #tpu.memory_space<vmem>>, vector<1x128xf32>
    %6 = vector.shape_cast %5 : vector<1x128xf32> to vector<1x128xf32>
    %7 = vector.broadcast %6 : vector<1x128xf32> to vector<2x128xf32>
    %c0_11 = arith.constant 0 : index
    %c0_12 = arith.constant 0 : index
    %8 = vector.load %arg7[%c0_11, %c0_12] : memref<1x32xf32, #tpu.memory_space<vmem>>, vector<1x32xf32>
    %9 = vector.shape_cast %8 : vector<1x32xf32> to vector<1x32xf32>
    %10 = vector.broadcast %9 : vector<1x32xf32> to vector<2x32xf32>
    %c0_13 = arith.constant 0 : index
    %c0_14 = arith.constant 0 : index
    %11 = vector.load %arg8[%c0_13, %c0_14] : memref<1x32xf32, #tpu.memory_space<vmem>>, vector<1x32xf32>
    %12 = vector.shape_cast %11 : vector<1x32xf32> to vector<1x32xf32>
    %13 = vector.broadcast %12 : vector<1x32xf32> to vector<2x32xf32>
    %c0_15 = arith.constant 0 : index
    %c0_16 = arith.constant 0 : index
    %14 = vector.load %arg9[%c0_15, %c0_16] : memref<1x32xf32, #tpu.memory_space<vmem>>, vector<1x32xf32>
    %15 = vector.shape_cast %14 : vector<1x32xf32> to vector<1x32xf32>
    %16 = vector.broadcast %15 : vector<1x32xf32> to vector<2x32xf32>
    %c0_17 = arith.constant 0 : index
    %c0_18 = arith.constant 0 : index
    %17 = vector.load %arg11[%c0_17, %c0_18] : memref<1x32xf32, #tpu.memory_space<vmem>>, vector<1x32xf32>
    %18 = vector.shape_cast %17 : vector<1x32xf32> to vector<1x32xf32>
    %19 = vector.broadcast %18 : vector<1x32xf32> to vector<2x32xf32>
    %c0_19 = arith.constant 0 : index
    %c0_20 = arith.constant 0 : index
    %20 = vector.load %arg12[%c0_19, %c0_20] : memref<1x32xf32, #tpu.memory_space<vmem>>, vector<1x32xf32>
    %21 = vector.shape_cast %20 : vector<1x32xf32> to vector<1x32xf32>
    %22 = vector.broadcast %21 : vector<1x32xf32> to vector<2x32xf32>
    %c0_21 = arith.constant 0 : index
    %c0_22 = arith.constant 0 : index
    %23 = vector.load %arg13[%c0_21, %c0_22] : memref<1x32xf32, #tpu.memory_space<vmem>>, vector<1x32xf32>
    %24 = vector.shape_cast %23 : vector<1x32xf32> to vector<1x32xf32>
    %25 = vector.broadcast %24 : vector<1x32xf32> to vector<2x32xf32>
    %26 = tpu.iota {dimensions = array<i32: 1>} : vector<1x32xi32>
    %cst = arith.constant 0.000000e+00 : f32
    %27 = vector.broadcast %cst : f32 to vector<2x32xf32>
    %cst_23 = arith.constant 0.000000e+00 : f32
    %28 = vector.broadcast %cst_23 : f32 to vector<2x32xf32>
    %c0_24 = arith.constant 0 : index
    %c0_25 = arith.constant 0 : index
    %29 = vector.load %arg1[%c0_24, %c0_25] : memref<2x128xf32, #tpu.memory_space<vmem>>, vector<2x128xf32>
    %30 = arith.truncf %27 : vector<2x32xf32> to vector<2x32xbf16>
    %cst_26 = arith.constant dense<0.000000e+00> : vector<2x128xf32>
    %31 = tpu.matmul %30, %1, %cst_26 {dimension_numbers = #tpu.dot_dimension_numbers<[1], [0], [0], [1], [0, 0, 1, 1], [], []>} : vector<2x32xbf16>, vector<32x128xbf16>, vector<2x128xf32> -> vector<2x128xf32>
    %32 = arith.addf %29, %31 : vector<2x128xf32>
    %33 = arith.addf %32, %7 : vector<2x128xf32>
    %34 = arith.negf %33 : vector<2x128xf32>
    %35 = math.exp %34 : vector<2x128xf32>
    %cst_27 = arith.constant 1.000000e+00 : f32
    %36 = vector.broadcast %cst_27 : f32 to vector<2x128xf32>
    %37 = arith.addf %36, %35 : vector<2x128xf32>
    %38 = arith.divf %36, %37 : vector<2x128xf32>
    %39 = vector.extract_strided_slice %38 {offsets = [0, 0], sizes = [2, 32], strides = [1, 1]} : vector<2x128xf32> to vector<2x32xf32>
    %40 = vector.extract_strided_slice %38 {offsets = [0, 32], sizes = [2, 32], strides = [1, 1]} : vector<2x128xf32> to vector<2x32xf32>
    %41 = vector.extract_strided_slice %38 {offsets = [0, 64], sizes = [2, 32], strides = [1, 1]} : vector<2x128xf32> to vector<2x32xf32>
    %cst_28 = arith.constant 2.000000e+00 : f32
    %42 = vector.broadcast %cst_28 : f32 to vector<2x32xf32>
    %43 = arith.mulf %42, %41 : vector<2x32xf32>
    %cst_29 = arith.constant 1.000000e+00 : f32
    %44 = vector.broadcast %cst_29 : f32 to vector<2x32xf32>
    %45 = arith.subf %43, %44 : vector<2x32xf32>
    %46 = vector.extract_strided_slice %38 {offsets = [0, 96], sizes = [2, 32], strides = [1, 1]} : vector<2x128xf32> to vector<2x32xf32>
    %47 = arith.mulf %40, %28 : vector<2x32xf32>
    %48 = arith.mulf %39, %45 : vector<2x32xf32>
    %49 = arith.addf %47, %48 : vector<2x32xf32>
    %50 = math.tanh %49 : vector<2x32xf32>
    %51 = arith.mulf %46, %50 : vector<2x32xf32>
    %c0_30 = arith.constant 0 : index
    %c0_31 = arith.constant 0 : index
    %c0_32 = arith.constant 0 : index
    %52 = vector.load %arg15[%c0_30, %c0_31, %c0_32] : memref<8x2x32xf32, #tpu.memory_space<vmem>>, vector<1x2x32xf32>
    %53 = vector.shape_cast %52 : vector<1x2x32xf32> to vector<2x32xf32>
    %54 = vector.shape_cast %51 : vector<2x32xf32> to vector<1x2x32xf32>
    tpu.vector_store %arg15[%c0_30, %c0_31, %c0_32], %54 {strides = array<i32>} : memref<8x2x32xf32, #tpu.memory_space<vmem>>, vector<1x2x32xf32>,
    %55 = arith.truncf %51 : vector<2x32xf32> to vector<2x32xbf16>
    %cst_33 = arith.constant dense<0.000000e+00> : vector<2x32xf32>
    %56 = tpu.matmul %55, %3, %cst_33 {dimension_numbers = #tpu.dot_dimension_numbers<[1], [0], [0], [1], [0, 0, 1, 1], [], []>} : vector<2x32xbf16>, vector<32x32xbf16>, vector<2x32xf32> -> vector<2x32xf32>
    %57 = arith.addf %56, %10 : vector<2x32xf32>
    %cst_34 = arith.constant dense<0.000000e+00> : vector<2xf32>
    %58 = vector.multi_reduction <add>, %57, %cst_34 [1] : vector<2x32xf32> to vector<2xf32>
    %59 = vector.shape_cast %58 : vector<2xf32> to vector<2x1xf32>
    %60 = arith.mulf %57, %57 : vector<2x32xf32>
    %cst_35 = arith.constant dense<0.000000e+00> : vector<2xf32>
    %61 = vector.multi_reduction <add>, %60, %cst_35 [1] : vector<2x32xf32> to vector<2xf32>
    %62 = vector.shape_cast %61 : vector<2xf32> to vector<2x1xf32>
    %cst_36 = arith.constant 3.125000e-02 : f32
    %63 = vector.broadcast %cst_36 : f32 to vector<2x1xf32>
    %64 = arith.mulf %59, %63 : vector<2x1xf32>
    %cst_37 = arith.constant 3.125000e-02 : f32
    %65 = vector.broadcast %cst_37 : f32 to vector<2x1xf32>
    %66 = arith.mulf %62, %65 : vector<2x1xf32>
    %67 = arith.mulf %64, %64 : vector<2x1xf32>
    %68 = arith.subf %66, %67 : vector<2x1xf32>
    %cst_38 = arith.constant 0.000000e+00 : f32
    %69 = vector.broadcast %cst_38 : f32 to vector<2x1xf32>
    %70 = arith.maximumf %68, %69 : vector<2x1xf32>
    %71 = vector.broadcast %64 : vector<2x1xf32> to vector<2x32xf32>
    %72 = arith.subf %57, %71 : vector<2x32xf32>
    %cst_39 = arith.constant 9.99999974E-6 : f32
    %73 = vector.broadcast %cst_39 : f32 to vector<2x1xf32>
    %74 = arith.addf %70, %73 : vector<2x1xf32>
    %75 = math.rsqrt %74 : vector<2x1xf32>
    %76 = vector.broadcast %75 : vector<2x1xf32> to vector<2x32xf32>
    %77 = arith.mulf %72, %76 : vector<2x32xf32>
    %78 = arith.mulf %77, %13 : vector<2x32xf32>
    %79 = arith.addf %78, %16 : vector<2x32xf32>
    %cst_40 = arith.constant 0.000000e+00 : f32
    %80 = vector.broadcast %cst_40 : f32 to vector<2x32xf32>
    %81 = arith.cmpf ogt, %79, %80 : vector<2x32xf32>
    %cst_41 = arith.constant 3.000000e-01 : f32
    %82 = vector.broadcast %cst_41 : f32 to vector<2x32xf32>
    %83 = arith.mulf %82, %79 : vector<2x32xf32>
    %84 = arith.select %81, %79, %83 : vector<2x32xi1>, vector<2x32xf32>
    %85 = arith.truncf %84 : vector<2x32xf32> to vector<2x32xbf16>
    %cst_42 = arith.constant dense<0.000000e+00> : vector<2x32xf32>
    %86 = tpu.matmul %85, %4, %cst_42 {dimension_numbers = #tpu.dot_dimension_numbers<[1], [0], [0], [1], [0, 0, 1, 1], [], []>} : vector<2x32xbf16>, vector<32x32xbf16>, vector<2x32xf32> -> vector<2x32xf32>
    %87 = arith.addf %86, %19 : vector<2x32xf32>
    %cst_43 = arith.constant dense<0.000000e+00> : vector<2xf32>
    %88 = vector.multi_reduction <add>, %87, %cst_43 [1] : vector<2x32xf32> to vector<2xf32>
    %89 = vector.shape_cast %88 : vector<2xf32> to vector<2x1xf32>
    %90 = arith.mulf %87, %87 : vector<2x32xf32>
    %cst_44 = arith.constant dense<0.000000e+00> : vector<2xf32>
    %91 = vector.multi_reduction <add>, %90, %cst_44 [1] : vector<2x32xf32> to vector<2xf32>
    %92 = vector.shape_cast %91 : vector<2xf32> to vector<2x1xf32>
    %cst_45 = arith.constant 3.125000e-02 : f32
    %93 = vector.broadcast %cst_45 : f32 to vector<2x1xf32>
    %94 = arith.mulf %89, %93 : vector<2x1xf32>
    %cst_46 = arith.constant 3.125000e-02 : f32
    %95 = vector.broadcast %cst_46 : f32 to vector<2x1xf32>
    %96 = arith.mulf %92, %95 : vector<2x1xf32>
    %97 = arith.mulf %94, %94 : vector<2x1xf32>
    %98 = arith.subf %96, %97 : vector<2x1xf32>
    %cst_47 = arith.constant 0.000000e+00 : f32
    %99 = vector.broadcast %cst_47 : f32 to vector<2x1xf32>
    %100 = arith.maximumf %98, %99 : vector<2x1xf32>
    %101 = vector.broadcast %94 : vector<2x1xf32> to vector<2x32xf32>
    %102 = arith.subf %87, %101 : vector<2x32xf32>
    %cst_48 = arith.constant 9.99999974E-6 : f32
    %103 = vector.broadcast %cst_48 : f32 to vector<2x1xf32>
    %104 = arith.addf %100, %103 : vector<2x1xf32>
    %105 = math.rsqrt %104 : vector<2x1xf32>
    %106 = vector.broadcast %105 : vector<2x1xf32> to vector<2x32xf32>
    %107 = arith.mulf %102, %106 : vector<2x32xf32>
    %108 = arith.mulf %107, %22 : vector<2x32xf32>
    %109 = arith.addf %108, %25 : vector<2x32xf32>
    %c0_49 = arith.constant 0 : index
    %c0_50 = arith.constant 0 : index
    %c0_51 = arith.constant 0 : index
    %110 = vector.load %arg14[%c0_49, %c0_50, %c0_51] : memref<8x2x32xf32, #tpu.memory_space<vmem>>, vector<1x2x32xf32>
    %111 = vector.shape_cast %110 : vector<1x2x32xf32> to vector<2x32xf32>
    %112 = vector.shape_cast %109 : vector<2x32xf32> to vector<1x2x32xf32>
    tpu.vector_store %arg14[%c0_49, %c0_50, %c0_51], %112 {strides = array<i32>} : memref<8x2x32xf32, #tpu.memory_space<vmem>>, vector<1x2x32xf32>,
    %cst_52 = arith.constant dense<0xFF800000> : vector<2xf32>
    %113 = vector.multi_reduction <maximumf>, %109, %cst_52 [1] : vector<2x32xf32> to vector<2xf32>
    %114 = vector.shape_cast %113 : vector<2xf32> to vector<2x1xf32>
    %115 = vector.broadcast %114 : vector<2x1xf32> to vector<2x32xf32>
    %116 = arith.cmpf oge, %109, %115 : vector<2x32xf32>
    %c32_i32 = arith.constant 32 : i32
    %117 = vector.shape_cast %26 : vector<1x32xi32> to vector<1x32xi32>
    %118 = vector.broadcast %117 : vector<1x32xi32> to vector<2x32xi32>
    %119 = vector.broadcast %c32_i32 : i32 to vector<2x32xi32>
    %120 = arith.select %116, %118, %119 : vector<2x32xi1>, vector<2x32xi32>
    %cst_53 = arith.constant dense<2147483647> : vector<2xi32>
    %121 = vector.multi_reduction <minsi>, %120, %cst_53 [1] : vector<2x32xi32> to vector<2xi32>
    %122 = vector.shape_cast %121 : vector<2xi32> to vector<2x1xi32>
    %123 = vector.broadcast %26 : vector<1x32xi32> to vector<2x32xi32>
    %124 = vector.broadcast %122 : vector<2x1xi32> to vector<2x32xi32>
    %125 = arith.cmpi eq, %123, %124 : vector<2x32xi32>
    %126 = arith.extui %125 : vector<2x32xi1> to vector<2x32xi32>
    %127 = arith.sitofp %126 : vector<2x32xi32> to vector<2x32xf32>
    %128 = arith.truncf %127 : vector<2x32xf32> to vector<2x32xbf16>
    %cst_54 = arith.constant dense<0.000000e+00> : vector<2x128xf32>
    %129 = tpu.matmul %128, %0, %cst_54 {dimension_numbers = #tpu.dot_dimension_numbers<[1], [0], [0], [1], [0, 0, 1, 1], [], []>} : vector<2x32xbf16>, vector<32x128xbf16>, vector<2x128xf32> -> vector<2x128xf32>
    %cst_55 = arith.constant dense<0.000000e+00> : vector<2x16xf32>
    %130 = tpu.matmul %127, %2, %cst_55 {dimension_numbers = #tpu.dot_dimension_numbers<[1], [0], [0], [1], [0, 0, 1, 1], [], []>} : vector<2x32xf32>, vector<32x16xf32>, vector<2x16xf32> -> vector<2x16xf32>
    %c0_56 = arith.constant 0 : index
    %c0_57 = arith.constant 0 : index
    %c0_58 = arith.constant 0 : index
    %131 = vector.load %arg16[%c0_56, %c0_57, %c0_58] : memref<8x2x16xf32, #tpu.memory_space<vmem>>, vector<1x2x16xf32>
    %132 = vector.shape_cast %131 : vector<1x2x16xf32> to vector<2x16xf32>
    %133 = vector.shape_cast %130 : vector<2x16xf32> to vector<1x2x16xf32>
    tpu.vector_store %arg16[%c0_56, %c0_57, %c0_58], %133 {strides = array<i32>} : memref<8x2x16xf32, #tpu.memory_space<vmem>>, vector<1x2x16xf32>,
    %134 = arith.truncf %51 : vector<2x32xf32> to vector<2x32xbf16>
    %cst_59 = arith.constant dense<0.000000e+00> : vector<2x128xf32>
    %135 = tpu.matmul %134, %1, %cst_59 {dimension_numbers = #tpu.dot_dimension_numbers<[1], [0], [0], [1], [0, 0, 1, 1], [], []>} : vector<2x32xbf16>, vector<32x128xbf16>, vector<2x128xf32> -> vector<2x128xf32>
    %136 = arith.addf %129, %135 : vector<2x128xf32>
    %137 = arith.addf %136, %7 : vector<2x128xf32>
    %138 = arith.negf %137 : vector<2x128xf32>
    %139 = math.exp %138 : vector<2x128xf32>
    %cst_60 = arith.constant 1.000000e+00 : f32
    %140 = vector.broadcast %cst_60 : f32 to vector<2x128xf32>
    %141 = arith.addf %140, %139 : vector<2x128xf32>
    %142 = arith.divf %140, %141 : vector<2x128xf32>
    %143 = vector.extract_strided_slice %142 {offsets = [0, 0], sizes = [2, 32], strides = [1, 1]} : vector<2x128xf32> to vector<2x32xf32>
    %144 = vector.extract_strided_slice %142 {offsets = [0, 32], sizes = [2, 32], strides = [1, 1]} : vector<2x128xf32> to vector<2x32xf32>
    %145 = vector.extract_strided_slice %142 {offsets = [0, 64], sizes = [2, 32], strides = [1, 1]} : vector<2x128xf32> to vector<2x32xf32>
    %cst_61 = arith.constant 2.000000e+00 : f32
    %146 = vector.broadcast %cst_61 : f32 to vector<2x32xf32>
    %147 = arith.mulf %146, %145 : vector<2x32xf32>
    %cst_62 = arith.constant 1.000000e+00 : f32
    %148 = vector.broadcast %cst_62 : f32 to vector<2x32xf32>
    %149 = arith.subf %147, %148 : vector<2x32xf32>
    %150 = vector.extract_strided_slice %142 {offsets = [0, 96], sizes = [2, 32], strides = [1, 1]} : vector<2x128xf32> to vector<2x32xf32>
    %151 = arith.mulf %144, %49 : vector<2x32xf32>
    %152 = arith.mulf %143, %149 : vector<2x32xf32>
    %153 = arith.addf %151, %152 : vector<2x32xf32>
    %154 = math.tanh %153 : vector<2x32xf32>
    %155 = arith.mulf %150, %154 : vector<2x32xf32>
    %c1 = arith.constant 1 : index
    %c0_63 = arith.constant 0 : index
    %c0_64 = arith.constant 0 : index
    %156 = vector.load %arg15[%c1, %c0_63, %c0_64] : memref<8x2x32xf32, #tpu.memory_space<vmem>>, vector<1x2x32xf32>
    %157 = vector.shape_cast %156 : vector<1x2x32xf32> to vector<2x32xf32>
    %158 = vector.shape_cast %155 : vector<2x32xf32> to vector<1x2x32xf32>
    tpu.vector_store %arg15[%c1, %c0_63, %c0_64], %158 {strides = array<i32>} : memref<8x2x32xf32, #tpu.memory_space<vmem>>, vector<1x2x32xf32>,
    %159 = arith.truncf %155 : vector<2x32xf32> to vector<2x32xbf16>
    %cst_65 = arith.constant dense<0.000000e+00> : vector<2x32xf32>
    %160 = tpu.matmul %159, %3, %cst_65 {dimension_numbers = #tpu.dot_dimension_numbers<[1], [0], [0], [1], [0, 0, 1, 1], [], []>} : vector<2x32xbf16>, vector<32x32xbf16>, vector<2x32xf32> -> vector<2x32xf32>
    %161 = arith.addf %160, %10 : vector<2x32xf32>
    %cst_66 = arith.constant dense<0.000000e+00> : vector<2xf32>
    %162 = vector.multi_reduction <add>, %161, %cst_66 [1] : vector<2x32xf32> to vector<2xf32>
    %163 = vector.shape_cast %162 : vector<2xf32> to vector<2x1xf32>
    %164 = arith.mulf %161, %161 : vector<2x32xf32>
    %cst_67 = arith.constant dense<0.000000e+00> : vector<2xf32>
    %165 = vector.multi_reduction <add>, %164, %cst_67 [1] : vector<2x32xf32> to vector<2xf32>
    %166 = vector.shape_cast %165 : vector<2xf32> to vector<2x1xf32>
    %cst_68 = arith.constant 3.125000e-02 : f32
    %167 = vector.broadcast %cst_68 : f32 to vector<2x1xf32>
    %168 = arith.mulf %163, %167 : vector<2x1xf32>
    %cst_69 = arith.constant 3.125000e-02 : f32
    %169 = vector.broadcast %cst_69 : f32 to vector<2x1xf32>
    %170 = arith.mulf %166, %169 : vector<2x1xf32>
    %171 = arith.mulf %168, %168 : vector<2x1xf32>
    %172 = arith.subf %170, %171 : vector<2x1xf32>
    %cst_70 = arith.constant 0.000000e+00 : f32
    %173 = vector.broadcast %cst_70 : f32 to vector<2x1xf32>
    %174 = arith.maximumf %172, %173 : vector<2x1xf32>
    %175 = vector.broadcast %168 : vector<2x1xf32> to vector<2x32xf32>
    %176 = arith.subf %161, %175 : vector<2x32xf32>
    %cst_71 = arith.constant 9.99999974E-6 : f32
    %177 = vector.broadcast %cst_71 : f32 to vector<2x1xf32>
    %178 = arith.addf %174, %177 : vector<2x1xf32>
    %179 = math.rsqrt %178 : vector<2x1xf32>
    %180 = vector.broadcast %179 : vector<2x1xf32> to vector<2x32xf32>
    %181 = arith.mulf %176, %180 : vector<2x32xf32>
    %182 = arith.mulf %181, %13 : vector<2x32xf32>
    %183 = arith.addf %182, %16 : vector<2x32xf32>
    %cst_72 = arith.constant 0.000000e+00 : f32
    %184 = vector.broadcast %cst_72 : f32 to vector<2x32xf32>
    %185 = arith.cmpf ogt, %183, %184 : vector<2x32xf32>
    %cst_73 = arith.constant 3.000000e-01 : f32
    %186 = vector.broadcast %cst_73 : f32 to vector<2x32xf32>
    %187 = arith.mulf %186, %183 : vector<2x32xf32>
    %188 = arith.select %185, %183, %187 : vector<2x32xi1>, vector<2x32xf32>
    %189 = arith.truncf %188 : vector<2x32xf32> to vector<2x32xbf16>
    %cst_74 = arith.constant dense<0.000000e+00> : vector<2x32xf32>
    %190 = tpu.matmul %189, %4, %cst_74 {dimension_numbers = #tpu.dot_dimension_numbers<[1], [0], [0], [1], [0, 0, 1, 1], [], []>} : vector<2x32xbf16>, vector<32x32xbf16>, vector<2x32xf32> -> vector<2x32xf32>
    %191 = arith.addf %190, %19 : vector<2x32xf32>
    %cst_75 = arith.constant dense<0.000000e+00> : vector<2xf32>
    %192 = vector.multi_reduction <add>, %191, %cst_75 [1] : vector<2x32xf32> to vector<2xf32>
    %193 = vector.shape_cast %192 : vector<2xf32> to vector<2x1xf32>
    %194 = arith.mulf %191, %191 : vector<2x32xf32>
    %cst_76 = arith.constant dense<0.000000e+00> : vector<2xf32>
    %195 = vector.multi_reduction <add>, %194, %cst_76 [1] : vector<2x32xf32> to vector<2xf32>
    %196 = vector.shape_cast %195 : vector<2xf32> to vector<2x1xf32>
    %cst_77 = arith.constant 3.125000e-02 : f32
    %197 = vector.broadcast %cst_77 : f32 to vector<2x1xf32>
    %198 = arith.mulf %193, %197 : vector<2x1xf32>
    %cst_78 = arith.constant 3.125000e-02 : f32
    %199 = vector.broadcast %cst_78 : f32 to vector<2x1xf32>
    %200 = arith.mulf %196, %199 : vector<2x1xf32>
    %201 = arith.mulf %198, %198 : vector<2x1xf32>
    %202 = arith.subf %200, %201 : vector<2x1xf32>
    %cst_79 = arith.constant 0.000000e+00 : f32
    %203 = vector.broadcast %cst_79 : f32 to vector<2x1xf32>
    %204 = arith.maximumf %202, %203 : vector<2x1xf32>
    %205 = vector.broadcast %198 : vector<2x1xf32> to vector<2x32xf32>
    %206 = arith.subf %191, %205 : vector<2x32xf32>
    %cst_80 = arith.constant 9.99999974E-6 : f32
    %207 = vector.broadcast %cst_80 : f32 to vector<2x1xf32>
    %208 = arith.addf %204, %207 : vector<2x1xf32>
    %209 = math.rsqrt %208 : vector<2x1xf32>
    %210 = vector.broadcast %209 : vector<2x1xf32> to vector<2x32xf32>
    %211 = arith.mulf %206, %210 : vector<2x32xf32>
    %212 = arith.mulf %211, %22 : vector<2x32xf32>
    %213 = arith.addf %212, %25 : vector<2x32xf32>
    %c1_81 = arith.constant 1 : index
    %c0_82 = arith.constant 0 : index
    %c0_83 = arith.constant 0 : index
    %214 = vector.load %arg14[%c1_81, %c0_82, %c0_83] : memref<8x2x32xf32, #tpu.memory_space<vmem>>, vector<1x2x32xf32>
    %215 = vector.shape_cast %214 : vector<1x2x32xf32> to vector<2x32xf32>
    %216 = vector.shape_cast %213 : vector<2x32xf32> to vector<1x2x32xf32>
    tpu.vector_store %arg14[%c1_81, %c0_82, %c0_83], %216 {strides = array<i32>} : memref<8x2x32xf32, #tpu.memory_space<vmem>>, vector<1x2x32xf32>,
    %cst_84 = arith.constant dense<0xFF800000> : vector<2xf32>
    %217 = vector.multi_reduction <maximumf>, %213, %cst_84 [1] : vector<2x32xf32> to vector<2xf32>
    %218 = vector.shape_cast %217 : vector<2xf32> to vector<2x1xf32>
    %219 = vector.broadcast %218 : vector<2x1xf32> to vector<2x32xf32>
    %220 = arith.cmpf oge, %213, %219 : vector<2x32xf32>
    %c32_i32_85 = arith.constant 32 : i32
    %221 = vector.shape_cast %26 : vector<1x32xi32> to vector<1x32xi32>
    %222 = vector.broadcast %221 : vector<1x32xi32> to vector<2x32xi32>
    %223 = vector.broadcast %c32_i32_85 : i32 to vector<2x32xi32>
    %224 = arith.select %220, %222, %223 : vector<2x32xi1>, vector<2x32xi32>
    %cst_86 = arith.constant dense<2147483647> : vector<2xi32>
    %225 = vector.multi_reduction <minsi>, %224, %cst_86 [1] : vector<2x32xi32> to vector<2xi32>
    %226 = vector.shape_cast %225 : vector<2xi32> to vector<2x1xi32>
    %227 = vector.broadcast %26 : vector<1x32xi32> to vector<2x32xi32>
    %228 = vector.broadcast %226 : vector<2x1xi32> to vector<2x32xi32>
    %229 = arith.cmpi eq, %227, %228 : vector<2x32xi32>
    %230 = arith.extui %229 : vector<2x32xi1> to vector<2x32xi32>
    %231 = arith.sitofp %230 : vector<2x32xi32> to vector<2x32xf32>
    %232 = arith.truncf %231 : vector<2x32xf32> to vector<2x32xbf16>
    %cst_87 = arith.constant dense<0.000000e+00> : vector<2x128xf32>
    %233 = tpu.matmul %232, %0, %cst_87 {dimension_numbers = #tpu.dot_dimension_numbers<[1], [0], [0], [1], [0, 0, 1, 1], [], []>} : vector<2x32xbf16>, vector<32x128xbf16>, vector<2x128xf32> -> vector<2x128xf32>
    %cst_88 = arith.constant dense<0.000000e+00> : vector<2x16xf32>
    %234 = tpu.matmul %231, %2, %cst_88 {dimension_numbers = #tpu.dot_dimension_numbers<[1], [0], [0], [1], [0, 0, 1, 1], [], []>} : vector<2x32xf32>, vector<32x16xf32>, vector<2x16xf32> -> vector<2x16xf32>
    %c1_89 = arith.constant 1 : index
    %c0_90 = arith.constant 0 : index
    %c0_91 = arith.constant 0 : index
    %235 = vector.load %arg16[%c1_89, %c0_90, %c0_91] : memref<8x2x16xf32, #tpu.memory_space<vmem>>, vector<1x2x16xf32>
    %236 = vector.shape_cast %235 : vector<1x2x16xf32> to vector<2x16xf32>
    %237 = vector.shape_cast %234 : vector<2x16xf32> to vector<1x2x16xf32>
    tpu.vector_store %arg16[%c1_89, %c0_90, %c0_91], %237 {strides = array<i32>} : memref<8x2x16xf32, #tpu.memory_space<vmem>>, vector<1x2x16xf32>,
    %238 = arith.truncf %155 : vector<2x32xf32> to vector<2x32xbf16>
    %cst_92 = arith.constant dense<0.000000e+00> : vector<2x128xf32>
    %239 = tpu.matmul %238, %1, %cst_92 {dimension_numbers = #tpu.dot_dimension_numbers<[1], [0], [0], [1], [0, 0, 1, 1], [], []>} : vector<2x32xbf16>, vector<32x128xbf16>, vector<2x128xf32> -> vector<2x128xf32>
    %240 = arith.addf %233, %239 : vector<2x128xf32>
    %241 = arith.addf %240, %7 : vector<2x128xf32>
    %242 = arith.negf %241 : vector<2x128xf32>
    %243 = math.exp %242 : vector<2x128xf32>
    %cst_93 = arith.constant 1.000000e+00 : f32
    %244 = vector.broadcast %cst_93 : f32 to vector<2x128xf32>
    %245 = arith.addf %244, %243 : vector<2x128xf32>
    %246 = arith.divf %244, %245 : vector<2x128xf32>
    %247 = vector.extract_strided_slice %246 {offsets = [0, 0], sizes = [2, 32], strides = [1, 1]} : vector<2x128xf32> to vector<2x32xf32>
    %248 = vector.extract_strided_slice %246 {offsets = [0, 32], sizes = [2, 32], strides = [1, 1]} : vector<2x128xf32> to vector<2x32xf32>
    %249 = vector.extract_strided_slice %246 {offsets = [0, 64], sizes = [2, 32], strides = [1, 1]} : vector<2x128xf32> to vector<2x32xf32>
    %cst_94 = arith.constant 2.000000e+00 : f32
    %250 = vector.broadcast %cst_94 : f32 to vector<2x32xf32>
    %251 = arith.mulf %250, %249 : vector<2x32xf32>
    %cst_95 = arith.constant 1.000000e+00 : f32
    %252 = vector.broadcast %cst_95 : f32 to vector<2x32xf32>
    %253 = arith.subf %251, %252 : vector<2x32xf32>
    %254 = vector.extract_strided_slice %246 {offsets = [0, 96], sizes = [2, 32], strides = [1, 1]} : vector<2x128xf32> to vector<2x32xf32>
    %255 = arith.mulf %248, %153 : vector<2x32xf32>
    %256 = arith.mulf %247, %253 : vector<2x32xf32>
    %257 = arith.addf %255, %256 : vector<2x32xf32>
    %258 = math.tanh %257 : vector<2x32xf32>
    %259 = arith.mulf %254, %258 : vector<2x32xf32>
    %c2 = arith.constant 2 : index
    %c0_96 = arith.constant 0 : index
    %c0_97 = arith.constant 0 : index
    %260 = vector.load %arg15[%c2, %c0_96, %c0_97] : memref<8x2x32xf32, #tpu.memory_space<vmem>>, vector<1x2x32xf32>
    %261 = vector.shape_cast %260 : vector<1x2x32xf32> to vector<2x32xf32>
    %262 = vector.shape_cast %259 : vector<2x32xf32> to vector<1x2x32xf32>
    tpu.vector_store %arg15[%c2, %c0_96, %c0_97], %262 {strides = array<i32>} : memref<8x2x32xf32, #tpu.memory_space<vmem>>, vector<1x2x32xf32>,
    %263 = arith.truncf %259 : vector<2x32xf32> to vector<2x32xbf16>
    %cst_98 = arith.constant dense<0.000000e+00> : vector<2x32xf32>
    %264 = tpu.matmul %263, %3, %cst_98 {dimension_numbers = #tpu.dot_dimension_numbers<[1], [0], [0], [1], [0, 0, 1, 1], [], []>} : vector<2x32xbf16>, vector<32x32xbf16>, vector<2x32xf32> -> vector<2x32xf32>
    %265 = arith.addf %264, %10 : vector<2x32xf32>
    %cst_99 = arith.constant dense<0.000000e+00> : vector<2xf32>
    %266 = vector.multi_reduction <add>, %265, %cst_99 [1] : vector<2x32xf32> to vector<2xf32>
    %267 = vector.shape_cast %266 : vector<2xf32> to vector<2x1xf32>
    %268 = arith.mulf %265, %265 : vector<2x32xf32>
    %cst_100 = arith.constant dense<0.000000e+00> : vector<2xf32>
    %269 = vector.multi_reduction <add>, %268, %cst_100 [1] : vector<2x32xf32> to vector<2xf32>
    %270 = vector.shape_cast %269 : vector<2xf32> to vector<2x1xf32>
    %cst_101 = arith.constant 3.125000e-02 : f32
    %271 = vector.broadcast %cst_101 : f32 to vector<2x1xf32>
    %272 = arith.mulf %267, %271 : vector<2x1xf32>
    %cst_102 = arith.constant 3.125000e-02 : f32
    %273 = vector.broadcast %cst_102 : f32 to vector<2x1xf32>
    %274 = arith.mulf %270, %273 : vector<2x1xf32>
    %275 = arith.mulf %272, %272 : vector<2x1xf32>
    %276 = arith.subf %274, %275 : vector<2x1xf32>
    %cst_103 = arith.constant 0.000000e+00 : f32
    %277 = vector.broadcast %cst_103 : f32 to vector<2x1xf32>
    %278 = arith.maximumf %276, %277 : vector<2x1xf32>
    %279 = vector.broadcast %272 : vector<2x1xf32> to vector<2x32xf32>
    %280 = arith.subf %265, %279 : vector<2x32xf32>
    %cst_104 = arith.constant 9.99999974E-6 : f32
    %281 = vector.broadcast %cst_104 : f32 to vector<2x1xf32>
    %282 = arith.addf %278, %281 : vector<2x1xf32>
    %283 = math.rsqrt %282 : vector<2x1xf32>
    %284 = vector.broadcast %283 : vector<2x1xf32> to vector<2x32xf32>
    %285 = arith.mulf %280, %284 : vector<2x32xf32>
    %286 = arith.mulf %285, %13 : vector<2x32xf32>
    %287 = arith.addf %286, %16 : vector<2x32xf32>
    %cst_105 = arith.constant 0.000000e+00 : f32
    %288 = vector.broadcast %cst_105 : f32 to vector<2x32xf32>
    %289 = arith.cmpf ogt, %287, %288 : vector<2x32xf32>
    %cst_106 = arith.constant 3.000000e-01 : f32
    %290 = vector.broadcast %cst_106 : f32 to vector<2x32xf32>
    %291 = arith.mulf %290, %287 : vector<2x32xf32>
    %292 = arith.select %289, %287, %291 : vector<2x32xi1>, vector<2x32xf32>
    %293 = arith.truncf %292 : vector<2x32xf32> to vector<2x32xbf16>
    %cst_107 = arith.constant dense<0.000000e+00> : vector<2x32xf32>
    %294 = tpu.matmul %293, %4, %cst_107 {dimension_numbers = #tpu.dot_dimension_numbers<[1], [0], [0], [1], [0, 0, 1, 1], [], []>} : vector<2x32xbf16>, vector<32x32xbf16>, vector<2x32xf32> -> vector<2x32xf32>
    %295 = arith.addf %294, %19 : vector<2x32xf32>
    %cst_108 = arith.constant dense<0.000000e+00> : vector<2xf32>
    %296 = vector.multi_reduction <add>, %295, %cst_108 [1] : vector<2x32xf32> to vector<2xf32>
    %297 = vector.shape_cast %296 : vector<2xf32> to vector<2x1xf32>
    %298 = arith.mulf %295, %295 : vector<2x32xf32>
    %cst_109 = arith.constant dense<0.000000e+00> : vector<2xf32>
    %299 = vector.multi_reduction <add>, %298, %cst_109 [1] : vector<2x32xf32> to vector<2xf32>
    %300 = vector.shape_cast %299 : vector<2xf32> to vector<2x1xf32>
    %cst_110 = arith.constant 3.125000e-02 : f32
    %301 = vector.broadcast %cst_110 : f32 to vector<2x1xf32>
    %302 = arith.mulf %297, %301 : vector<2x1xf32>
    %cst_111 = arith.constant 3.125000e-02 : f32
    %303 = vector.broadcast %cst_111 : f32 to vector<2x1xf32>
    %304 = arith.mulf %300, %303 : vector<2x1xf32>
    %305 = arith.mulf %302, %302 : vector<2x1xf32>
    %306 = arith.subf %304, %305 : vector<2x1xf32>
    %cst_112 = arith.constant 0.000000e+00 : f32
    %307 = vector.broadcast %cst_112 : f32 to vector<2x1xf32>
    %308 = arith.maximumf %306, %307 : vector<2x1xf32>
    %309 = vector.broadcast %302 : vector<2x1xf32> to vector<2x32xf32>
    %310 = arith.subf %295, %309 : vector<2x32xf32>
    %cst_113 = arith.constant 9.99999974E-6 : f32
    %311 = vector.broadcast %cst_113 : f32 to vector<2x1xf32>
    %312 = arith.addf %308, %311 : vector<2x1xf32>
    %313 = math.rsqrt %312 : vector<2x1xf32>
    %314 = vector.broadcast %313 : vector<2x1xf32> to vector<2x32xf32>
    %315 = arith.mulf %310, %314 : vector<2x32xf32>
    %316 = arith.mulf %315, %22 : vector<2x32xf32>
    %317 = arith.addf %316, %25 : vector<2x32xf32>
    %c2_114 = arith.constant 2 : index
    %c0_115 = arith.constant 0 : index
    %c0_116 = arith.constant 0 : index
    %318 = vector.load %arg14[%c2_114, %c0_115, %c0_116] : memref<8x2x32xf32, #tpu.memory_space<vmem>>, vector<1x2x32xf32>
    %319 = vector.shape_cast %318 : vector<1x2x32xf32> to vector<2x32xf32>
    %320 = vector.shape_cast %317 : vector<2x32xf32> to vector<1x2x32xf32>
    tpu.vector_store %arg14[%c2_114, %c0_115, %c0_116], %320 {strides = array<i32>} : memref<8x2x32xf32, #tpu.memory_space<vmem>>, vector<1x2x32xf32>,
    %cst_117 = arith.constant dense<0xFF800000> : vector<2xf32>
    %321 = vector.multi_reduction <maximumf>, %317, %cst_117 [1] : vector<2x32xf32> to vector<2xf32>
    %322 = vector.shape_cast %321 : vector<2xf32> to vector<2x1xf32>
    %323 = vector.broadcast %322 : vector<2x1xf32> to vector<2x32xf32>
    %324 = arith.cmpf oge, %317, %323 : vector<2x32xf32>
    %c32_i32_118 = arith.constant 32 : i32
    %325 = vector.shape_cast %26 : vector<1x32xi32> to vector<1x32xi32>
    %326 = vector.broadcast %325 : vector<1x32xi32> to vector<2x32xi32>
    %327 = vector.broadcast %c32_i32_118 : i32 to vector<2x32xi32>
    %328 = arith.select %324, %326, %327 : vector<2x32xi1>, vector<2x32xi32>
    %cst_119 = arith.constant dense<2147483647> : vector<2xi32>
    %329 = vector.multi_reduction <minsi>, %328, %cst_119 [1] : vector<2x32xi32> to vector<2xi32>
    %330 = vector.shape_cast %329 : vector<2xi32> to vector<2x1xi32>
    %331 = vector.broadcast %26 : vector<1x32xi32> to vector<2x32xi32>
    %332 = vector.broadcast %330 : vector<2x1xi32> to vector<2x32xi32>
    %333 = arith.cmpi eq, %331, %332 : vector<2x32xi32>
    %334 = arith.extui %333 : vector<2x32xi1> to vector<2x32xi32>
    %335 = arith.sitofp %334 : vector<2x32xi32> to vector<2x32xf32>
    %336 = arith.truncf %335 : vector<2x32xf32> to vector<2x32xbf16>
    %cst_120 = arith.constant dense<0.000000e+00> : vector<2x128xf32>
    %337 = tpu.matmul %336, %0, %cst_120 {dimension_numbers = #tpu.dot_dimension_numbers<[1], [0], [0], [1], [0, 0, 1, 1], [], []>} : vector<2x32xbf16>, vector<32x128xbf16>, vector<2x128xf32> -> vector<2x128xf32>
    %cst_121 = arith.constant dense<0.000000e+00> : vector<2x16xf32>
    %338 = tpu.matmul %335, %2, %cst_121 {dimension_numbers = #tpu.dot_dimension_numbers<[1], [0], [0], [1], [0, 0, 1, 1], [], []>} : vector<2x32xf32>, vector<32x16xf32>, vector<2x16xf32> -> vector<2x16xf32>
    %c2_122 = arith.constant 2 : index
    %c0_123 = arith.constant 0 : index
    %c0_124 = arith.constant 0 : index
    %339 = vector.load %arg16[%c2_122, %c0_123, %c0_124] : memref<8x2x16xf32, #tpu.memory_space<vmem>>, vector<1x2x16xf32>
    %340 = vector.shape_cast %339 : vector<1x2x16xf32> to vector<2x16xf32>
    %341 = vector.shape_cast %338 : vector<2x16xf32> to vector<1x2x16xf32>
    tpu.vector_store %arg16[%c2_122, %c0_123, %c0_124], %341 {strides = array<i32>} : memref<8x2x16xf32, #tpu.memory_space<vmem>>, vector<1x2x16xf32>,
    %342 = arith.truncf %259 : vector<2x32xf32> to vector<2x32xbf16>
    %cst_125 = arith.constant dense<0.000000e+00> : vector<2x128xf32>
    %343 = tpu.matmul %342, %1, %cst_125 {dimension_numbers = #tpu.dot_dimension_numbers<[1], [0], [0], [1], [0, 0, 1, 1], [], []>} : vector<2x32xbf16>, vector<32x128xbf16>, vector<2x128xf32> -> vector<2x128xf32>
    %344 = arith.addf %337, %343 : vector<2x128xf32>
    %345 = arith.addf %344, %7 : vector<2x128xf32>
    %346 = arith.negf %345 : vector<2x128xf32>
    %347 = math.exp %346 : vector<2x128xf32>
    %cst_126 = arith.constant 1.000000e+00 : f32
    %348 = vector.broadcast %cst_126 : f32 to vector<2x128xf32>
    %349 = arith.addf %348, %347 : vector<2x128xf32>
    %350 = arith.divf %348, %349 : vector<2x128xf32>
    %351 = vector.extract_strided_slice %350 {offsets = [0, 0], sizes = [2, 32], strides = [1, 1]} : vector<2x128xf32> to vector<2x32xf32>
    %352 = vector.extract_strided_slice %350 {offsets = [0, 32], sizes = [2, 32], strides = [1, 1]} : vector<2x128xf32> to vector<2x32xf32>
    %353 = vector.extract_strided_slice %350 {offsets = [0, 64], sizes = [2, 32], strides = [1, 1]} : vector<2x128xf32> to vector<2x32xf32>
    %cst_127 = arith.constant 2.000000e+00 : f32
    %354 = vector.broadcast %cst_127 : f32 to vector<2x32xf32>
    %355 = arith.mulf %354, %353 : vector<2x32xf32>
    %cst_128 = arith.constant 1.000000e+00 : f32
    %356 = vector.broadcast %cst_128 : f32 to vector<2x32xf32>
    %357 = arith.subf %355, %356 : vector<2x32xf32>
    %358 = vector.extract_strided_slice %350 {offsets = [0, 96], sizes = [2, 32], strides = [1, 1]} : vector<2x128xf32> to vector<2x32xf32>
    %359 = arith.mulf %352, %257 : vector<2x32xf32>
    %360 = arith.mulf %351, %357 : vector<2x32xf32>
    %361 = arith.addf %359, %360 : vector<2x32xf32>
    %362 = math.tanh %361 : vector<2x32xf32>
    %363 = arith.mulf %358, %362 : vector<2x32xf32>
    %c3 = arith.constant 3 : index
    %c0_129 = arith.constant 0 : index
    %c0_130 = arith.constant 0 : index
    %364 = vector.load %arg15[%c3, %c0_129, %c0_130] : memref<8x2x32xf32, #tpu.memory_space<vmem>>, vector<1x2x32xf32>
    %365 = vector.shape_cast %364 : vector<1x2x32xf32> to vector<2x32xf32>
    %366 = vector.shape_cast %363 : vector<2x32xf32> to vector<1x2x32xf32>
    tpu.vector_store %arg15[%c3, %c0_129, %c0_130], %366 {strides = array<i32>} : memref<8x2x32xf32, #tpu.memory_space<vmem>>, vector<1x2x32xf32>,
    %367 = arith.truncf %363 : vector<2x32xf32> to vector<2x32xbf16>
    %cst_131 = arith.constant dense<0.000000e+00> : vector<2x32xf32>
    %368 = tpu.matmul %367, %3, %cst_131 {dimension_numbers = #tpu.dot_dimension_numbers<[1], [0], [0], [1], [0, 0, 1, 1], [], []>} : vector<2x32xbf16>, vector<32x32xbf16>, vector<2x32xf32> -> vector<2x32xf32>
    %369 = arith.addf %368, %10 : vector<2x32xf32>
    %cst_132 = arith.constant dense<0.000000e+00> : vector<2xf32>
    %370 = vector.multi_reduction <add>, %369, %cst_132 [1] : vector<2x32xf32> to vector<2xf32>
    %371 = vector.shape_cast %370 : vector<2xf32> to vector<2x1xf32>
    %372 = arith.mulf %369, %369 : vector<2x32xf32>
    %cst_133 = arith.constant dense<0.000000e+00> : vector<2xf32>
    %373 = vector.multi_reduction <add>, %372, %cst_133 [1] : vector<2x32xf32> to vector<2xf32>
    %374 = vector.shape_cast %373 : vector<2xf32> to vector<2x1xf32>
    %cst_134 = arith.constant 3.125000e-02 : f32
    %375 = vector.broadcast %cst_134 : f32 to vector<2x1xf32>
    %376 = arith.mulf %371, %375 : vector<2x1xf32>
    %cst_135 = arith.constant 3.125000e-02 : f32
    %377 = vector.broadcast %cst_135 : f32 to vector<2x1xf32>
    %378 = arith.mulf %374, %377 : vector<2x1xf32>
    %379 = arith.mulf %376, %376 : vector<2x1xf32>
    %380 = arith.subf %378, %379 : vector<2x1xf32>
    %cst_136 = arith.constant 0.000000e+00 : f32
    %381 = vector.broadcast %cst_136 : f32 to vector<2x1xf32>
    %382 = arith.maximumf %380, %381 : vector<2x1xf32>
    %383 = vector.broadcast %376 : vector<2x1xf32> to vector<2x32xf32>
    %384 = arith.subf %369, %383 : vector<2x32xf32>
    %cst_137 = arith.constant 9.99999974E-6 : f32
    %385 = vector.broadcast %cst_137 : f32 to vector<2x1xf32>
    %386 = arith.addf %382, %385 : vector<2x1xf32>
    %387 = math.rsqrt %386 : vector<2x1xf32>
    %388 = vector.broadcast %387 : vector<2x1xf32> to vector<2x32xf32>
    %389 = arith.mulf %384, %388 : vector<2x32xf32>
    %390 = arith.mulf %389, %13 : vector<2x32xf32>
    %391 = arith.addf %390, %16 : vector<2x32xf32>
    %cst_138 = arith.constant 0.000000e+00 : f32
    %392 = vector.broadcast %cst_138 : f32 to vector<2x32xf32>
    %393 = arith.cmpf ogt, %391, %392 : vector<2x32xf32>
    %cst_139 = arith.constant 3.000000e-01 : f32
    %394 = vector.broadcast %cst_139 : f32 to vector<2x32xf32>
    %395 = arith.mulf %394, %391 : vector<2x32xf32>
    %396 = arith.select %393, %391, %395 : vector<2x32xi1>, vector<2x32xf32>
    %397 = arith.truncf %396 : vector<2x32xf32> to vector<2x32xbf16>
    %cst_140 = arith.constant dense<0.000000e+00> : vector<2x32xf32>
    %398 = tpu.matmul %397, %4, %cst_140 {dimension_numbers = #tpu.dot_dimension_numbers<[1], [0], [0], [1], [0, 0, 1, 1], [], []>} : vector<2x32xbf16>, vector<32x32xbf16>, vector<2x32xf32> -> vector<2x32xf32>
    %399 = arith.addf %398, %19 : vector<2x32xf32>
    %cst_141 = arith.constant dense<0.000000e+00> : vector<2xf32>
    %400 = vector.multi_reduction <add>, %399, %cst_141 [1] : vector<2x32xf32> to vector<2xf32>
    %401 = vector.shape_cast %400 : vector<2xf32> to vector<2x1xf32>
    %402 = arith.mulf %399, %399 : vector<2x32xf32>
    %cst_142 = arith.constant dense<0.000000e+00> : vector<2xf32>
    %403 = vector.multi_reduction <add>, %402, %cst_142 [1] : vector<2x32xf32> to vector<2xf32>
    %404 = vector.shape_cast %403 : vector<2xf32> to vector<2x1xf32>
    %cst_143 = arith.constant 3.125000e-02 : f32
    %405 = vector.broadcast %cst_143 : f32 to vector<2x1xf32>
    %406 = arith.mulf %401, %405 : vector<2x1xf32>
    %cst_144 = arith.constant 3.125000e-02 : f32
    %407 = vector.broadcast %cst_144 : f32 to vector<2x1xf32>
    %408 = arith.mulf %404, %407 : vector<2x1xf32>
    %409 = arith.mulf %406, %406 : vector<2x1xf32>
    %410 = arith.subf %408, %409 : vector<2x1xf32>
    %cst_145 = arith.constant 0.000000e+00 : f32
    %411 = vector.broadcast %cst_145 : f32 to vector<2x1xf32>
    %412 = arith.maximumf %410, %411 : vector<2x1xf32>
    %413 = vector.broadcast %406 : vector<2x1xf32> to vector<2x32xf32>
    %414 = arith.subf %399, %413 : vector<2x32xf32>
    %cst_146 = arith.constant 9.99999974E-6 : f32
    %415 = vector.broadcast %cst_146 : f32 to vector<2x1xf32>
    %416 = arith.addf %412, %415 : vector<2x1xf32>
    %417 = math.rsqrt %416 : vector<2x1xf32>
    %418 = vector.broadcast %417 : vector<2x1xf32> to vector<2x32xf32>
    %419 = arith.mulf %414, %418 : vector<2x32xf32>
    %420 = arith.mulf %419, %22 : vector<2x32xf32>
    %421 = arith.addf %420, %25 : vector<2x32xf32>
    %c3_147 = arith.constant 3 : index
    %c0_148 = arith.constant 0 : index
    %c0_149 = arith.constant 0 : index
    %422 = vector.load %arg14[%c3_147, %c0_148, %c0_149] : memref<8x2x32xf32, #tpu.memory_space<vmem>>, vector<1x2x32xf32>
    %423 = vector.shape_cast %422 : vector<1x2x32xf32> to vector<2x32xf32>
    %424 = vector.shape_cast %421 : vector<2x32xf32> to vector<1x2x32xf32>
    tpu.vector_store %arg14[%c3_147, %c0_148, %c0_149], %424 {strides = array<i32>} : memref<8x2x32xf32, #tpu.memory_space<vmem>>, vector<1x2x32xf32>,
    %cst_150 = arith.constant dense<0xFF800000> : vector<2xf32>
    %425 = vector.multi_reduction <maximumf>, %421, %cst_150 [1] : vector<2x32xf32> to vector<2xf32>
    %426 = vector.shape_cast %425 : vector<2xf32> to vector<2x1xf32>
    %427 = vector.broadcast %426 : vector<2x1xf32> to vector<2x32xf32>
    %428 = arith.cmpf oge, %421, %427 : vector<2x32xf32>
    %c32_i32_151 = arith.constant 32 : i32
    %429 = vector.shape_cast %26 : vector<1x32xi32> to vector<1x32xi32>
    %430 = vector.broadcast %429 : vector<1x32xi32> to vector<2x32xi32>
    %431 = vector.broadcast %c32_i32_151 : i32 to vector<2x32xi32>
    %432 = arith.select %428, %430, %431 : vector<2x32xi1>, vector<2x32xi32>
    %cst_152 = arith.constant dense<2147483647> : vector<2xi32>
    %433 = vector.multi_reduction <minsi>, %432, %cst_152 [1] : vector<2x32xi32> to vector<2xi32>
    %434 = vector.shape_cast %433 : vector<2xi32> to vector<2x1xi32>
    %435 = vector.broadcast %26 : vector<1x32xi32> to vector<2x32xi32>
    %436 = vector.broadcast %434 : vector<2x1xi32> to vector<2x32xi32>
    %437 = arith.cmpi eq, %435, %436 : vector<2x32xi32>
    %438 = arith.extui %437 : vector<2x32xi1> to vector<2x32xi32>
    %439 = arith.sitofp %438 : vector<2x32xi32> to vector<2x32xf32>
    %440 = arith.truncf %439 : vector<2x32xf32> to vector<2x32xbf16>
    %cst_153 = arith.constant dense<0.000000e+00> : vector<2x128xf32>
    %441 = tpu.matmul %440, %0, %cst_153 {dimension_numbers = #tpu.dot_dimension_numbers<[1], [0], [0], [1], [0, 0, 1, 1], [], []>} : vector<2x32xbf16>, vector<32x128xbf16>, vector<2x128xf32> -> vector<2x128xf32>
    %cst_154 = arith.constant dense<0.000000e+00> : vector<2x16xf32>
    %442 = tpu.matmul %439, %2, %cst_154 {dimension_numbers = #tpu.dot_dimension_numbers<[1], [0], [0], [1], [0, 0, 1, 1], [], []>} : vector<2x32xf32>, vector<32x16xf32>, vector<2x16xf32> -> vector<2x16xf32>
    %c3_155 = arith.constant 3 : index
    %c0_156 = arith.constant 0 : index
    %c0_157 = arith.constant 0 : index
    %443 = vector.load %arg16[%c3_155, %c0_156, %c0_157] : memref<8x2x16xf32, #tpu.memory_space<vmem>>, vector<1x2x16xf32>
    %444 = vector.shape_cast %443 : vector<1x2x16xf32> to vector<2x16xf32>
    %445 = vector.shape_cast %442 : vector<2x16xf32> to vector<1x2x16xf32>
    tpu.vector_store %arg16[%c3_155, %c0_156, %c0_157], %445 {strides = array<i32>} : memref<8x2x16xf32, #tpu.memory_space<vmem>>, vector<1x2x16xf32>,
    %446 = arith.truncf %363 : vector<2x32xf32> to vector<2x32xbf16>
    %cst_158 = arith.constant dense<0.000000e+00> : vector<2x128xf32>
    %447 = tpu.matmul %446, %1, %cst_158 {dimension_numbers = #tpu.dot_dimension_numbers<[1], [0], [0], [1], [0, 0, 1, 1], [], []>} : vector<2x32xbf16>, vector<32x128xbf16>, vector<2x128xf32> -> vector<2x128xf32>
    %448 = arith.addf %441, %447 : vector<2x128xf32>
    %449 = arith.addf %448, %7 : vector<2x128xf32>
    %450 = arith.negf %449 : vector<2x128xf32>
    %451 = math.exp %450 : vector<2x128xf32>
    %cst_159 = arith.constant 1.000000e+00 : f32
    %452 = vector.broadcast %cst_159 : f32 to vector<2x128xf32>
    %453 = arith.addf %452, %451 : vector<2x128xf32>
    %454 = arith.divf %452, %453 : vector<2x128xf32>
    %455 = vector.extract_strided_slice %454 {offsets = [0, 0], sizes = [2, 32], strides = [1, 1]} : vector<2x128xf32> to vector<2x32xf32>
    %456 = vector.extract_strided_slice %454 {offsets = [0, 32], sizes = [2, 32], strides = [1, 1]} : vector<2x128xf32> to vector<2x32xf32>
    %457 = vector.extract_strided_slice %454 {offsets = [0, 64], sizes = [2, 32], strides = [1, 1]} : vector<2x128xf32> to vector<2x32xf32>
    %cst_160 = arith.constant 2.000000e+00 : f32
    %458 = vector.broadcast %cst_160 : f32 to vector<2x32xf32>
    %459 = arith.mulf %458, %457 : vector<2x32xf32>
    %cst_161 = arith.constant 1.000000e+00 : f32
    %460 = vector.broadcast %cst_161 : f32 to vector<2x32xf32>
    %461 = arith.subf %459, %460 : vector<2x32xf32>
    %462 = vector.extract_strided_slice %454 {offsets = [0, 96], sizes = [2, 32], strides = [1, 1]} : vector<2x128xf32> to vector<2x32xf32>
    %463 = arith.mulf %456, %361 : vector<2x32xf32>
    %464 = arith.mulf %455, %461 : vector<2x32xf32>
    %465 = arith.addf %463, %464 : vector<2x32xf32>
    %466 = math.tanh %465 : vector<2x32xf32>
    %467 = arith.mulf %462, %466 : vector<2x32xf32>
    %c4 = arith.constant 4 : index
    %c0_162 = arith.constant 0 : index
    %c0_163 = arith.constant 0 : index
    %468 = vector.load %arg15[%c4, %c0_162, %c0_163] : memref<8x2x32xf32, #tpu.memory_space<vmem>>, vector<1x2x32xf32>
    %469 = vector.shape_cast %468 : vector<1x2x32xf32> to vector<2x32xf32>
    %470 = vector.shape_cast %467 : vector<2x32xf32> to vector<1x2x32xf32>
    tpu.vector_store %arg15[%c4, %c0_162, %c0_163], %470 {strides = array<i32>} : memref<8x2x32xf32, #tpu.memory_space<vmem>>, vector<1x2x32xf32>,
    %471 = arith.truncf %467 : vector<2x32xf32> to vector<2x32xbf16>
    %cst_164 = arith.constant dense<0.000000e+00> : vector<2x32xf32>
    %472 = tpu.matmul %471, %3, %cst_164 {dimension_numbers = #tpu.dot_dimension_numbers<[1], [0], [0], [1], [0, 0, 1, 1], [], []>} : vector<2x32xbf16>, vector<32x32xbf16>, vector<2x32xf32> -> vector<2x32xf32>
    %473 = arith.addf %472, %10 : vector<2x32xf32>
    %cst_165 = arith.constant dense<0.000000e+00> : vector<2xf32>
    %474 = vector.multi_reduction <add>, %473, %cst_165 [1] : vector<2x32xf32> to vector<2xf32>
    %475 = vector.shape_cast %474 : vector<2xf32> to vector<2x1xf32>
    %476 = arith.mulf %473, %473 : vector<2x32xf32>
    %cst_166 = arith.constant dense<0.000000e+00> : vector<2xf32>
    %477 = vector.multi_reduction <add>, %476, %cst_166 [1] : vector<2x32xf32> to vector<2xf32>
    %478 = vector.shape_cast %477 : vector<2xf32> to vector<2x1xf32>
    %cst_167 = arith.constant 3.125000e-02 : f32
    %479 = vector.broadcast %cst_167 : f32 to vector<2x1xf32>
    %480 = arith.mulf %475, %479 : vector<2x1xf32>
    %cst_168 = arith.constant 3.125000e-02 : f32
    %481 = vector.broadcast %cst_168 : f32 to vector<2x1xf32>
    %482 = arith.mulf %478, %481 : vector<2x1xf32>
    %483 = arith.mulf %480, %480 : vector<2x1xf32>
    %484 = arith.subf %482, %483 : vector<2x1xf32>
    %cst_169 = arith.constant 0.000000e+00 : f32
    %485 = vector.broadcast %cst_169 : f32 to vector<2x1xf32>
    %486 = arith.maximumf %484, %485 : vector<2x1xf32>
    %487 = vector.broadcast %480 : vector<2x1xf32> to vector<2x32xf32>
    %488 = arith.subf %473, %487 : vector<2x32xf32>
    %cst_170 = arith.constant 9.99999974E-6 : f32
    %489 = vector.broadcast %cst_170 : f32 to vector<2x1xf32>
    %490 = arith.addf %486, %489 : vector<2x1xf32>
    %491 = math.rsqrt %490 : vector<2x1xf32>
    %492 = vector.broadcast %491 : vector<2x1xf32> to vector<2x32xf32>
    %493 = arith.mulf %488, %492 : vector<2x32xf32>
    %494 = arith.mulf %493, %13 : vector<2x32xf32>
    %495 = arith.addf %494, %16 : vector<2x32xf32>
    %cst_171 = arith.constant 0.000000e+00 : f32
    %496 = vector.broadcast %cst_171 : f32 to vector<2x32xf32>
    %497 = arith.cmpf ogt, %495, %496 : vector<2x32xf32>
    %cst_172 = arith.constant 3.000000e-01 : f32
    %498 = vector.broadcast %cst_172 : f32 to vector<2x32xf32>
    %499 = arith.mulf %498, %495 : vector<2x32xf32>
    %500 = arith.select %497, %495, %499 : vector<2x32xi1>, vector<2x32xf32>
    %501 = arith.truncf %500 : vector<2x32xf32> to vector<2x32xbf16>
    %cst_173 = arith.constant dense<0.000000e+00> : vector<2x32xf32>
    %502 = tpu.matmul %501, %4, %cst_173 {dimension_numbers = #tpu.dot_dimension_numbers<[1], [0], [0], [1], [0, 0, 1, 1], [], []>} : vector<2x32xbf16>, vector<32x32xbf16>, vector<2x32xf32> -> vector<2x32xf32>
    %503 = arith.addf %502, %19 : vector<2x32xf32>
    %cst_174 = arith.constant dense<0.000000e+00> : vector<2xf32>
    %504 = vector.multi_reduction <add>, %503, %cst_174 [1] : vector<2x32xf32> to vector<2xf32>
    %505 = vector.shape_cast %504 : vector<2xf32> to vector<2x1xf32>
    %506 = arith.mulf %503, %503 : vector<2x32xf32>
    %cst_175 = arith.constant dense<0.000000e+00> : vector<2xf32>
    %507 = vector.multi_reduction <add>, %506, %cst_175 [1] : vector<2x32xf32> to vector<2xf32>
    %508 = vector.shape_cast %507 : vector<2xf32> to vector<2x1xf32>
    %cst_176 = arith.constant 3.125000e-02 : f32
    %509 = vector.broadcast %cst_176 : f32 to vector<2x1xf32>
    %510 = arith.mulf %505, %509 : vector<2x1xf32>
    %cst_177 = arith.constant 3.125000e-02 : f32
    %511 = vector.broadcast %cst_177 : f32 to vector<2x1xf32>
    %512 = arith.mulf %508, %511 : vector<2x1xf32>
    %513 = arith.mulf %510, %510 : vector<2x1xf32>
    %514 = arith.subf %512, %513 : vector<2x1xf32>
    %cst_178 = arith.constant 0.000000e+00 : f32
    %515 = vector.broadcast %cst_178 : f32 to vector<2x1xf32>
    %516 = arith.maximumf %514, %515 : vector<2x1xf32>
    %517 = vector.broadcast %510 : vector<2x1xf32> to vector<2x32xf32>
    %518 = arith.subf %503, %517 : vector<2x32xf32>
    %cst_179 = arith.constant 9.99999974E-6 : f32
    %519 = vector.broadcast %cst_179 : f32 to vector<2x1xf32>
    %520 = arith.addf %516, %519 : vector<2x1xf32>
    %521 = math.rsqrt %520 : vector<2x1xf32>
    %522 = vector.broadcast %521 : vector<2x1xf32> to vector<2x32xf32>
    %523 = arith.mulf %518, %522 : vector<2x32xf32>
    %524 = arith.mulf %523, %22 : vector<2x32xf32>
    %525 = arith.addf %524, %25 : vector<2x32xf32>
    %c4_180 = arith.constant 4 : index
    %c0_181 = arith.constant 0 : index
    %c0_182 = arith.constant 0 : index
    %526 = vector.load %arg14[%c4_180, %c0_181, %c0_182] : memref<8x2x32xf32, #tpu.memory_space<vmem>>, vector<1x2x32xf32>
    %527 = vector.shape_cast %526 : vector<1x2x32xf32> to vector<2x32xf32>
    %528 = vector.shape_cast %525 : vector<2x32xf32> to vector<1x2x32xf32>
    tpu.vector_store %arg14[%c4_180, %c0_181, %c0_182], %528 {strides = array<i32>} : memref<8x2x32xf32, #tpu.memory_space<vmem>>, vector<1x2x32xf32>,
    %cst_183 = arith.constant dense<0xFF800000> : vector<2xf32>
    %529 = vector.multi_reduction <maximumf>, %525, %cst_183 [1] : vector<2x32xf32> to vector<2xf32>
    %530 = vector.shape_cast %529 : vector<2xf32> to vector<2x1xf32>
    %531 = vector.broadcast %530 : vector<2x1xf32> to vector<2x32xf32>
    %532 = arith.cmpf oge, %525, %531 : vector<2x32xf32>
    %c32_i32_184 = arith.constant 32 : i32
    %533 = vector.shape_cast %26 : vector<1x32xi32> to vector<1x32xi32>
    %534 = vector.broadcast %533 : vector<1x32xi32> to vector<2x32xi32>
    %535 = vector.broadcast %c32_i32_184 : i32 to vector<2x32xi32>
    %536 = arith.select %532, %534, %535 : vector<2x32xi1>, vector<2x32xi32>
    %cst_185 = arith.constant dense<2147483647> : vector<2xi32>
    %537 = vector.multi_reduction <minsi>, %536, %cst_185 [1] : vector<2x32xi32> to vector<2xi32>
    %538 = vector.shape_cast %537 : vector<2xi32> to vector<2x1xi32>
    %539 = vector.broadcast %26 : vector<1x32xi32> to vector<2x32xi32>
    %540 = vector.broadcast %538 : vector<2x1xi32> to vector<2x32xi32>
    %541 = arith.cmpi eq, %539, %540 : vector<2x32xi32>
    %542 = arith.extui %541 : vector<2x32xi1> to vector<2x32xi32>
    %543 = arith.sitofp %542 : vector<2x32xi32> to vector<2x32xf32>
    %544 = arith.truncf %543 : vector<2x32xf32> to vector<2x32xbf16>
    %cst_186 = arith.constant dense<0.000000e+00> : vector<2x128xf32>
    %545 = tpu.matmul %544, %0, %cst_186 {dimension_numbers = #tpu.dot_dimension_numbers<[1], [0], [0], [1], [0, 0, 1, 1], [], []>} : vector<2x32xbf16>, vector<32x128xbf16>, vector<2x128xf32> -> vector<2x128xf32>
    %cst_187 = arith.constant dense<0.000000e+00> : vector<2x16xf32>
    %546 = tpu.matmul %543, %2, %cst_187 {dimension_numbers = #tpu.dot_dimension_numbers<[1], [0], [0], [1], [0, 0, 1, 1], [], []>} : vector<2x32xf32>, vector<32x16xf32>, vector<2x16xf32> -> vector<2x16xf32>
    %c4_188 = arith.constant 4 : index
    %c0_189 = arith.constant 0 : index
    %c0_190 = arith.constant 0 : index
    %547 = vector.load %arg16[%c4_188, %c0_189, %c0_190] : memref<8x2x16xf32, #tpu.memory_space<vmem>>, vector<1x2x16xf32>
    %548 = vector.shape_cast %547 : vector<1x2x16xf32> to vector<2x16xf32>
    %549 = vector.shape_cast %546 : vector<2x16xf32> to vector<1x2x16xf32>
    tpu.vector_store %arg16[%c4_188, %c0_189, %c0_190], %549 {strides = array<i32>} : memref<8x2x16xf32, #tpu.memory_space<vmem>>, vector<1x2x16xf32>,
    %550 = arith.truncf %467 : vector<2x32xf32> to vector<2x32xbf16>
    %cst_191 = arith.constant dense<0.000000e+00> : vector<2x128xf32>
    %551 = tpu.matmul %550, %1, %cst_191 {dimension_numbers = #tpu.dot_dimension_numbers<[1], [0], [0], [1], [0, 0, 1, 1], [], []>} : vector<2x32xbf16>, vector<32x128xbf16>, vector<2x128xf32> -> vector<2x128xf32>
    %552 = arith.addf %545, %551 : vector<2x128xf32>
    %553 = arith.addf %552, %7 : vector<2x128xf32>
    %554 = arith.negf %553 : vector<2x128xf32>
    %555 = math.exp %554 : vector<2x128xf32>
    %cst_192 = arith.constant 1.000000e+00 : f32
    %556 = vector.broadcast %cst_192 : f32 to vector<2x128xf32>
    %557 = arith.addf %556, %555 : vector<2x128xf32>
    %558 = arith.divf %556, %557 : vector<2x128xf32>
    %559 = vector.extract_strided_slice %558 {offsets = [0, 0], sizes = [2, 32], strides = [1, 1]} : vector<2x128xf32> to vector<2x32xf32>
    %560 = vector.extract_strided_slice %558 {offsets = [0, 32], sizes = [2, 32], strides = [1, 1]} : vector<2x128xf32> to vector<2x32xf32>
    %561 = vector.extract_strided_slice %558 {offsets = [0, 64], sizes = [2, 32], strides = [1, 1]} : vector<2x128xf32> to vector<2x32xf32>
    %cst_193 = arith.constant 2.000000e+00 : f32
    %562 = vector.broadcast %cst_193 : f32 to vector<2x32xf32>
    %563 = arith.mulf %562, %561 : vector<2x32xf32>
    %cst_194 = arith.constant 1.000000e+00 : f32
    %564 = vector.broadcast %cst_194 : f32 to vector<2x32xf32>
    %565 = arith.subf %563, %564 : vector<2x32xf32>
    %566 = vector.extract_strided_slice %558 {offsets = [0, 96], sizes = [2, 32], strides = [1, 1]} : vector<2x128xf32> to vector<2x32xf32>
    %567 = arith.mulf %560, %465 : vector<2x32xf32>
    %568 = arith.mulf %559, %565 : vector<2x32xf32>
    %569 = arith.addf %567, %568 : vector<2x32xf32>
    %570 = math.tanh %569 : vector<2x32xf32>
    %571 = arith.mulf %566, %570 : vector<2x32xf32>
    %c5 = arith.constant 5 : index
    %c0_195 = arith.constant 0 : index
    %c0_196 = arith.constant 0 : index
    %572 = vector.load %arg15[%c5, %c0_195, %c0_196] : memref<8x2x32xf32, #tpu.memory_space<vmem>>, vector<1x2x32xf32>
    %573 = vector.shape_cast %572 : vector<1x2x32xf32> to vector<2x32xf32>
    %574 = vector.shape_cast %571 : vector<2x32xf32> to vector<1x2x32xf32>
    tpu.vector_store %arg15[%c5, %c0_195, %c0_196], %574 {strides = array<i32>} : memref<8x2x32xf32, #tpu.memory_space<vmem>>, vector<1x2x32xf32>,
    %575 = arith.truncf %571 : vector<2x32xf32> to vector<2x32xbf16>
    %cst_197 = arith.constant dense<0.000000e+00> : vector<2x32xf32>
    %576 = tpu.matmul %575, %3, %cst_197 {dimension_numbers = #tpu.dot_dimension_numbers<[1], [0], [0], [1], [0, 0, 1, 1], [], []>} : vector<2x32xbf16>, vector<32x32xbf16>, vector<2x32xf32> -> vector<2x32xf32>
    %577 = arith.addf %576, %10 : vector<2x32xf32>
    %cst_198 = arith.constant dense<0.000000e+00> : vector<2xf32>
    %578 = vector.multi_reduction <add>, %577, %cst_198 [1] : vector<2x32xf32> to vector<2xf32>
    %579 = vector.shape_cast %578 : vector<2xf32> to vector<2x1xf32>
    %580 = arith.mulf %577, %577 : vector<2x32xf32>
    %cst_199 = arith.constant dense<0.000000e+00> : vector<2xf32>
    %581 = vector.multi_reduction <add>, %580, %cst_199 [1] : vector<2x32xf32> to vector<2xf32>
    %582 = vector.shape_cast %581 : vector<2xf32> to vector<2x1xf32>
    %cst_200 = arith.constant 3.125000e-02 : f32
    %583 = vector.broadcast %cst_200 : f32 to vector<2x1xf32>
    %584 = arith.mulf %579, %583 : vector<2x1xf32>
    %cst_201 = arith.constant 3.125000e-02 : f32
    %585 = vector.broadcast %cst_201 : f32 to vector<2x1xf32>
    %586 = arith.mulf %582, %585 : vector<2x1xf32>
    %587 = arith.mulf %584, %584 : vector<2x1xf32>
    %588 = arith.subf %586, %587 : vector<2x1xf32>
    %cst_202 = arith.constant 0.000000e+00 : f32
    %589 = vector.broadcast %cst_202 : f32 to vector<2x1xf32>
    %590 = arith.maximumf %588, %589 : vector<2x1xf32>
    %591 = vector.broadcast %584 : vector<2x1xf32> to vector<2x32xf32>
    %592 = arith.subf %577, %591 : vector<2x32xf32>
    %cst_203 = arith.constant 9.99999974E-6 : f32
    %593 = vector.broadcast %cst_203 : f32 to vector<2x1xf32>
    %594 = arith.addf %590, %593 : vector<2x1xf32>
    %595 = math.rsqrt %594 : vector<2x1xf32>
    %596 = vector.broadcast %595 : vector<2x1xf32> to vector<2x32xf32>
    %597 = arith.mulf %592, %596 : vector<2x32xf32>
    %598 = arith.mulf %597, %13 : vector<2x32xf32>
    %599 = arith.addf %598, %16 : vector<2x32xf32>
    %cst_204 = arith.constant 0.000000e+00 : f32
    %600 = vector.broadcast %cst_204 : f32 to vector<2x32xf32>
    %601 = arith.cmpf ogt, %599, %600 : vector<2x32xf32>
    %cst_205 = arith.constant 3.000000e-01 : f32
    %602 = vector.broadcast %cst_205 : f32 to vector<2x32xf32>
    %603 = arith.mulf %602, %599 : vector<2x32xf32>
    %604 = arith.select %601, %599, %603 : vector<2x32xi1>, vector<2x32xf32>
    %605 = arith.truncf %604 : vector<2x32xf32> to vector<2x32xbf16>
    %cst_206 = arith.constant dense<0.000000e+00> : vector<2x32xf32>
    %606 = tpu.matmul %605, %4, %cst_206 {dimension_numbers = #tpu.dot_dimension_numbers<[1], [0], [0], [1], [0, 0, 1, 1], [], []>} : vector<2x32xbf16>, vector<32x32xbf16>, vector<2x32xf32> -> vector<2x32xf32>
    %607 = arith.addf %606, %19 : vector<2x32xf32>
    %cst_207 = arith.constant dense<0.000000e+00> : vector<2xf32>
    %608 = vector.multi_reduction <add>, %607, %cst_207 [1] : vector<2x32xf32> to vector<2xf32>
    %609 = vector.shape_cast %608 : vector<2xf32> to vector<2x1xf32>
    %610 = arith.mulf %607, %607 : vector<2x32xf32>
    %cst_208 = arith.constant dense<0.000000e+00> : vector<2xf32>
    %611 = vector.multi_reduction <add>, %610, %cst_208 [1] : vector<2x32xf32> to vector<2xf32>
    %612 = vector.shape_cast %611 : vector<2xf32> to vector<2x1xf32>
    %cst_209 = arith.constant 3.125000e-02 : f32
    %613 = vector.broadcast %cst_209 : f32 to vector<2x1xf32>
    %614 = arith.mulf %609, %613 : vector<2x1xf32>
    %cst_210 = arith.constant 3.125000e-02 : f32
    %615 = vector.broadcast %cst_210 : f32 to vector<2x1xf32>
    %616 = arith.mulf %612, %615 : vector<2x1xf32>
    %617 = arith.mulf %614, %614 : vector<2x1xf32>
    %618 = arith.subf %616, %617 : vector<2x1xf32>
    %cst_211 = arith.constant 0.000000e+00 : f32
    %619 = vector.broadcast %cst_211 : f32 to vector<2x1xf32>
    %620 = arith.maximumf %618, %619 : vector<2x1xf32>
    %621 = vector.broadcast %614 : vector<2x1xf32> to vector<2x32xf32>
    %622 = arith.subf %607, %621 : vector<2x32xf32>
    %cst_212 = arith.constant 9.99999974E-6 : f32
    %623 = vector.broadcast %cst_212 : f32 to vector<2x1xf32>
    %624 = arith.addf %620, %623 : vector<2x1xf32>
    %625 = math.rsqrt %624 : vector<2x1xf32>
    %626 = vector.broadcast %625 : vector<2x1xf32> to vector<2x32xf32>
    %627 = arith.mulf %622, %626 : vector<2x32xf32>
    %628 = arith.mulf %627, %22 : vector<2x32xf32>
    %629 = arith.addf %628, %25 : vector<2x32xf32>
    %c5_213 = arith.constant 5 : index
    %c0_214 = arith.constant 0 : index
    %c0_215 = arith.constant 0 : index
    %630 = vector.load %arg14[%c5_213, %c0_214, %c0_215] : memref<8x2x32xf32, #tpu.memory_space<vmem>>, vector<1x2x32xf32>
    %631 = vector.shape_cast %630 : vector<1x2x32xf32> to vector<2x32xf32>
    %632 = vector.shape_cast %629 : vector<2x32xf32> to vector<1x2x32xf32>
    tpu.vector_store %arg14[%c5_213, %c0_214, %c0_215], %632 {strides = array<i32>} : memref<8x2x32xf32, #tpu.memory_space<vmem>>, vector<1x2x32xf32>,
    %cst_216 = arith.constant dense<0xFF800000> : vector<2xf32>
    %633 = vector.multi_reduction <maximumf>, %629, %cst_216 [1] : vector<2x32xf32> to vector<2xf32>
    %634 = vector.shape_cast %633 : vector<2xf32> to vector<2x1xf32>
    %635 = vector.broadcast %634 : vector<2x1xf32> to vector<2x32xf32>
    %636 = arith.cmpf oge, %629, %635 : vector<2x32xf32>
    %c32_i32_217 = arith.constant 32 : i32
    %637 = vector.shape_cast %26 : vector<1x32xi32> to vector<1x32xi32>
    %638 = vector.broadcast %637 : vector<1x32xi32> to vector<2x32xi32>
    %639 = vector.broadcast %c32_i32_217 : i32 to vector<2x32xi32>
    %640 = arith.select %636, %638, %639 : vector<2x32xi1>, vector<2x32xi32>
    %cst_218 = arith.constant dense<2147483647> : vector<2xi32>
    %641 = vector.multi_reduction <minsi>, %640, %cst_218 [1] : vector<2x32xi32> to vector<2xi32>
    %642 = vector.shape_cast %641 : vector<2xi32> to vector<2x1xi32>
    %643 = vector.broadcast %26 : vector<1x32xi32> to vector<2x32xi32>
    %644 = vector.broadcast %642 : vector<2x1xi32> to vector<2x32xi32>
    %645 = arith.cmpi eq, %643, %644 : vector<2x32xi32>
    %646 = arith.extui %645 : vector<2x32xi1> to vector<2x32xi32>
    %647 = arith.sitofp %646 : vector<2x32xi32> to vector<2x32xf32>
    %648 = arith.truncf %647 : vector<2x32xf32> to vector<2x32xbf16>
    %cst_219 = arith.constant dense<0.000000e+00> : vector<2x128xf32>
    %649 = tpu.matmul %648, %0, %cst_219 {dimension_numbers = #tpu.dot_dimension_numbers<[1], [0], [0], [1], [0, 0, 1, 1], [], []>} : vector<2x32xbf16>, vector<32x128xbf16>, vector<2x128xf32> -> vector<2x128xf32>
    %cst_220 = arith.constant dense<0.000000e+00> : vector<2x16xf32>
    %650 = tpu.matmul %647, %2, %cst_220 {dimension_numbers = #tpu.dot_dimension_numbers<[1], [0], [0], [1], [0, 0, 1, 1], [], []>} : vector<2x32xf32>, vector<32x16xf32>, vector<2x16xf32> -> vector<2x16xf32>
    %c5_221 = arith.constant 5 : index
    %c0_222 = arith.constant 0 : index
    %c0_223 = arith.constant 0 : index
    %651 = vector.load %arg16[%c5_221, %c0_222, %c0_223] : memref<8x2x16xf32, #tpu.memory_space<vmem>>, vector<1x2x16xf32>
    %652 = vector.shape_cast %651 : vector<1x2x16xf32> to vector<2x16xf32>
    %653 = vector.shape_cast %650 : vector<2x16xf32> to vector<1x2x16xf32>
    tpu.vector_store %arg16[%c5_221, %c0_222, %c0_223], %653 {strides = array<i32>} : memref<8x2x16xf32, #tpu.memory_space<vmem>>, vector<1x2x16xf32>,
    %654 = arith.truncf %571 : vector<2x32xf32> to vector<2x32xbf16>
    %cst_224 = arith.constant dense<0.000000e+00> : vector<2x128xf32>
    %655 = tpu.matmul %654, %1, %cst_224 {dimension_numbers = #tpu.dot_dimension_numbers<[1], [0], [0], [1], [0, 0, 1, 1], [], []>} : vector<2x32xbf16>, vector<32x128xbf16>, vector<2x128xf32> -> vector<2x128xf32>
    %656 = arith.addf %649, %655 : vector<2x128xf32>
    %657 = arith.addf %656, %7 : vector<2x128xf32>
    %658 = arith.negf %657 : vector<2x128xf32>
    %659 = math.exp %658 : vector<2x128xf32>
    %cst_225 = arith.constant 1.000000e+00 : f32
    %660 = vector.broadcast %cst_225 : f32 to vector<2x128xf32>
    %661 = arith.addf %660, %659 : vector<2x128xf32>
    %662 = arith.divf %660, %661 : vector<2x128xf32>
    %663 = vector.extract_strided_slice %662 {offsets = [0, 0], sizes = [2, 32], strides = [1, 1]} : vector<2x128xf32> to vector<2x32xf32>
    %664 = vector.extract_strided_slice %662 {offsets = [0, 32], sizes = [2, 32], strides = [1, 1]} : vector<2x128xf32> to vector<2x32xf32>
    %665 = vector.extract_strided_slice %662 {offsets = [0, 64], sizes = [2, 32], strides = [1, 1]} : vector<2x128xf32> to vector<2x32xf32>
    %cst_226 = arith.constant 2.000000e+00 : f32
    %666 = vector.broadcast %cst_226 : f32 to vector<2x32xf32>
    %667 = arith.mulf %666, %665 : vector<2x32xf32>
    %cst_227 = arith.constant 1.000000e+00 : f32
    %668 = vector.broadcast %cst_227 : f32 to vector<2x32xf32>
    %669 = arith.subf %667, %668 : vector<2x32xf32>
    %670 = vector.extract_strided_slice %662 {offsets = [0, 96], sizes = [2, 32], strides = [1, 1]} : vector<2x128xf32> to vector<2x32xf32>
    %671 = arith.mulf %664, %569 : vector<2x32xf32>
    %672 = arith.mulf %663, %669 : vector<2x32xf32>
    %673 = arith.addf %671, %672 : vector<2x32xf32>
    %674 = math.tanh %673 : vector<2x32xf32>
    %675 = arith.mulf %670, %674 : vector<2x32xf32>
    %c6 = arith.constant 6 : index
    %c0_228 = arith.constant 0 : index
    %c0_229 = arith.constant 0 : index
    %676 = vector.load %arg15[%c6, %c0_228, %c0_229] : memref<8x2x32xf32, #tpu.memory_space<vmem>>, vector<1x2x32xf32>
    %677 = vector.shape_cast %676 : vector<1x2x32xf32> to vector<2x32xf32>
    %678 = vector.shape_cast %675 : vector<2x32xf32> to vector<1x2x32xf32>
    tpu.vector_store %arg15[%c6, %c0_228, %c0_229], %678 {strides = array<i32>} : memref<8x2x32xf32, #tpu.memory_space<vmem>>, vector<1x2x32xf32>,
    %679 = arith.truncf %675 : vector<2x32xf32> to vector<2x32xbf16>
    %cst_230 = arith.constant dense<0.000000e+00> : vector<2x32xf32>
    %680 = tpu.matmul %679, %3, %cst_230 {dimension_numbers = #tpu.dot_dimension_numbers<[1], [0], [0], [1], [0, 0, 1, 1], [], []>} : vector<2x32xbf16>, vector<32x32xbf16>, vector<2x32xf32> -> vector<2x32xf32>
    %681 = arith.addf %680, %10 : vector<2x32xf32>
    %cst_231 = arith.constant dense<0.000000e+00> : vector<2xf32>
    %682 = vector.multi_reduction <add>, %681, %cst_231 [1] : vector<2x32xf32> to vector<2xf32>
    %683 = vector.shape_cast %682 : vector<2xf32> to vector<2x1xf32>
    %684 = arith.mulf %681, %681 : vector<2x32xf32>
    %cst_232 = arith.constant dense<0.000000e+00> : vector<2xf32>
    %685 = vector.multi_reduction <add>, %684, %cst_232 [1] : vector<2x32xf32> to vector<2xf32>
    %686 = vector.shape_cast %685 : vector<2xf32> to vector<2x1xf32>
    %cst_233 = arith.constant 3.125000e-02 : f32
    %687 = vector.broadcast %cst_233 : f32 to vector<2x1xf32>
    %688 = arith.mulf %683, %687 : vector<2x1xf32>
    %cst_234 = arith.constant 3.125000e-02 : f32
    %689 = vector.broadcast %cst_234 : f32 to vector<2x1xf32>
    %690 = arith.mulf %686, %689 : vector<2x1xf32>
    %691 = arith.mulf %688, %688 : vector<2x1xf32>
    %692 = arith.subf %690, %691 : vector<2x1xf32>
    %cst_235 = arith.constant 0.000000e+00 : f32
    %693 = vector.broadcast %cst_235 : f32 to vector<2x1xf32>
    %694 = arith.maximumf %692, %693 : vector<2x1xf32>
    %695 = vector.broadcast %688 : vector<2x1xf32> to vector<2x32xf32>
    %696 = arith.subf %681, %695 : vector<2x32xf32>
    %cst_236 = arith.constant 9.99999974E-6 : f32
    %697 = vector.broadcast %cst_236 : f32 to vector<2x1xf32>
    %698 = arith.addf %694, %697 : vector<2x1xf32>
    %699 = math.rsqrt %698 : vector<2x1xf32>
    %700 = vector.broadcast %699 : vector<2x1xf32> to vector<2x32xf32>
    %701 = arith.mulf %696, %700 : vector<2x32xf32>
    %702 = arith.mulf %701, %13 : vector<2x32xf32>
    %703 = arith.addf %702, %16 : vector<2x32xf32>
    %cst_237 = arith.constant 0.000000e+00 : f32
    %704 = vector.broadcast %cst_237 : f32 to vector<2x32xf32>
    %705 = arith.cmpf ogt, %703, %704 : vector<2x32xf32>
    %cst_238 = arith.constant 3.000000e-01 : f32
    %706 = vector.broadcast %cst_238 : f32 to vector<2x32xf32>
    %707 = arith.mulf %706, %703 : vector<2x32xf32>
    %708 = arith.select %705, %703, %707 : vector<2x32xi1>, vector<2x32xf32>
    %709 = arith.truncf %708 : vector<2x32xf32> to vector<2x32xbf16>
    %cst_239 = arith.constant dense<0.000000e+00> : vector<2x32xf32>
    %710 = tpu.matmul %709, %4, %cst_239 {dimension_numbers = #tpu.dot_dimension_numbers<[1], [0], [0], [1], [0, 0, 1, 1], [], []>} : vector<2x32xbf16>, vector<32x32xbf16>, vector<2x32xf32> -> vector<2x32xf32>
    %711 = arith.addf %710, %19 : vector<2x32xf32>
    %cst_240 = arith.constant dense<0.000000e+00> : vector<2xf32>
    %712 = vector.multi_reduction <add>, %711, %cst_240 [1] : vector<2x32xf32> to vector<2xf32>
    %713 = vector.shape_cast %712 : vector<2xf32> to vector<2x1xf32>
    %714 = arith.mulf %711, %711 : vector<2x32xf32>
    %cst_241 = arith.constant dense<0.000000e+00> : vector<2xf32>
    %715 = vector.multi_reduction <add>, %714, %cst_241 [1] : vector<2x32xf32> to vector<2xf32>
    %716 = vector.shape_cast %715 : vector<2xf32> to vector<2x1xf32>
    %cst_242 = arith.constant 3.125000e-02 : f32
    %717 = vector.broadcast %cst_242 : f32 to vector<2x1xf32>
    %718 = arith.mulf %713, %717 : vector<2x1xf32>
    %cst_243 = arith.constant 3.125000e-02 : f32
    %719 = vector.broadcast %cst_243 : f32 to vector<2x1xf32>
    %720 = arith.mulf %716, %719 : vector<2x1xf32>
    %721 = arith.mulf %718, %718 : vector<2x1xf32>
    %722 = arith.subf %720, %721 : vector<2x1xf32>
    %cst_244 = arith.constant 0.000000e+00 : f32
    %723 = vector.broadcast %cst_244 : f32 to vector<2x1xf32>
    %724 = arith.maximumf %722, %723 : vector<2x1xf32>
    %725 = vector.broadcast %718 : vector<2x1xf32> to vector<2x32xf32>
    %726 = arith.subf %711, %725 : vector<2x32xf32>
    %cst_245 = arith.constant 9.99999974E-6 : f32
    %727 = vector.broadcast %cst_245 : f32 to vector<2x1xf32>
    %728 = arith.addf %724, %727 : vector<2x1xf32>
    %729 = math.rsqrt %728 : vector<2x1xf32>
    %730 = vector.broadcast %729 : vector<2x1xf32> to vector<2x32xf32>
    %731 = arith.mulf %726, %730 : vector<2x32xf32>
    %732 = arith.mulf %731, %22 : vector<2x32xf32>
    %733 = arith.addf %732, %25 : vector<2x32xf32>
    %c6_246 = arith.constant 6 : index
    %c0_247 = arith.constant 0 : index
    %c0_248 = arith.constant 0 : index
    %734 = vector.load %arg14[%c6_246, %c0_247, %c0_248] : memref<8x2x32xf32, #tpu.memory_space<vmem>>, vector<1x2x32xf32>
    %735 = vector.shape_cast %734 : vector<1x2x32xf32> to vector<2x32xf32>
    %736 = vector.shape_cast %733 : vector<2x32xf32> to vector<1x2x32xf32>
    tpu.vector_store %arg14[%c6_246, %c0_247, %c0_248], %736 {strides = array<i32>} : memref<8x2x32xf32, #tpu.memory_space<vmem>>, vector<1x2x32xf32>,
    %cst_249 = arith.constant dense<0xFF800000> : vector<2xf32>
    %737 = vector.multi_reduction <maximumf>, %733, %cst_249 [1] : vector<2x32xf32> to vector<2xf32>
    %738 = vector.shape_cast %737 : vector<2xf32> to vector<2x1xf32>
    %739 = vector.broadcast %738 : vector<2x1xf32> to vector<2x32xf32>
    %740 = arith.cmpf oge, %733, %739 : vector<2x32xf32>
    %c32_i32_250 = arith.constant 32 : i32
    %741 = vector.shape_cast %26 : vector<1x32xi32> to vector<1x32xi32>
    %742 = vector.broadcast %741 : vector<1x32xi32> to vector<2x32xi32>
    %743 = vector.broadcast %c32_i32_250 : i32 to vector<2x32xi32>
    %744 = arith.select %740, %742, %743 : vector<2x32xi1>, vector<2x32xi32>
    %cst_251 = arith.constant dense<2147483647> : vector<2xi32>
    %745 = vector.multi_reduction <minsi>, %744, %cst_251 [1] : vector<2x32xi32> to vector<2xi32>
    %746 = vector.shape_cast %745 : vector<2xi32> to vector<2x1xi32>
    %747 = vector.broadcast %26 : vector<1x32xi32> to vector<2x32xi32>
    %748 = vector.broadcast %746 : vector<2x1xi32> to vector<2x32xi32>
    %749 = arith.cmpi eq, %747, %748 : vector<2x32xi32>
    %750 = arith.extui %749 : vector<2x32xi1> to vector<2x32xi32>
    %751 = arith.sitofp %750 : vector<2x32xi32> to vector<2x32xf32>
    %752 = arith.truncf %751 : vector<2x32xf32> to vector<2x32xbf16>
    %cst_252 = arith.constant dense<0.000000e+00> : vector<2x128xf32>
    %753 = tpu.matmul %752, %0, %cst_252 {dimension_numbers = #tpu.dot_dimension_numbers<[1], [0], [0], [1], [0, 0, 1, 1], [], []>} : vector<2x32xbf16>, vector<32x128xbf16>, vector<2x128xf32> -> vector<2x128xf32>
    %cst_253 = arith.constant dense<0.000000e+00> : vector<2x16xf32>
    %754 = tpu.matmul %751, %2, %cst_253 {dimension_numbers = #tpu.dot_dimension_numbers<[1], [0], [0], [1], [0, 0, 1, 1], [], []>} : vector<2x32xf32>, vector<32x16xf32>, vector<2x16xf32> -> vector<2x16xf32>
    %c6_254 = arith.constant 6 : index
    %c0_255 = arith.constant 0 : index
    %c0_256 = arith.constant 0 : index
    %755 = vector.load %arg16[%c6_254, %c0_255, %c0_256] : memref<8x2x16xf32, #tpu.memory_space<vmem>>, vector<1x2x16xf32>
    %756 = vector.shape_cast %755 : vector<1x2x16xf32> to vector<2x16xf32>
    %757 = vector.shape_cast %754 : vector<2x16xf32> to vector<1x2x16xf32>
    tpu.vector_store %arg16[%c6_254, %c0_255, %c0_256], %757 {strides = array<i32>} : memref<8x2x16xf32, #tpu.memory_space<vmem>>, vector<1x2x16xf32>,
    %758 = arith.truncf %675 : vector<2x32xf32> to vector<2x32xbf16>
    %cst_257 = arith.constant dense<0.000000e+00> : vector<2x128xf32>
    %759 = tpu.matmul %758, %1, %cst_257 {dimension_numbers = #tpu.dot_dimension_numbers<[1], [0], [0], [1], [0, 0, 1, 1], [], []>} : vector<2x32xbf16>, vector<32x128xbf16>, vector<2x128xf32> -> vector<2x128xf32>
    %760 = arith.addf %753, %759 : vector<2x128xf32>
    %761 = arith.addf %760, %7 : vector<2x128xf32>
    %762 = arith.negf %761 : vector<2x128xf32>
    %763 = math.exp %762 : vector<2x128xf32>
    %cst_258 = arith.constant 1.000000e+00 : f32
    %764 = vector.broadcast %cst_258 : f32 to vector<2x128xf32>
    %765 = arith.addf %764, %763 : vector<2x128xf32>
    %766 = arith.divf %764, %765 : vector<2x128xf32>
    %767 = vector.extract_strided_slice %766 {offsets = [0, 0], sizes = [2, 32], strides = [1, 1]} : vector<2x128xf32> to vector<2x32xf32>
    %768 = vector.extract_strided_slice %766 {offsets = [0, 32], sizes = [2, 32], strides = [1, 1]} : vector<2x128xf32> to vector<2x32xf32>
    %769 = vector.extract_strided_slice %766 {offsets = [0, 64], sizes = [2, 32], strides = [1, 1]} : vector<2x128xf32> to vector<2x32xf32>
    %cst_259 = arith.constant 2.000000e+00 : f32
    %770 = vector.broadcast %cst_259 : f32 to vector<2x32xf32>
    %771 = arith.mulf %770, %769 : vector<2x32xf32>
    %cst_260 = arith.constant 1.000000e+00 : f32
    %772 = vector.broadcast %cst_260 : f32 to vector<2x32xf32>
    %773 = arith.subf %771, %772 : vector<2x32xf32>
    %774 = vector.extract_strided_slice %766 {offsets = [0, 96], sizes = [2, 32], strides = [1, 1]} : vector<2x128xf32> to vector<2x32xf32>
    %775 = arith.mulf %768, %673 : vector<2x32xf32>
    %776 = arith.mulf %767, %773 : vector<2x32xf32>
    %777 = arith.addf %775, %776 : vector<2x32xf32>
    %778 = math.tanh %777 : vector<2x32xf32>
    %779 = arith.mulf %774, %778 : vector<2x32xf32>
    %c7 = arith.constant 7 : index
    %c0_261 = arith.constant 0 : index
    %c0_262 = arith.constant 0 : index
    %780 = vector.load %arg15[%c7, %c0_261, %c0_262] : memref<8x2x32xf32, #tpu.memory_space<vmem>>, vector<1x2x32xf32>
    %781 = vector.shape_cast %780 : vector<1x2x32xf32> to vector<2x32xf32>
    %782 = vector.shape_cast %779 : vector<2x32xf32> to vector<1x2x32xf32>
    tpu.vector_store %arg15[%c7, %c0_261, %c0_262], %782 {strides = array<i32>} : memref<8x2x32xf32, #tpu.memory_space<vmem>>, vector<1x2x32xf32>,
    %783 = arith.truncf %779 : vector<2x32xf32> to vector<2x32xbf16>
    %cst_263 = arith.constant dense<0.000000e+00> : vector<2x32xf32>
    %784 = tpu.matmul %783, %3, %cst_263 {dimension_numbers = #tpu.dot_dimension_numbers<[1], [0], [0], [1], [0, 0, 1, 1], [], []>} : vector<2x32xbf16>, vector<32x32xbf16>, vector<2x32xf32> -> vector<2x32xf32>
    %785 = arith.addf %784, %10 : vector<2x32xf32>
    %cst_264 = arith.constant dense<0.000000e+00> : vector<2xf32>
    %786 = vector.multi_reduction <add>, %785, %cst_264 [1] : vector<2x32xf32> to vector<2xf32>
    %787 = vector.shape_cast %786 : vector<2xf32> to vector<2x1xf32>
    %788 = arith.mulf %785, %785 : vector<2x32xf32>
    %cst_265 = arith.constant dense<0.000000e+00> : vector<2xf32>
    %789 = vector.multi_reduction <add>, %788, %cst_265 [1] : vector<2x32xf32> to vector<2xf32>
    %790 = vector.shape_cast %789 : vector<2xf32> to vector<2x1xf32>
    %cst_266 = arith.constant 3.125000e-02 : f32
    %791 = vector.broadcast %cst_266 : f32 to vector<2x1xf32>
    %792 = arith.mulf %787, %791 : vector<2x1xf32>
    %cst_267 = arith.constant 3.125000e-02 : f32
    %793 = vector.broadcast %cst_267 : f32 to vector<2x1xf32>
    %794 = arith.mulf %790, %793 : vector<2x1xf32>
    %795 = arith.mulf %792, %792 : vector<2x1xf32>
    %796 = arith.subf %794, %795 : vector<2x1xf32>
    %cst_268 = arith.constant 0.000000e+00 : f32
    %797 = vector.broadcast %cst_268 : f32 to vector<2x1xf32>
    %798 = arith.maximumf %796, %797 : vector<2x1xf32>
    %799 = vector.broadcast %792 : vector<2x1xf32> to vector<2x32xf32>
    %800 = arith.subf %785, %799 : vector<2x32xf32>
    %cst_269 = arith.constant 9.99999974E-6 : f32
    %801 = vector.broadcast %cst_269 : f32 to vector<2x1xf32>
    %802 = arith.addf %798, %801 : vector<2x1xf32>
    %803 = math.rsqrt %802 : vector<2x1xf32>
    %804 = vector.broadcast %803 : vector<2x1xf32> to vector<2x32xf32>
    %805 = arith.mulf %800, %804 : vector<2x32xf32>
    %806 = arith.mulf %805, %13 : vector<2x32xf32>
    %807 = arith.addf %806, %16 : vector<2x32xf32>
    %cst_270 = arith.constant 0.000000e+00 : f32
    %808 = vector.broadcast %cst_270 : f32 to vector<2x32xf32>
    %809 = arith.cmpf ogt, %807, %808 : vector<2x32xf32>
    %cst_271 = arith.constant 3.000000e-01 : f32
    %810 = vector.broadcast %cst_271 : f32 to vector<2x32xf32>
    %811 = arith.mulf %810, %807 : vector<2x32xf32>
    %812 = arith.select %809, %807, %811 : vector<2x32xi1>, vector<2x32xf32>
    %813 = arith.truncf %812 : vector<2x32xf32> to vector<2x32xbf16>
    %cst_272 = arith.constant dense<0.000000e+00> : vector<2x32xf32>
    %814 = tpu.matmul %813, %4, %cst_272 {dimension_numbers = #tpu.dot_dimension_numbers<[1], [0], [0], [1], [0, 0, 1, 1], [], []>} : vector<2x32xbf16>, vector<32x32xbf16>, vector<2x32xf32> -> vector<2x32xf32>
    %815 = arith.addf %814, %19 : vector<2x32xf32>
    %cst_273 = arith.constant dense<0.000000e+00> : vector<2xf32>
    %816 = vector.multi_reduction <add>, %815, %cst_273 [1] : vector<2x32xf32> to vector<2xf32>
    %817 = vector.shape_cast %816 : vector<2xf32> to vector<2x1xf32>
    %818 = arith.mulf %815, %815 : vector<2x32xf32>
    %cst_274 = arith.constant dense<0.000000e+00> : vector<2xf32>
    %819 = vector.multi_reduction <add>, %818, %cst_274 [1] : vector<2x32xf32> to vector<2xf32>
    %820 = vector.shape_cast %819 : vector<2xf32> to vector<2x1xf32>
    %cst_275 = arith.constant 3.125000e-02 : f32
    %821 = vector.broadcast %cst_275 : f32 to vector<2x1xf32>
    %822 = arith.mulf %817, %821 : vector<2x1xf32>
    %cst_276 = arith.constant 3.125000e-02 : f32
    %823 = vector.broadcast %cst_276 : f32 to vector<2x1xf32>
    %824 = arith.mulf %820, %823 : vector<2x1xf32>
    %825 = arith.mulf %822, %822 : vector<2x1xf32>
    %826 = arith.subf %824, %825 : vector<2x1xf32>
    %cst_277 = arith.constant 0.000000e+00 : f32
    %827 = vector.broadcast %cst_277 : f32 to vector<2x1xf32>
    %828 = arith.maximumf %826, %827 : vector<2x1xf32>
    %829 = vector.broadcast %822 : vector<2x1xf32> to vector<2x32xf32>
    %830 = arith.subf %815, %829 : vector<2x32xf32>
    %cst_278 = arith.constant 9.99999974E-6 : f32
    %831 = vector.broadcast %cst_278 : f32 to vector<2x1xf32>
    %832 = arith.addf %828, %831 : vector<2x1xf32>
    %833 = math.rsqrt %832 : vector<2x1xf32>
    %834 = vector.broadcast %833 : vector<2x1xf32> to vector<2x32xf32>
    %835 = arith.mulf %830, %834 : vector<2x32xf32>
    %836 = arith.mulf %835, %22 : vector<2x32xf32>
    %837 = arith.addf %836, %25 : vector<2x32xf32>
    %c7_279 = arith.constant 7 : index
    %c0_280 = arith.constant 0 : index
    %c0_281 = arith.constant 0 : index
    %838 = vector.load %arg14[%c7_279, %c0_280, %c0_281] : memref<8x2x32xf32, #tpu.memory_space<vmem>>, vector<1x2x32xf32>
    %839 = vector.shape_cast %838 : vector<1x2x32xf32> to vector<2x32xf32>
    %840 = vector.shape_cast %837 : vector<2x32xf32> to vector<1x2x32xf32>
    tpu.vector_store %arg14[%c7_279, %c0_280, %c0_281], %840 {strides = array<i32>} : memref<8x2x32xf32, #tpu.memory_space<vmem>>, vector<1x2x32xf32>,
    %cst_282 = arith.constant dense<0xFF800000> : vector<2xf32>
    %841 = vector.multi_reduction <maximumf>, %837, %cst_282 [1] : vector<2x32xf32> to vector<2xf32>
    %842 = vector.shape_cast %841 : vector<2xf32> to vector<2x1xf32>
    %843 = vector.broadcast %842 : vector<2x1xf32> to vector<2x32xf32>
    %844 = arith.cmpf oge, %837, %843 : vector<2x32xf32>
    %c32_i32_283 = arith.constant 32 : i32
    %845 = vector.shape_cast %26 : vector<1x32xi32> to vector<1x32xi32>
    %846 = vector.broadcast %845 : vector<1x32xi32> to vector<2x32xi32>
    %847 = vector.broadcast %c32_i32_283 : i32 to vector<2x32xi32>
    %848 = arith.select %844, %846, %847 : vector<2x32xi1>, vector<2x32xi32>
    %cst_284 = arith.constant dense<2147483647> : vector<2xi32>
    %849 = vector.multi_reduction <minsi>, %848, %cst_284 [1] : vector<2x32xi32> to vector<2xi32>
    %850 = vector.shape_cast %849 : vector<2xi32> to vector<2x1xi32>
    %851 = vector.broadcast %26 : vector<1x32xi32> to vector<2x32xi32>
    %852 = vector.broadcast %850 : vector<2x1xi32> to vector<2x32xi32>
    %853 = arith.cmpi eq, %851, %852 : vector<2x32xi32>
    %854 = arith.extui %853 : vector<2x32xi1> to vector<2x32xi32>
    %855 = arith.sitofp %854 : vector<2x32xi32> to vector<2x32xf32>
    %cst_285 = arith.constant dense<0.000000e+00> : vector<2x16xf32>
    %856 = tpu.matmul %855, %2, %cst_285 {dimension_numbers = #tpu.dot_dimension_numbers<[1], [0], [0], [1], [0, 0, 1, 1], [], []>} : vector<2x32xf32>, vector<32x16xf32>, vector<2x16xf32> -> vector<2x16xf32>
    %c7_286 = arith.constant 7 : index
    %c0_287 = arith.constant 0 : index
    %c0_288 = arith.constant 0 : index
    %857 = vector.load %arg16[%c7_286, %c0_287, %c0_288] : memref<8x2x16xf32, #tpu.memory_space<vmem>>, vector<1x2x16xf32>
    %858 = vector.shape_cast %857 : vector<1x2x16xf32> to vector<2x16xf32>
    %859 = vector.shape_cast %856 : vector<2x16xf32> to vector<1x2x16xf32>
    tpu.vector_store %arg16[%c7_286, %c0_287, %c0_288], %859 {strides = array<i32>} : memref<8x2x16xf32, #tpu.memory_space<vmem>>, vector<1x2x16xf32>,
    %860 = tpu.concatenate %122, %226, %330, %434, %538, %642, %746, %850 in 1 : vector<2x1xi32>, vector<2x1xi32>, vector<2x1xi32>, vector<2x1xi32>, vector<2x1xi32>, vector<2x1xi32>, vector<2x1xi32>, vector<2x1xi32> -> vector<2x8xi32>
    %c0_289 = arith.constant 0 : index
    %c0_290 = arith.constant 0 : index
    %861 = vector.load %arg17[%c0_289, %c0_290] : memref<2x8xi32, #tpu.memory_space<vmem>>, vector<2x8xi32>
    tpu.vector_store %arg17[%c0_289, %c0_290], %860 {strides = array<i32>} : memref<2x8xi32, #tpu.memory_space<vmem>>, vector<2x8xi32>,
    return
  }
  func.func @transform_0(%arg0: i32) -> (i32, i32) {
    %c0_i32 = arith.constant 0 : i32
    %c0_i32_0 = arith.constant 0 : i32
    %c0_i32_1 = arith.constant 0 : i32
    return %c0_i32, %c0_i32_0 : i32, i32
  }
  func.func @transform_1(%arg0: i32) -> (i32, i32) {
    %c0_i32 = arith.constant 0 : i32
    %c0_i32_0 = arith.constant 0 : i32
    %c0_i32_1 = arith.constant 0 : i32
    return %c0_i32, %c0_i32_0 : i32, i32
  }
  func.func @transform_2(%arg0: i32) -> (i32, i32) {
    %c0_i32 = arith.constant 0 : i32
    %c0_i32_0 = arith.constant 0 : i32
    %c0_i32_1 = arith.constant 0 : i32
    return %c0_i32, %c0_i32_0 : i32, i32
  }
  func.func @transform_3(%arg0: i32) -> (i32, i32) {
    %c0_i32 = arith.constant 0 : i32
    %c0_i32_0 = arith.constant 0 : i32
    %c0_i32_1 = arith.constant 0 : i32
    return %c0_i32, %c0_i32_0 : i32, i32
  }
  func.func @transform_4(%arg0: i32) -> (i32, i32) {
    %c0_i32 = arith.constant 0 : i32
    %c0_i32_0 = arith.constant 0 : i32
    %c0_i32_1 = arith.constant 0 : i32
    return %c0_i32, %c0_i32_0 : i32, i32
  }
  func.func @transform_5(%arg0: i32) -> (i32, i32) {
    %c0_i32 = arith.constant 0 : i32
    %c0_i32_0 = arith.constant 0 : i32
    %c0_i32_1 = arith.constant 0 : i32
    return %c0_i32, %c0_i32_0 : i32, i32
  }
  func.func @transform_6(%arg0: i32) -> (i32, i32) {
    %c0_i32 = arith.constant 0 : i32
    %c0_i32_0 = arith.constant 0 : i32
    %c0_i32_1 = arith.constant 0 : i32
    return %c0_i32, %c0_i32_0 : i32, i32
  }
  func.func @transform_7(%arg0: i32) -> (i32, i32) {
    %c0_i32 = arith.constant 0 : i32
    %c0_i32_0 = arith.constant 0 : i32
    %c0_i32_1 = arith.constant 0 : i32
    return %c0_i32, %c0_i32_0 : i32, i32
  }
  func.func @transform_8(%arg0: i32) -> (i32, i32) {
    %c0_i32 = arith.constant 0 : i32
    %c0_i32_0 = arith.constant 0 : i32
    %c0_i32_1 = arith.constant 0 : i32
    return %c0_i32, %c0_i32_0 : i32, i32
  }
  func.func @transform_9(%arg0: i32) -> (i32, i32) {
    %c0_i32 = arith.constant 0 : i32
    %c0_i32_0 = arith.constant 0 : i32
    %c0_i32_1 = arith.constant 0 : i32
    return %c0_i32, %c0_i32_0 : i32, i32
  }
  func.func @transform_10(%arg0: i32) -> (i32, i32) {
    %c0_i32 = arith.constant 0 : i32
    %c0_i32_0 = arith.constant 0 : i32
    %c0_i32_1 = arith.constant 0 : i32
    return %c0_i32, %c0_i32_0 : i32, i32
  }
  func.func @transform_11(%arg0: i32) -> (i32, i32) {
    %c0_i32 = arith.constant 0 : i32
    %c0_i32_0 = arith.constant 0 : i32
    %c0_i32_1 = arith.constant 0 : i32
    return %c0_i32, %c0_i32_0 : i32, i32
  }
  func.func @transform_12(%arg0: i32) -> (i32, i32) {
    %c0_i32 = arith.constant 0 : i32
    %c0_i32_0 = arith.constant 0 : i32
    %c0_i32_1 = arith.constant 0 : i32
    return %c0_i32, %c0_i32_0 : i32, i32
  }
  func.func @transform_13(%arg0: i32) -> (i32, i32, i32) {
    %c0_i32 = arith.constant 0 : i32
    %c0_i32_0 = arith.constant 0 : i32
    %c0_i32_1 = arith.constant 0 : i32
    %c0_i32_2 = arith.constant 0 : i32
    return %c0_i32, %c0_i32_0, %c0_i32_1 : i32, i32, i32
  }
  func.func @transform_14(%arg0: i32) -> (i32, i32, i32) {
    %c0_i32 = arith.constant 0 : i32
    %c0_i32_0 = arith.constant 0 : i32
    %c0_i32_1 = arith.constant 0 : i32
    %c0_i32_2 = arith.constant 0 : i32
    return %c0_i32, %c0_i32_0, %c0_i32_1 : i32, i32, i32
  }
  func.func @transform_15(%arg0: i32) -> (i32, i32, i32) {
    %c0_i32 = arith.constant 0 : i32
    %c0_i32_0 = arith.constant 0 : i32
    %c0_i32_1 = arith.constant 0 : i32
    %c0_i32_2 = arith.constant 0 : i32
    return %c0_i32, %c0_i32_0, %c0_i32_1 : i32, i32, i32
  }
  func.func @transform_16(%arg0: i32) -> (i32, i32) {
    %c0_i32 = arith.constant 0 : i32
    %c0_i32_0 = arith.constant 0 : i32
    %c0_i32_1 = arith.constant 0 : i32
    return %c0_i32, %c0_i32_0 : i32, i32
  }
}

</mosaic_0001>

<llo_original>
// kernel: decoder_forward.1
$region0: #{decoder_forward.1}
  #allocation0 [shape = 'u32[]', space=smem, size = 0x4, offset = 0x4, fixed_abs, tag = 'smem constant byte address 0x4 - core index']
  #allocation1 [shape = 'u32[144,128]{1,0:T(1,128)}', space=vmem, size = 0x12000, scoped, tag = 'internal scratch']
  %s0 = inlined_call_operand.vmem [shape: f32[2,128], index: 0, kind: input, shape index: {}]
  %s1 = inlined_call_operand.vmem [shape: bf16[32,128], index: 1, kind: input, shape index: {}]
  %s2 = inlined_call_operand.vmem [shape: bf16[32,128], index: 2, kind: input, shape index: {}]
  %s3 = inlined_call_operand.vmem [shape: f32[1,128], index: 3, kind: input, shape index: {}]
  %s4 = inlined_call_operand.vmem [shape: f32[32,16], index: 4, kind: input, shape index: {}]
  %s5 = inlined_call_operand.vmem [shape: bf16[32,32], index: 5, kind: input, shape index: {}]
  %s6 = inlined_call_operand.vmem [shape: f32[1,32], index: 6, kind: input, shape index: {}]
  %s7 = inlined_call_operand.vmem [shape: f32[1,32], index: 7, kind: input, shape index: {}]
  %s8 = inlined_call_operand.vmem [shape: f32[1,32], index: 8, kind: input, shape index: {}]
  %s9 = inlined_call_operand.vmem [shape: bf16[32,32], index: 9, kind: input, shape index: {}]
  %s10 = inlined_call_operand.vmem [shape: f32[1,32], index: 10, kind: input, shape index: {}]
  %s11 = inlined_call_operand.vmem [shape: f32[1,32], index: 11, kind: input, shape index: {}]
  %s12 = inlined_call_operand.vmem [shape: f32[1,32], index: 12, kind: input, shape index: {}]
  %s13 = inlined_call_operand.vmem [shape: f32[8,2,32], index: 13, kind: output, shape index: {0}]
  %s14 = inlined_call_operand.vmem [shape: f32[8,2,32], index: 14, kind: output, shape index: {1}]
  %s15 = inlined_call_operand.vmem [shape: f32[8,2,16], index: 15, kind: output, shape index: {2}]
  %s16 = inlined_call_operand.vmem [shape: s32[2,8], index: 16, kind: output, shape index: {3}]
  %17 = xla_tuple %s13, %s14, %s15, %s16
  %s18 = sld [smem:[#allocation0]]
  $region86: #{decoder_forward.1} parent=0
    _
  %s20 = ssub.s32 1, %s18
  %s21 = scalar_select 0, %s20, %s18
  // Predicated region
  $region2: #{decoder_forward.1} parent=0 // pred_check
    _
  $region3: #{decoder_forward.1} parent=0 // pred_check_branch
    %23 = sbr.rel (0) target = $region5
  $region4: #{decoder_forward.1} parent=0 // pred_region
    _
  $region5: #{decoder_forward.1} parent=0 // pred_fallthru
    _
  // Predicated region
  $region6: #{decoder_forward.1} parent=0 // pred_check
    _
  $region7: #{decoder_forward.1} parent=0 // pred_check_branch
    %25 = sbr.rel (0) target = $region9
  $region8: #{decoder_forward.1} parent=0 // pred_region
    _
  $region9: #{decoder_forward.1} parent=0 // pred_fallthru
    _
  // Predicated region
  $region10: #{decoder_forward.1} parent=0 // pred_check
    _
  $region11: #{decoder_forward.1} parent=0 // pred_check_branch
    %27 = sbr.rel (0) target = $region13
  $region12: #{decoder_forward.1} parent=0 // pred_region
    _
  $region13: #{decoder_forward.1} parent=0 // pred_fallthru
    _
  // Predicated region
  $region14: #{decoder_forward.1} parent=0 // pred_check
    _
  $region15: #{decoder_forward.1} parent=0 // pred_check_branch
    %29 = sbr.rel (0) target = $region17
  $region16: #{decoder_forward.1} parent=0 // pred_region
    _
  $region17: #{decoder_forward.1} parent=0 // pred_fallthru
    _
  // Predicated region
  $region18: #{decoder_forward.1} parent=0 // pred_check
    _
  $region19: #{decoder_forward.1} parent=0 // pred_check_branch
    %31 = sbr.rel (0) target = $region21
  $region20: #{decoder_forward.1} parent=0 // pred_region
    _
  $region21: #{decoder_forward.1} parent=0 // pred_fallthru
    _
  // Predicated region
  $region22: #{decoder_forward.1} parent=0 // pred_check
    _
  $region23: #{decoder_forward.1} parent=0 // pred_check_branch
    %33 = sbr.rel (0) target = $region25
  $region24: #{decoder_forward.1} parent=0 // pred_region
    _
  $region25: #{decoder_forward.1} parent=0 // pred_fallthru
    _
  // Predicated region
  $region26: #{decoder_forward.1} parent=0 // pred_check
    _
  $region27: #{decoder_forward.1} parent=0 // pred_check_branch
    %35 = sbr.rel (0) target = $region29
  $region28: #{decoder_forward.1} parent=0 // pred_region
    _
  $region29: #{decoder_forward.1} parent=0 // pred_fallthru
    _
  // Predicated region
  $region30: #{decoder_forward.1} parent=0 // pred_check
    _
  $region31: #{decoder_forward.1} parent=0 // pred_check_branch
    %37 = sbr.rel (0) target = $region33
  $region32: #{decoder_forward.1} parent=0 // pred_region
    _
  $region33: #{decoder_forward.1} parent=0 // pred_fallthru
    _
  // Predicated region
  $region34: #{decoder_forward.1} parent=0 // pred_check
    _
  $region35: #{decoder_forward.1} parent=0 // pred_check_branch
    %39 = sbr.rel (0) target = $region37
  $region36: #{decoder_forward.1} parent=0 // pred_region
    _
  $region37: #{decoder_forward.1} parent=0 // pred_fallthru
    _
  // Predicated region
  $region38: #{decoder_forward.1} parent=0 // pred_check
    _
  $region39: #{decoder_forward.1} parent=0 // pred_check_branch
    %41 = sbr.rel (0) target = $region41
  $region40: #{decoder_forward.1} parent=0 // pred_region
    _
  $region41: #{decoder_forward.1} parent=0 // pred_fallthru
    _
  // Predicated region
  $region42: #{decoder_forward.1} parent=0 // pred_check
    _
  $region43: #{decoder_forward.1} parent=0 // pred_check_branch
    %43 = sbr.rel (0) target = $region45
  $region44: #{decoder_forward.1} parent=0 // pred_region
    _
  $region45: #{decoder_forward.1} parent=0 // pred_fallthru
    _
  // Predicated region
  $region46: #{decoder_forward.1} parent=0 // pred_check
    _
  $region47: #{decoder_forward.1} parent=0 // pred_check_branch
    %45 = sbr.rel (0) target = $region49
  $region48: #{decoder_forward.1} parent=0 // pred_region
    _
  $region49: #{decoder_forward.1} parent=0 // pred_fallthru
    _
  // Predicated region
  $region50: #{decoder_forward.1} parent=0 // pred_check
    _
  $region51: #{decoder_forward.1} parent=0 // pred_check_branch
    %47 = sbr.rel (0) target = $region53
  $region52: #{decoder_forward.1} parent=0 // pred_region
    _
  $region53: #{decoder_forward.1} parent=0 // pred_fallthru
    _
  %v49 = vld [vmem:[%s1] sm:$0xf]
  %v50 = vld [vmem:[%s1 + $0x4] sm:$0xf]
  %v51 = vld [vmem:[%s1 + $0x8] sm:$0xf]
  %v52 = vld [vmem:[%s1 + $0xc] sm:$0xf]
  %v53 = vld [vmem:[%s2] sm:$0xf]
  %v54 = vld [vmem:[%s2 + $0x4] sm:$0xf]
  %v55 = vld [vmem:[%s2 + $0x8] sm:$0xf]
  %v56 = vld [vmem:[%s2 + $0xc] sm:$0xf]
  %v57 = vld [vmem:[%s4] sm:$0xff]
  %v58 = vld [vmem:[%s4 + $0x8] sm:$0xff]
  %v59 = vld [vmem:[%s4 + $0x10] sm:$0xff]
  %v60 = vld [vmem:[%s4 + $0x18] sm:$0xff]
  %v61 = vld [vmem:[%s5] sm:$0xf]
  %v62 = vld [vmem:[%s5 + $0x4] sm:$0xf]
  %v63 = vld [vmem:[%s5 + $0x8] sm:$0xf]
  %v64 = vld [vmem:[%s5 + $0xc] sm:$0xf]
  %v65 = vld [vmem:[%s9] sm:$0xf]
  %v66 = vld [vmem:[%s9 + $0x4] sm:$0xf]
  %v67 = vld [vmem:[%s9 + $0x8] sm:$0xf]
  %v68 = vld [vmem:[%s9 + $0xc] sm:$0xf]
  %v69 = vld [vmem:[%s3] sm:$0x1]
  %v71 = vlaneseq
  %v72 = vshrl.u32 %v71, 7
  %v73 = vsub.s32 0, %v72
  %v74 = vrot.slane %v69, %v73
  %v76 = vld [vmem:[%s6] sm:$0x1]
  %v78 = vlaneseq
  %v79 = vshrl.u32 %v78, 7
  %v80 = vsub.s32 0, %v79
  %v81 = vrot.slane %v76, %v80
  %v83 = vld [vmem:[%s7] sm:$0x1]
  %v85 = vlaneseq
  %v86 = vshrl.u32 %v85, 7
  %v87 = vsub.s32 0, %v86
  %v88 = vrot.slane %v83, %v87
  %v90 = vld [vmem:[%s8] sm:$0x1]
  %v92 = vlaneseq
  %v93 = vshrl.u32 %v92, 7
  %v94 = vsub.s32 0, %v93
  %v95 = vrot.slane %v90, %v94
  %v97 = vld [vmem:[%s10] sm:$0x1]
  %v99 = vlaneseq
  %v100 = vshrl.u32 %v99, 7
  %v101 = vsub.s32 0, %v100
  %v102 = vrot.slane %v97, %v101
  %v104 = vld [vmem:[%s11] sm:$0x1]
  %v106 = vlaneseq
  %v107 = vshrl.u32 %v106, 7
  %v108 = vsub.s32 0, %v107
  %v109 = vrot.slane %v104, %v108
  %v111 = vld [vmem:[%s12] sm:$0x1]
  %v113 = vlaneseq
  %v114 = vshrl.u32 %v113, 7
  %v115 = vsub.s32 0, %v114
  %v116 = vrot.slane %v111, %v115
  %v118 = vlaneseq
  %v119 = vand.u32 %v118, 127
  %v120 = vld [vmem:[%s0] sm:$0x3]
  %v125 = vunpack.c.l.b16 %v53
  %v126 = vunpack.c.l.b16 %v54
  %v127 = vunpack.c.l.b16 %v55
  %v128 = vunpack.c.l.b16 %v56
  %v129 = vpack.c.b16 %v126, %v125
  %v130 = vpack.c.b16 %v128, %v127
  %vm133 = vcmask 261120
  %v135 = vsel %vm133, 0, 0
  %137 = vmatprep.subr.bf16.mxu0 0
  %138 = vmatpush1.bf16.msra.mxu0 %v129
  %139 = vmatprep.subr.bf16.mxu0 0
  %140 = vmatpush1.bf16.msra.mxu0 %v130
  %141 = vmatprep.subr.bf16.mxu0 0
  %142 = vmatpush1.bf16.msra.mxu0 0
  %143 = vmatprep.subr.bf16.mxu0 0
  %144 = vmatpush1.bf16.msra.mxu0 0
  %145 = vmatprep.subr.bf16.mxu0 0
  %146 = vmatpush1.bf16.msra.mxu0 0
  %147 = vmatprep.subr.bf16.mxu0 0
  %148 = vmatpush1.bf16.msra.mxu0 0
  %149 = vmatprep.subr.bf16.mxu0 0
  %150 = vmatpush1.bf16.msra.mxu0 0
  %151 = vmatprep.subr.bf16.mxu0 0
  %152 = vmatpush1.bf16.msra.mxu0 0
  %153 = vmatprep.subr.bf16.mxu0 0
  %154 = vmatpush1.bf16.msra.mxu0 0
  %155 = vmatprep.subr.bf16.mxu0 0
  %156 = vmatpush1.bf16.msra.mxu0 0
  %157 = vmatprep.subr.bf16.mxu0 0
  %158 = vmatpush1.bf16.msra.mxu0 0
  %159 = vmatprep.subr.bf16.mxu0 0
  %160 = vmatpush1.bf16.msra.mxu0 0
  %161 = vmatprep.subr.bf16.mxu0 0
  %162 = vmatpush1.bf16.msra.mxu0 0
  %163 = vmatprep.subr.bf16.mxu0 0
  %164 = vmatpush1.bf16.msra.mxu0 0
  %165 = vmatprep.subr.bf16.mxu0 0
  %166 = vmatpush1.bf16.msra.mxu0 0
  %167 = vmatprep.subr.bf16.mxu0 0
  %168 = vmatpush1.bf16.msra.mxu0 0
  %169 = vmatprep.mubr.bf16.mxu0 0
  %170 = vmatmul.mubr.bf16.gmra.mrb[0].mxu0 %v135
  %v171 = vpop.f32.mrb[0].mxu0
  %v172 = vadd.f32 0.0, %v171
  %v173 = vpop.f32.mrb[0].mxu0
  %v174 = vpop.f32.mrb[0].mxu0
  %v175 = vpop.f32.mrb[0].mxu0
  %176 = vdwg.mxu0
  %v177 = vadd.f32 %v120, %v172
  %v178 = vadd.f32 %v177, %v74
  %v179 = vxor.u32 %v178, 2147483648
  %v180 = vmul.f32 %v179, 1.442695
  %v181 = vpow.pop %v180
  %v182 = vadd.f32 %v181, 1.0
  %v183 = vrcp.pop %v182
  %v184 = vmul.f32 1.0, %v183
  %v185 = vmul.f32 %v184, 2.0
  %v186 = vsub.f32 %v185, 1.0
  %v187 = vmul.f32 %v184, 0.0
  %189 = vrot.lane.b32.xlu0 %v186, 64
  %v190 = vpop.permute.xlu0 %189
  %v192 = vmul.f32 %v184, %v190
  %194 = vrot.lane.b32.xlu0 %v192, 32
  %v195 = vpop.permute.xlu0 %194
  %v197 = vadd.f32 %v187, %v195
  %v198 = vtanh.pop %v197
  %200 = vrot.lane.b32.xlu0 %v198, 64
  %v201 = vpop.permute.xlu0 %200
  %v203 = vmul.f32 %v184, %v201
  %205 = vrot.lane.b32.xlu0 %v203, 32
  %v206 = vpop.permute.xlu0 %205
  %vm208 = vcmask 254976
  %209 = vst.msk [vmem:[%s14] sm:$0x3] %vm208, %v206
  %v210 = vpack.c.bf16 %v203, %v203
  %212 = vrot.lane.b32.xlu0 %v210, 32
  %v213 = vpop.permute.xlu0 %212
  %v218 = vunpack.c.l.b16 %v61
  %v219 = vunpack.c.l.b16 %v62
  %v220 = vunpack.c.l.b16 %v63
  %v221 = vunpack.c.l.b16 %v64
  %v222 = vpack.c.b16 %v219, %v218
  %v223 = vpack.c.b16 %v221, %v220
  %v227 = vsel %vm133, %v213, 0
  %229 = vmatprep.subr.bf16.mxu0 0
  %230 = vmatpush1.bf16.msra.mxu0 %v222
  %231 = vmatprep.subr.bf16.mxu0 0
  %232 = vmatpush1.bf16.msra.mxu0 %v223
  %233 = vmatprep.subr.bf16.mxu0 0
  %234 = vmatpush1.bf16.msra.mxu0 0
  %235 = vmatprep.subr.bf16.mxu0 0
  %236 = vmatpush1.bf16.msra.mxu0 0
  %237 = vmatprep.subr.bf16.mxu0 0
  %238 = vmatpush1.bf16.msra.mxu0 0
  %239 = vmatprep.subr.bf16.mxu0 0
  %240 = vmatpush1.bf16.msra.mxu0 0
  %241 = vmatprep.subr.bf16.mxu0 0
  %242 = vmatpush1.bf16.msra.mxu0 0
  %243 = vmatprep.subr.bf16.mxu0 0
  %244 = vmatpush1.bf16.msra.mxu0 0
  %245 = vmatprep.subr.bf16.mxu0 0
  %246 = vmatpush1.bf16.msra.mxu0 0
  %247 = vmatprep.subr.bf16.mxu0 0
  %248 = vmatpush1.bf16.msra.mxu0 0
  %249 = vmatprep.subr.bf16.mxu0 0
  %250 = vmatpush1.bf16.msra.mxu0 0
  %251 = vmatprep.subr.bf16.mxu0 0
  %252 = vmatpush1.bf16.msra.mxu0 0
  %253 = vmatprep.subr.bf16.mxu0 0
  %254 = vmatpush1.bf16.msra.mxu0 0
  %255 = vmatprep.subr.bf16.mxu0 0
  %256 = vmatpush1.bf16.msra.mxu0 0
  %257 = vmatprep.subr.bf16.mxu0 0
  %258 = vmatpush1.bf16.msra.mxu0 0
  %259 = vmatprep.subr.bf16.mxu0 0
  %260 = vmatpush1.bf16.msra.mxu0 0
  %261 = vmatprep.mubr.bf16.mxu0 0
  %262 = vmatmul.mubr.bf16.gmra.mrb[0].mxu0 %v227
  %v263 = vpop.f32.mrb[0].mxu0
  %v264 = vadd.f32 %v81, %v263
  %v265 = vpop.f32.mrb[0].mxu0
  %v266 = vpop.f32.mrb[0].mxu0
  %v267 = vpop.f32.mrb[0].mxu0
  %268 = vdwg.mxu0
  %v269 = vsel %vm208, %v264, 0.0
  %270 = vadd.xlane.f32.xlu0 %v269
  %v271 = vpop.xlane.xlu0 %270
  %v272 = vmul.f32 %v264, %v264
  %v273 = vsel %vm208, %v272, 0.0
  %274 = vadd.xlane.f32.xlu0 %v273
  %v275 = vpop.xlane.xlu0 %274
  %v276 = vmul.f32 %v271, 0.03125
  %v277 = vmul.f32 %v275, 0.03125
  %v278 = vmul.f32 %v276, %v276
  %v279 = vsub.f32 %v277, %v278
  %v280 = vmax.f32 %v279, 0.0
  %v281 = vsub.f32 %v264, %v276
  %v282 = vadd.f32 %v280, 1e-05
  %v283 = vrsqrt.pop %v282
  %v284 = vmul.f32 %v281, %v283
  %v285 = vmul.f32 %v284, %v88
  %v286 = vadd.f32 %v285, %v95
  %vm287 = vcmp.gt.f32.partialorder %v286, 0.0
  %v288 = vmul.f32 %v286, 0.3
  %v289 = vsel %vm287, %v286, %v288
  %v290 = vpack.c.bf16 %v289, %v289
  %v295 = vunpack.c.l.b16 %v65
  %v296 = vunpack.c.l.b16 %v66
  %v297 = vunpack.c.l.b16 %v67
  %v298 = vunpack.c.l.b16 %v68
  %v299 = vpack.c.b16 %v296, %v295
  %v300 = vpack.c.b16 %v298, %v297
  %v304 = vsel %vm133, %v290, 0
  %306 = vmatprep.subr.bf16.mxu0 0
  %307 = vmatpush1.bf16.msra.mxu0 %v299
  %308 = vmatprep.subr.bf16.mxu0 0
  %309 = vmatpush1.bf16.msra.mxu0 %v300
  %310 = vmatprep.subr.bf16.mxu0 0
  %311 = vmatpush1.bf16.msra.mxu0 0
  %312 = vmatprep.subr.bf16.mxu0 0
  %313 = vmatpush1.bf16.msra.mxu0 0
  %314 = vmatprep.subr.bf16.mxu0 0
  %315 = vmatpush1.bf16.msra.mxu0 0
  %316 = vmatprep.subr.bf16.mxu0 0
  %317 = vmatpush1.bf16.msra.mxu0 0
  %318 = vmatprep.subr.bf16.mxu0 0
  %319 = vmatpush1.bf16.msra.mxu0 0
  %320 = vmatprep.subr.bf16.mxu0 0
  %321 = vmatpush1.bf16.msra.mxu0 0
  %322 = vmatprep.subr.bf16.mxu0 0
  %323 = vmatpush1.bf16.msra.mxu0 0
  %324 = vmatprep.subr.bf16.mxu0 0
  %325 = vmatpush1.bf16.msra.mxu0 0
  %326 = vmatprep.subr.bf16.mxu0 0
  %327 = vmatpush1.bf16.msra.mxu0 0
  %328 = vmatprep.subr.bf16.mxu0 0
  %329 = vmatpush1.bf16.msra.mxu0 0
  %330 = vmatprep.subr.bf16.mxu0 0
  %331 = vmatpush1.bf16.msra.mxu0 0
  %332 = vmatprep.subr.bf16.mxu0 0
  %333 = vmatpush1.bf16.msra.mxu0 0
  %334 = vmatprep.subr.bf16.mxu0 0
  %335 = vmatpush1.bf16.msra.mxu0 0
  %336 = vmatprep.subr.bf16.mxu0 0
  %337 = vmatpush1.bf16.msra.mxu0 0
  %338 = vmatprep.mubr.bf16.mxu0 0
  %339 = vmatmul.mubr.bf16.gmra.mrb[0].mxu0 %v304
  %v340 = vpop.f32.mrb[0].mxu0
  %v341 = vadd.f32 %v102, %v340
  %v342 = vpop.f32.mrb[0].mxu0
  %v343 = vpop.f32.mrb[0].mxu0
  %v344 = vpop.f32.mrb[0].mxu0
  %345 = vdwg.mxu0
  %v346 = vsel %vm208, %v341, 0.0
  %347 = vadd.xlane.f32.xlu0 %v346
  %v348 = vpop.xlane.xlu0 %347
  %v349 = vmul.f32 %v341, %v341
  %v350 = vsel %vm208, %v349, 0.0
  %351 = vadd.xlane.f32.xlu0 %v350
  %v352 = vpop.xlane.xlu0 %351
  %v353 = vmul.f32 %v348, 0.03125
  %v354 = vmul.f32 %v352, 0.03125
  %v355 = vmul.f32 %v353, %v353
  %v356 = vsub.f32 %v354, %v355
  %v357 = vmax.f32 %v356, 0.0
  %v358 = vsub.f32 %v341, %v353
  %v359 = vadd.f32 %v357, 1e-05
  %v360 = vrsqrt.pop %v359
  %v361 = vmul.f32 %v358, %v360
  %v362 = vmul.f32 %v361, %v109
  %v363 = vadd.f32 %v362, %v116
  %364 = vst.msk [vmem:[%s13] sm:$0x3] %vm208, %v363
  %v365 = vsel %vm208, %v363, -inf
  %366 = vmax.xlane.f32.xlu0 %v365
  %v367 = vpop.xlane.xlu0 %366
  %vm368 = vcmp.ge.f32.partialorder %v363, %v367
  %v369 = vsel %vm368, %v119, 32
  %v370 = vsel %vm208, %v369, 2147483647
  %v371 = vand.u32 %v370, 65535
  %v372 = vshra.s32 %v370, 16
  %v373 = vcvt.s32.f32 %v371
  %v374 = vcvt.s32.f32 %v372
  %375 = vmin.xlane.f32.xlu0 %v374
  %v376 = vpop.xlane.xlu0 %375
  %vm377 = vcmp.eq.f32.partialorder %v374, %v376
  %v378 = vsel %vm377, %v373, inf
  %379 = vmin.xlane.f32.xlu0 %v378
  %v380 = vpop.xlane.xlu0 %379
  %v381 = vcvt.f32.s32 %v380
  %v382 = vcvt.f32.s32 %v376
  %v383 = vshll.u32 %v382, 16
  %v384 = vadd.s32 %v383, %v381
  %vm385 = vcmp.eq.s32.totalorder %v119, %v384
  %v386 = vsel %vm385, 1, 0
  %v387 = vcvt.s32.f32 %v386
  %v388 = vpack.c.bf16 %v387, %v387
  %v390 = vsel %vm133, %v387, 0
  %392 = vmatprep.subr.mxu0 0.0
  %393 = vmatpush1.msra.mxu0 %v57
  %394 = vmatprep.subr.mxu0 0.0
  %395 = vmatpush1.msra.mxu0 %v58
  %396 = vmatprep.subr.mxu0 0.0
  %397 = vmatpush1.msra.mxu0 %v59
  %398 = vmatprep.subr.mxu0 0.0
  %399 = vmatpush1.msra.mxu0 %v60
  %400 = vmatprep.subr.mxu0 0.0
  %401 = vmatpush1.msra.mxu0 0.0
  %402 = vmatprep.subr.mxu0 0.0
  %403 = vmatpush1.msra.mxu0 0.0
  %404 = vmatprep.subr.mxu0 0.0
  %405 = vmatpush1.msra.mxu0 0.0
  %406 = vmatprep.subr.mxu0 0.0
  %407 = vmatpush1.msra.mxu0 0.0
  %408 = vmatprep.subr.mxu0 0.0
  %409 = vmatpush1.msra.mxu0 0.0
  %410 = vmatprep.subr.mxu0 0.0
  %411 = vmatpush1.msra.mxu0 0.0
  %412 = vmatprep.subr.mxu0 0.0
  %413 = vmatpush1.msra.mxu0 0.0
  %414 = vmatprep.subr.mxu0 0.0
  %415 = vmatpush1.msra.mxu0 0.0
  %416 = vmatprep.subr.mxu0 0.0
  %417 = vmatpush1.msra.mxu0 0.0
  %418 = vmatprep.subr.mxu0 0.0
  %419 = vmatpush1.msra.mxu0 0.0
  %420 = vmatprep.subr.mxu0 0.0
  %421 = vmatpush1.msra.mxu0 0.0
  %422 = vmatprep.subr.mxu0 0.0
  %423 = vmatpush1.msra.mxu0 0.0
  %424 = vmatprep.subr.mxu0 0.0
  %425 = vmatpush1.msra.mxu0 0.0
  %426 = vmatprep.subr.mxu0 0.0
  %427 = vmatpush1.msra.mxu0 0.0
  %428 = vmatprep.subr.mxu0 0.0
  %429 = vmatpush1.msra.mxu0 0.0
  %430 = vmatprep.subr.mxu0 0.0
  %431 = vmatpush1.msra.mxu0 0.0
  %432 = vmatprep.subr.mxu0 0.0
  %433 = vmatpush1.msra.mxu0 0.0
  %434 = vmatprep.subr.mxu0 0.0
  %435 = vmatpush1.msra.mxu0 0.0
  %436 = vmatprep.subr.mxu0 0.0
  %437 = vmatpush1.msra.mxu0 0.0
  %438 = vmatprep.subr.mxu0 0.0
  %439 = vmatpush1.msra.mxu0 0.0
  %440 = vmatprep.subr.mxu0 0.0
  %441 = vmatpush1.msra.mxu0 0.0
  %442 = vmatprep.subr.mxu0 0.0
  %443 = vmatpush1.msra.mxu0 0.0
  %444 = vmatprep.subr.mxu0 0.0
  %445 = vmatpush1.msra.mxu0 0.0
  %446 = vmatprep.subr.mxu0 0.0
  %447 = vmatpush1.msra.mxu0 0.0
  %448 = vmatprep.subr.mxu0 0.0
  %449 = vmatpush1.msra.mxu0 0.0
  %450 = vmatprep.subr.mxu0 0.0
  %451 = vmatpush1.msra.mxu0 0.0
  %452 = vmatprep.subr.mxu0 0.0
  %453 = vmatpush1.msra.mxu0 0.0
  %454 = vmatprep.subr.mxu0 0.0
  %455 = vmatpush1.msra.mxu0 0.0
  %456 = vmatprep.mubr.f32.mxu0 0.0
  %457 = vmatmul.mubr.f32.gmra.mrb[0].mxu0 %v390
  %v458 = vpop.f32.mrb[0].mxu0
  %v459 = vadd.f32 0.0, %v458
  %v460 = vpop.f32.mrb[0].mxu0
  %461 = vdwg.mxu0
  %vm462 = vcmask 123904
  %463 = vst.msk [vmem:[%s15] sm:$0x3] %vm462, %v459
  %464 = vmatprep.subr.bf16.mxu0 0
  %465 = vmatpush1.bf16.msra.mxu0 %v129
  %466 = vmatprep.subr.bf16.mxu0 0
  %467 = vmatpush1.bf16.msra.mxu0 %v130
  %468 = vmatprep.subr.bf16.mxu0 0
  %469 = vmatpush1.bf16.msra.mxu0 0
  %470 = vmatprep.subr.bf16.mxu0 0
  %471 = vmatpush1.bf16.msra.mxu0 0
  %472 = vmatprep.subr.bf16.mxu0 0
  %473 = vmatpush1.bf16.msra.mxu0 0
  %474 = vmatprep.subr.bf16.mxu0 0
  %475 = vmatpush1.bf16.msra.mxu0 0
  %476 = vmatprep.subr.bf16.mxu0 0
  %477 = vmatpush1.bf16.msra.mxu0 0
  %478 = vmatprep.subr.bf16.mxu0 0
  %479 = vmatpush1.bf16.msra.mxu0 0
  %480 = vmatprep.subr.bf16.mxu0 0
  %481 = vmatpush1.bf16.msra.mxu0 0
  %482 = vmatprep.subr.bf16.mxu0 0
  %483 = vmatpush1.bf16.msra.mxu0 0
  %484 = vmatprep.subr.bf16.mxu0 0
  %485 = vmatpush1.bf16.msra.mxu0 0
  %486 = vmatprep.subr.bf16.mxu0 0
  %487 = vmatpush1.bf16.msra.mxu0 0
  %488 = vmatprep.subr.bf16.mxu0 0
  %489 = vmatpush1.bf16.msra.mxu0 0
  %490 = vmatprep.subr.bf16.mxu0 0
  %491 = vmatpush1.bf16.msra.mxu0 0
  %492 = vmatprep.subr.bf16.mxu0 0
  %493 = vmatpush1.bf16.msra.mxu0 0
  %494 = vmatprep.subr.bf16.mxu0 0
  %495 = vmatpush1.bf16.msra.mxu0 0
  %496 = vmatprep.mubr.bf16.mxu0 0
  %497 = vmatmul.mubr.bf16.gmra.mrb[0].mxu0 %v227
  %v498 = vpop.f32.mrb[0].mxu0
  %v499 = vadd.f32 0.0, %v498
  %v500 = vpop.f32.mrb[0].mxu0
  %v501 = vpop.f32.mrb[0].mxu0
  %v502 = vpop.f32.mrb[0].mxu0
  %503 = vdwg.mxu0
  %v508 = vunpack.c.l.b16 %v49
  %v509 = vunpack.c.l.b16 %v50
  %v510 = vunpack.c.l.b16 %v51
  %v511 = vunpack.c.l.b16 %v52
  %v512 = vpack.c.b16 %v509, %v508
  %v513 = vpack.c.b16 %v511, %v510
  %v517 = vsel %vm133, %v388, 0
  %519 = vmatprep.subr.bf16.mxu0 0
  %520 = vmatpush1.bf16.msra.mxu0 %v512
  %521 = vmatprep.subr.bf16.mxu0 0
  %522 = vmatpush1.bf16.msra.mxu0 %v513
  %523 = vmatprep.subr.bf16.mxu0 0
  %524 = vmatpush1.bf16.msra.mxu0 0
  %525 = vmatprep.subr.bf16.mxu0 0
  %526 = vmatpush1.bf16.msra.mxu0 0
  %527 = vmatprep.subr.bf16.mxu0 0
  %528 = vmatpush1.bf16.msra.mxu0 0
  %529 = vmatprep.subr.bf16.mxu0 0
  %530 = vmatpush1.bf16.msra.mxu0 0
  %531 = vmatprep.subr.bf16.mxu0 0
  %532 = vmatpush1.bf16.msra.mxu0 0
  %533 = vmatprep.subr.bf16.mxu0 0
  %534 = vmatpush1.bf16.msra.mxu0 0
  %535 = vmatprep.subr.bf16.mxu0 0
  %536 = vmatpush1.bf16.msra.mxu0 0
  %537 = vmatprep.subr.bf16.mxu0 0
  %538 = vmatpush1.bf16.msra.mxu0 0
  %539 = vmatprep.subr.bf16.mxu0 0
  %540 = vmatpush1.bf16.msra.mxu0 0
  %541 = vmatprep.subr.bf16.mxu0 0
  %542 = vmatpush1.bf16.msra.mxu0 0
  %543 = vmatprep.subr.bf16.mxu0 0
  %544 = vmatpush1.bf16.msra.mxu0 0
  %545 = vmatprep.subr.bf16.mxu0 0
  %546 = vmatpush1.bf16.msra.mxu0 0
  %547 = vmatprep.subr.bf16.mxu0 0
  %548 = vmatpush1.bf16.msra.mxu0 0
  %549 = vmatprep.subr.bf16.mxu0 0
  %550 = vmatpush1.bf16.msra.mxu0 0
  %551 = vmatprep.mubr.bf16.mxu0 0
  %552 = vmatmul.mubr.bf16.gmra.mrb[0].mxu0 %v517
  %v553 = vpop.f32.mrb[0].mxu0
  %v554 = vadd.f32 %v499, %v553
  %v555 = vpop.f32.mrb[0].mxu0
  %v556 = vpop.f32.mrb[0].mxu0
  %v557 = vpop.f32.mrb[0].mxu0
  %558 = vdwg.mxu0
  %v559 = vadd.f32 %v554, %v74
  %v560 = vxor.u32 %v559, 2147483648
  %v561 = vmul.f32 %v560, 1.442695
  %v562 = vpow.pop %v561
  %v563 = vadd.f32 %v562, 1.0
  %v564 = vrcp.pop %v563
  %v565 = vmul.f32 1.0, %v564
  %v566 = vmul.f32 %v565, 2.0
  %v567 = vsub.f32 %v566, 1.0
  %v568 = vmul.f32 %v565, %v197
  %570 = vrot.lane.b32.xlu0 %v567, 64
  %v571 = vpop.permute.xlu0 %570
  %v573 = vmul.f32 %v565, %v571
  %575 = vrot.lane.b32.xlu0 %v573, 32
  %v576 = vpop.permute.xlu0 %575
  %v578 = vadd.f32 %v568, %v576
  %v579 = vtanh.pop %v578
  %581 = vrot.lane.b32.xlu0 %v579, 64
  %v582 = vpop.permute.xlu0 %581
  %v584 = vmul.f32 %v565, %v582
  %586 = vrot.lane.b32.xlu0 %v584, 32
  %v587 = vpop.permute.xlu0 %586
  %s589 = scalar_lea.vmem %s14, 2
  %590 = vst.msk [vmem:[%s589] sm:$0x3] %vm208, %v587
  %v591 = vpack.c.bf16 %v584, %v584
  %593 = vrot.lane.b32.xlu0 %v591, 32
  %v594 = vpop.permute.xlu0 %593
  %v596 = vsel %vm133, %v594, 0
  %598 = vmatprep.subr.bf16.mxu0 0
  %599 = vmatpush1.bf16.msra.mxu0 %v222
  %600 = vmatprep.subr.bf16.mxu0 0
  %601 = vmatpush1.bf16.msra.mxu0 %v223
  %602 = vmatprep.subr.bf16.mxu0 0
  %603 = vmatpush1.bf16.msra.mxu0 0
  %604 = vmatprep.subr.bf16.mxu0 0
  %605 = vmatpush1.bf16.msra.mxu0 0
  %606 = vmatprep.subr.bf16.mxu0 0
  %607 = vmatpush1.bf16.msra.mxu0 0
  %608 = vmatprep.subr.bf16.mxu0 0
  %609 = vmatpush1.bf16.msra.mxu0 0
  %610 = vmatprep.subr.bf16.mxu0 0
  %611 = vmatpush1.bf16.msra.mxu0 0
  %612 = vmatprep.subr.bf16.mxu0 0
  %613 = vmatpush1.bf16.msra.mxu0 0
  %614 = vmatprep.subr.bf16.mxu0 0
  %615 = vmatpush1.bf16.msra.mxu0 0
  %616 = vmatprep.subr.bf16.mxu0 0
  %617 = vmatpush1.bf16.msra.mxu0 0
  %618 = vmatprep.subr.bf16.mxu0 0
  %619 = vmatpush1.bf16.msra.mxu0 0
  %620 = vmatprep.subr.bf16.mxu0 0
  %621 = vmatpush1.bf16.msra.mxu0 0
  %622 = vmatprep.subr.bf16.mxu0 0
  %623 = vmatpush1.bf16.msra.mxu0 0
  %624 = vmatprep.subr.bf16.mxu0 0
  %625 = vmatpush1.bf16.msra.mxu0 0
  %626 = vmatprep.subr.bf16.mxu0 0
  %627 = vmatpush1.bf16.msra.mxu0 0
  %628 = vmatprep.subr.bf16.mxu0 0
  %629 = vmatpush1.bf16.msra.mxu0 0
  %630 = vmatprep.mubr.bf16.mxu0 0
  %631 = vmatmul.mubr.bf16.gmra.mrb[0].mxu0 %v596
  %v632 = vpop.f32.mrb[0].mxu0
  %v633 = vadd.f32 %v81, %v632
  %v634 = vpop.f32.mrb[0].mxu0
  %v635 = vpop.f32.mrb[0].mxu0
  %v636 = vpop.f32.mrb[0].mxu0
  %637 = vdwg.mxu0
  %v638 = vsel %vm208, %v633, 0.0
  %639 = vadd.xlane.f32.xlu0 %v638
  %v640 = vpop.xlane.xlu0 %639
  %v641 = vmul.f32 %v633, %v633
  %v642 = vsel %vm208, %v641, 0.0
  %643 = vadd.xlane.f32.xlu0 %v642
  %v644 = vpop.xlane.xlu0 %643
  %v645 = vmul.f32 %v640, 0.03125
  %v646 = vmul.f32 %v644, 0.03125
  %v647 = vmul.f32 %v645, %v645
  %v648 = vsub.f32 %v646, %v647
  %v649 = vmax.f32 %v648, 0.0
  %v650 = vsub.f32 %v633, %v645
  %v651 = vadd.f32 %v649, 1e-05
  %v652 = vrsqrt.pop %v651
  %v653 = vmul.f32 %v650, %v652
  %v654 = vmul.f32 %v653, %v88
  %v655 = vadd.f32 %v654, %v95
  %vm656 = vcmp.gt.f32.partialorder %v655, 0.0
  %v657 = vmul.f32 %v655, 0.3
  %v658 = vsel %vm656, %v655, %v657
  %v659 = vpack.c.bf16 %v658, %v658
  %v661 = vsel %vm133, %v659, 0
  %663 = vmatprep.subr.bf16.mxu0 0
  %664 = vmatpush1.bf16.msra.mxu0 %v299
  %665 = vmatprep.subr.bf16.mxu0 0
  %666 = vmatpush1.bf16.msra.mxu0 %v300
  %667 = vmatprep.subr.bf16.mxu0 0
  %668 = vmatpush1.bf16.msra.mxu0 0
  %669 = vmatprep.subr.bf16.mxu0 0
  %670 = vmatpush1.bf16.msra.mxu0 0
  %671 = vmatprep.subr.bf16.mxu0 0
  %672 = vmatpush1.bf16.msra.mxu0 0
  %673 = vmatprep.subr.bf16.mxu0 0
  %674 = vmatpush1.bf16.msra.mxu0 0
  %675 = vmatprep.subr.bf16.mxu0 0
  %676 = vmatpush1.bf16.msra.mxu0 0
  %677 = vmatprep.subr.bf16.mxu0 0
  %678 = vmatpush1.bf16.msra.mxu0 0
  %679 = vmatprep.subr.bf16.mxu0 0
  %680 = vmatpush1.bf16.msra.mxu0 0
  %681 = vmatprep.subr.bf16.mxu0 0
  %682 = vmatpush1.bf16.msra.mxu0 0
  %683 = vmatprep.subr.bf16.mxu0 0
  %684 = vmatpush1.bf16.msra.mxu0 0
  %685 = vmatprep.subr.bf16.mxu0 0
  %686 = vmatpush1.bf16.msra.mxu0 0
  %687 = vmatprep.subr.bf16.mxu0 0
  %688 = vmatpush1.bf16.msra.mxu0 0
  %689 = vmatprep.subr.bf16.mxu0 0
  %690 = vmatpush1.bf16.msra.mxu0 0
  %691 = vmatprep.subr.bf16.mxu0 0
  %692 = vmatpush1.bf16.msra.mxu0 0
  %693 = vmatprep.subr.bf16.mxu0 0
  %694 = vmatpush1.bf16.msra.mxu0 0
  %695 = vmatprep.mubr.bf16.mxu0 0
  %696 = vmatmul.mubr.bf16.gmra.mrb[0].mxu0 %v661
  %v697 = vpop.f32.mrb[0].mxu0
  %v698 = vadd.f32 %v102, %v697
  %v699 = vpop.f32.mrb[0].mxu0
  %v700 = vpop.f32.mrb[0].mxu0
  %v701 = vpop.f32.mrb[0].mxu0
  %702 = vdwg.mxu0
  %v703 = vsel %vm208, %v698, 0.0
  %704 = vadd.xlane.f32.xlu0 %v703
  %v705 = vpop.xlane.xlu0 %704
  %v706 = vmul.f32 %v698, %v698
  %v707 = vsel %vm208, %v706, 0.0
  %708 = vadd.xlane.f32.xlu0 %v707
  %v709 = vpop.xlane.xlu0 %708
  %v710 = vmul.f32 %v705, 0.03125
  %v711 = vmul.f32 %v709, 0.03125
  %v712 = vmul.f32 %v710, %v710
  %v713 = vsub.f32 %v711, %v712
  %v714 = vmax.f32 %v713, 0.0
  %v715 = vsub.f32 %v698, %v710
  %v716 = vadd.f32 %v714, 1e-05
  %v717 = vrsqrt.pop %v716
  %v718 = vmul.f32 %v715, %v717
  %v719 = vmul.f32 %v718, %v109
  %v720 = vadd.f32 %v719, %v116
  %s721 = scalar_lea.vmem %s13, 2
  %722 = vst.msk [vmem:[%s721] sm:$0x3] %vm208, %v720
  %v723 = vsel %vm208, %v720, -inf
  %724 = vmax.xlane.f32.xlu0 %v723
  %v725 = vpop.xlane.xlu0 %724
  %vm726 = vcmp.ge.f32.partialorder %v720, %v725
  %v727 = vsel %vm726, %v119, 32
  %v728 = vsel %vm208, %v727, 2147483647
  %v729 = vand.u32 %v728, 65535
  %v730 = vshra.s32 %v728, 16
  %v731 = vcvt.s32.f32 %v729
  %v732 = vcvt.s32.f32 %v730
  %733 = vmin.xlane.f32.xlu0 %v732
  %v734 = vpop.xlane.xlu0 %733
  %vm735 = vcmp.eq.f32.partialorder %v732, %v734
  %v736 = vsel %vm735, %v731, inf
  %737 = vmin.xlane.f32.xlu0 %v736
  %v738 = vpop.xlane.xlu0 %737
  %v739 = vcvt.f32.s32 %v738
  %v740 = vcvt.f32.s32 %v734
  %v741 = vshll.u32 %v740, 16
  %v742 = vadd.s32 %v741, %v739
  %vm743 = vcmp.eq.s32.totalorder %v119, %v742
  %v744 = vsel %vm743, 1, 0
  %v745 = vcvt.s32.f32 %v744
  %v746 = vpack.c.bf16 %v745, %v745
  %v748 = vsel %vm133, %v745, 0
  %750 = vmatprep.subr.mxu0 0.0
  %751 = vmatpush1.msra.mxu0 %v57
  %752 = vmatprep.subr.mxu0 0.0
  %753 = vmatpush1.msra.mxu0 %v58
  %754 = vmatprep.subr.mxu0 0.0
  %755 = vmatpush1.msra.mxu0 %v59
  %756 = vmatprep.subr.mxu0 0.0
  %757 = vmatpush1.msra.mxu0 %v60
  %758 = vmatprep.subr.mxu0 0.0
  %759 = vmatpush1.msra.mxu0 0.0
  %760 = vmatprep.subr.mxu0 0.0
  %761 = vmatpush1.msra.mxu0 0.0
  %762 = vmatprep.subr.mxu0 0.0
  %763 = vmatpush1.msra.mxu0 0.0
  %764 = vmatprep.subr.mxu0 0.0
  %765 = vmatpush1.msra.mxu0 0.0
  %766 = vmatprep.subr.mxu0 0.0
  %767 = vmatpush1.msra.mxu0 0.0
  %768 = vmatprep.subr.mxu0 0.0
  %769 = vmatpush1.msra.mxu0 0.0
  %770 = vmatprep.subr.mxu0 0.0
  %771 = vmatpush1.msra.mxu0 0.0
  %772 = vmatprep.subr.mxu0 0.0
  %773 = vmatpush1.msra.mxu0 0.0
  %774 = vmatprep.subr.mxu0 0.0
  %775 = vmatpush1.msra.mxu0 0.0
  %776 = vmatprep.subr.mxu0 0.0
  %777 = vmatpush1.msra.mxu0 0.0
  %778 = vmatprep.subr.mxu0 0.0
  %779 = vmatpush1.msra.mxu0 0.0
  %780 = vmatprep.subr.mxu0 0.0
  %781 = vmatpush1.msra.mxu0 0.0
  %782 = vmatprep.subr.mxu0 0.0
  %783 = vmatpush1.msra.mxu0 0.0
  %784 = vmatprep.subr.mxu0 0.0
  %785 = vmatpush1.msra.mxu0 0.0
  %786 = vmatprep.subr.mxu0 0.0
  %787 = vmatpush1.msra.mxu0 0.0
  %788 = vmatprep.subr.mxu0 0.0
  %789 = vmatpush1.msra.mxu0 0.0
  %790 = vmatprep.subr.mxu0 0.0
  %791 = vmatpush1.msra.mxu0 0.0
  %792 = vmatprep.subr.mxu0 0.0
  %793 = vmatpush1.msra.mxu0 0.0
  %794 = vmatprep.subr.mxu0 0.0
  %795 = vmatpush1.msra.mxu0 0.0
  %796 = vmatprep.subr.mxu0 0.0
  %797 = vmatpush1.msra.mxu0 0.0
  %798 = vmatprep.subr.mxu0 0.0
  %799 = vmatpush1.msra.mxu0 0.0
  %800 = vmatprep.subr.mxu0 0.0
  %801 = vmatpush1.msra.mxu0 0.0
  %802 = vmatprep.subr.mxu0 0.0
  %803 = vmatpush1.msra.mxu0 0.0
  %804 = vmatprep.subr.mxu0 0.0
  %805 = vmatpush1.msra.mxu0 0.0
  %806 = vmatprep.subr.mxu0 0.0
  %807 = vmatpush1.msra.mxu0 0.0
  %808 = vmatprep.subr.mxu0 0.0
  %809 = vmatpush1.msra.mxu0 0.0
  %810 = vmatprep.subr.mxu0 0.0
  %811 = vmatpush1.msra.mxu0 0.0
  %812 = vmatprep.subr.mxu0 0.0
  %813 = vmatpush1.msra.mxu0 0.0
  %814 = vmatprep.mubr.f32.mxu0 0.0
  %815 = vmatmul.mubr.f32.gmra.mrb[0].mxu0 %v748
  %v816 = vpop.f32.mrb[0].mxu0
  %v817 = vadd.f32 0.0, %v816
  %v818 = vpop.f32.mrb[0].mxu0
  %819 = vdwg.mxu0
  %s820 = scalar_lea.vmem %s15, 2
  %821 = vst.msk [vmem:[%s820] sm:$0x3] %vm462, %v817
  %822 = vmatprep.subr.bf16.mxu0 0
  %823 = vmatpush1.bf16.msra.mxu0 %v129
  %824 = vmatprep.subr.bf16.mxu0 0
  %825 = vmatpush1.bf16.msra.mxu0 %v130
  %826 = vmatprep.subr.bf16.mxu0 0
  %827 = vmatpush1.bf16.msra.mxu0 0
  %828 = vmatprep.subr.bf16.mxu0 0
  %829 = vmatpush1.bf16.msra.mxu0 0
  %830 = vmatprep.subr.bf16.mxu0 0
  %831 = vmatpush1.bf16.msra.mxu0 0
  %832 = vmatprep.subr.bf16.mxu0 0
  %833 = vmatpush1.bf16.msra.mxu0 0
  %834 = vmatprep.subr.bf16.mxu0 0
  %835 = vmatpush1.bf16.msra.mxu0 0
  %836 = vmatprep.subr.bf16.mxu0 0
  %837 = vmatpush1.bf16.msra.mxu0 0
  %838 = vmatprep.subr.bf16.mxu0 0
  %839 = vmatpush1.bf16.msra.mxu0 0
  %840 = vmatprep.subr.bf16.mxu0 0
  %841 = vmatpush1.bf16.msra.mxu0 0
  %842 = vmatprep.subr.bf16.mxu0 0
  %843 = vmatpush1.bf16.msra.mxu0 0
  %844 = vmatprep.subr.bf16.mxu0 0
  %845 = vmatpush1.bf16.msra.mxu0 0
  %846 = vmatprep.subr.bf16.mxu0 0
  %847 = vmatpush1.bf16.msra.mxu0 0
  %848 = vmatprep.subr.bf16.mxu0 0
  %849 = vmatpush1.bf16.msra.mxu0 0
  %850 = vmatprep.subr.bf16.mxu0 0
  %851 = vmatpush1.bf16.msra.mxu0 0
  %852 = vmatprep.subr.bf16.mxu0 0
  %853 = vmatpush1.bf16.msra.mxu0 0
  %854 = vmatprep.mubr.bf16.mxu0 0
  %855 = vmatmul.mubr.bf16.gmra.mrb[0].mxu0 %v596
  %v856 = vpop.f32.mrb[0].mxu0
  %v857 = vadd.f32 0.0, %v856
  %v858 = vpop.f32.mrb[0].mxu0
  %v859 = vpop.f32.mrb[0].mxu0
  %v860 = vpop.f32.mrb[0].mxu0
  %861 = vdwg.mxu0
  %v863 = vsel %vm133, %v746, 0
  %865 = vmatprep.subr.bf16.mxu0 0
  %866 = vmatpush1.bf16.msra.mxu0 %v512
  %867 = vmatprep.subr.bf16.mxu0 0
  %868 = vmatpush1.bf16.msra.mxu0 %v513
  %869 = vmatprep.subr.bf16.mxu0 0
  %870 = vmatpush1.bf16.msra.mxu0 0
  %871 = vmatprep.subr.bf16.mxu0 0
  %872 = vmatpush1.bf16.msra.mxu0 0
  %873 = vmatprep.subr.bf16.mxu0 0
  %874 = vmatpush1.bf16.msra.mxu0 0
  %875 = vmatprep.subr.bf16.mxu0 0
  %876 = vmatpush1.bf16.msra.mxu0 0
  %877 = vmatprep.subr.bf16.mxu0 0
  %878 = vmatpush1.bf16.msra.mxu0 0
  %879 = vmatprep.subr.bf16.mxu0 0
  %880 = vmatpush1.bf16.msra.mxu0 0
  %881 = vmatprep.subr.bf16.mxu0 0
  %882 = vmatpush1.bf16.msra.mxu0 0
  %883 = vmatprep.subr.bf16.mxu0 0
  %884 = vmatpush1.bf16.msra.mxu0 0
  %885 = vmatprep.subr.bf16.mxu0 0
  %886 = vmatpush1.bf16.msra.mxu0 0
  %887 = vmatprep.subr.bf16.mxu0 0
  %888 = vmatpush1.bf16.msra.mxu0 0
  %889 = vmatprep.subr.bf16.mxu0 0
  %890 = vmatpush1.bf16.msra.mxu0 0
  %891 = vmatprep.subr.bf16.mxu0 0
  %892 = vmatpush1.bf16.msra.mxu0 0
  %893 = vmatprep.subr.bf16.mxu0 0
  %894 = vmatpush1.bf16.msra.mxu0 0
  %895 = vmatprep.subr.bf16.mxu0 0
  %896 = vmatpush1.bf16.msra.mxu0 0
  %897 = vmatprep.mubr.bf16.mxu0 0
  %898 = vmatmul.mubr.bf16.gmra.mrb[0].mxu0 %v863
  %v899 = vpop.f32.mrb[0].mxu0
  %v900 = vadd.f32 %v857, %v899
  %v901 = vpop.f32.mrb[0].mxu0
  %v902 = vpop.f32.mrb[0].mxu0
  %v903 = vpop.f32.mrb[0].mxu0
  %904 = vdwg.mxu0
  %v905 = vadd.f32 %v900, %v74
  %v906 = vxor.u32 %v905, 2147483648
  %v907 = vmul.f32 %v906, 1.442695
  %v908 = vpow.pop %v907
  %v909 = vadd.f32 %v908, 1.0
  %v910 = vrcp.pop %v909
  %v911 = vmul.f32 1.0, %v910
  %v912 = vmul.f32 %v911, 2.0
  %v913 = vsub.f32 %v912, 1.0
  %v914 = vmul.f32 %v911, %v578
  %916 = vrot.lane.b32.xlu0 %v913, 64
  %v917 = vpop.permute.xlu0 %916
  %v919 = vmul.f32 %v911, %v917
  %921 = vrot.lane.b32.xlu0 %v919, 32
  %v922 = vpop.permute.xlu0 %921
  %v924 = vadd.f32 %v914, %v922
  %v925 = vtanh.pop %v924
  %927 = vrot.lane.b32.xlu0 %v925, 64
  %v928 = vpop.permute.xlu0 %927
  %v930 = vmul.f32 %v911, %v928
  %932 = vrot.lane.b32.xlu0 %v930, 32
  %v933 = vpop.permute.xlu0 %932
  %s935 = scalar_lea.vmem %s14, 4
  %936 = vst.msk [vmem:[%s935] sm:$0x3] %vm208, %v933
  %v937 = vpack.c.bf16 %v930, %v930
  %939 = vrot.lane.b32.xlu0 %v937, 32
  %v940 = vpop.permute.xlu0 %939
  %v942 = vsel %vm133, %v940, 0
  %944 = vmatprep.subr.bf16.mxu0 0
  %945 = vmatpush1.bf16.msra.mxu0 %v222
  %946 = vmatprep.subr.bf16.mxu0 0
  %947 = vmatpush1.bf16.msra.mxu0 %v223
  %948 = vmatprep.subr.bf16.mxu0 0
  %949 = vmatpush1.bf16.msra.mxu0 0
  %950 = vmatprep.subr.bf16.mxu0 0
  %951 = vmatpush1.bf16.msra.mxu0 0
  %952 = vmatprep.subr.bf16.mxu0 0
  %953 = vmatpush1.bf16.msra.mxu0 0
  %954 = vmatprep.subr.bf16.mxu0 0
  %955 = vmatpush1.bf16.msra.mxu0 0
  %956 = vmatprep.subr.bf16.mxu0 0
  %957 = vmatpush1.bf16.msra.mxu0 0
  %958 = vmatprep.subr.bf16.mxu0 0
  %959 = vmatpush1.bf16.msra.mxu0 0
  %960 = vmatprep.subr.bf16.mxu0 0
  %961 = vmatpush1.bf16.msra.mxu0 0
  %962 = vmatprep.subr.bf16.mxu0 0
  %963 = vmatpush1.bf16.msra.mxu0 0
  %964 = vmatprep.subr.bf16.mxu0 0
  %965 = vmatpush1.bf16.msra.mxu0 0
  %966 = vmatprep.subr.bf16.mxu0 0
  %967 = vmatpush1.bf16.msra.mxu0 0
  %968 = vmatprep.subr.bf16.mxu0 0
  %969 = vmatpush1.bf16.msra.mxu0 0
  %970 = vmatprep.subr.bf16.mxu0 0
  %971 = vmatpush1.bf16.msra.mxu0 0
  %972 = vmatprep.subr.bf16.mxu0 0
  %973 = vmatpush1.bf16.msra.mxu0 0
  %974 = vmatprep.subr.bf16.mxu0 0
  %975 = vmatpush1.bf16.msra.mxu0 0
  %976 = vmatprep.mubr.bf16.mxu0 0
  %977 = vmatmul.mubr.bf16.gmra.mrb[0].mxu0 %v942
  %v978 = vpop.f32.mrb[0].mxu0
  %v979 = vadd.f32 %v81, %v978
  %v980 = vpop.f32.mrb[0].mxu0
  %v981 = vpop.f32.mrb[0].mxu0
  %v982 = vpop.f32.mrb[0].mxu0
  %983 = vdwg.mxu0
  %v984 = vsel %vm208, %v979, 0.0
  %985 = vadd.xlane.f32.xlu0 %v984
  %v986 = vpop.xlane.xlu0 %985
  %v987 = vmul.f32 %v979, %v979
  %v988 = vsel %vm208, %v987, 0.0
  %989 = vadd.xlane.f32.xlu0 %v988
  %v990 = vpop.xlane.xlu0 %989
  %v991 = vmul.f32 %v986, 0.03125
  %v992 = vmul.f32 %v990, 0.03125
  %v993 = vmul.f32 %v991, %v991
  %v994 = vsub.f32 %v992, %v993
  %v995 = vmax.f32 %v994, 0.0
  %v996 = vsub.f32 %v979, %v991
  %v997 = vadd.f32 %v995, 1e-05
  %v998 = vrsqrt.pop %v997
  %v999 = vmul.f32 %v996, %v998
  %v1000 = vmul.f32 %v999, %v88
  %v1001 = vadd.f32 %v1000, %v95
  %vm1002 = vcmp.gt.f32.partialorder %v1001, 0.0
  %v1003 = vmul.f32 %v1001, 0.3
  %v1004 = vsel %vm1002, %v1001, %v1003
  %v1005 = vpack.c.bf16 %v1004, %v1004
  %v1007 = vsel %vm133, %v1005, 0
  %1009 = vmatprep.subr.bf16.mxu0 0
  %1010 = vmatpush1.bf16.msra.mxu0 %v299
  %1011 = vmatprep.subr.bf16.mxu0 0
  %1012 = vmatpush1.bf16.msra.mxu0 %v300
  %1013 = vmatprep.subr.bf16.mxu0 0
  %1014 = vmatpush1.bf16.msra.mxu0 0
  %1015 = vmatprep.subr.bf16.mxu0 0
  %1016 = vmatpush1.bf16.msra.mxu0 0
  %1017 = vmatprep.subr.bf16.mxu0 0
  %1018 = vmatpush1.bf16.msra.mxu0 0
  %1019 = vmatprep.subr.bf16.mxu0 0
  %1020 = vmatpush1.bf16.msra.mxu0 0
  %1021 = vmatprep.subr.bf16.mxu0 0
  %1022 = vmatpush1.bf16.msra.mxu0 0
  %1023 = vmatprep.subr.bf16.mxu0 0
  %1024 = vmatpush1.bf16.msra.mxu0 0
  %1025 = vmatprep.subr.bf16.mxu0 0
  %1026 = vmatpush1.bf16.msra.mxu0 0
  %1027 = vmatprep.subr.bf16.mxu0 0
  %1028 = vmatpush1.bf16.msra.mxu0 0
  %1029 = vmatprep.subr.bf16.mxu0 0
  %1030 = vmatpush1.bf16.msra.mxu0 0
  %1031 = vmatprep.subr.bf16.mxu0 0
  %1032 = vmatpush1.bf16.msra.mxu0 0
  %1033 = vmatprep.subr.bf16.mxu0 0
  %1034 = vmatpush1.bf16.msra.mxu0 0
  %1035 = vmatprep.subr.bf16.mxu0 0
  %1036 = vmatpush1.bf16.msra.mxu0 0
  %1037 = vmatprep.subr.bf16.mxu0 0
  %1038 = vmatpush1.bf16.msra.mxu0 0
  %1039 = vmatprep.subr.bf16.mxu0 0
  %1040 = vmatpush1.bf16.msra.mxu0 0
  %1041 = vmatprep.mubr.bf16.mxu0 0
  %1042 = vmatmul.mubr.bf16.gmra.mrb[0].mxu0 %v1007
  %v1043 = vpop.f32.mrb[0].mxu0
  %v1044 = vadd.f32 %v102, %v1043
  %v1045 = vpop.f32.mrb[0].mxu0
  %v1046 = vpop.f32.mrb[0].mxu0
  %v1047 = vpop.f32.mrb[0].mxu0
  %1048 = vdwg.mxu0
  %v1049 = vsel %vm208, %v1044, 0.0
  %1050 = vadd.xlane.f32.xlu0 %v1049
  %v1051 = vpop.xlane.xlu0 %1050
  %v1052 = vmul.f32 %v1044, %v1044
  %v1053 = vsel %vm208, %v1052, 0.0
  %1054 = vadd.xlane.f32.xlu0 %v1053
  %v1055 = vpop.xlane.xlu0 %1054
  %v1056 = vmul.f32 %v1051, 0.03125
  %v1057 = vmul.f32 %v1055, 0.03125
  %v1058 = vmul.f32 %v1056, %v1056
  %v1059 = vsub.f32 %v1057, %v1058
  %v1060 = vmax.f32 %v1059, 0.0
  %v1061 = vsub.f32 %v1044, %v1056
  %v1062 = vadd.f32 %v1060, 1e-05
  %v1063 = vrsqrt.pop %v1062
  %v1064 = vmul.f32 %v1061, %v1063
  %v1065 = vmul.f32 %v1064, %v109
  %v1066 = vadd.f32 %v1065, %v116
  %s1067 = scalar_lea.vmem %s13, 4
  %1068 = vst.msk [vmem:[%s1067] sm:$0x3] %vm208, %v1066
  %v1069 = vsel %vm208, %v1066, -inf
  %1070 = vmax.xlane.f32.xlu0 %v1069
  %v1071 = vpop.xlane.xlu0 %1070
  %vm1072 = vcmp.ge.f32.partialorder %v1066, %v1071
  %v1073 = vsel %vm1072, %v119, 32
  %v1074 = vsel %vm208, %v1073, 2147483647
  %v1075 = vand.u32 %v1074, 65535
  %v1076 = vshra.s32 %v1074, 16
  %v1077 = vcvt.s32.f32 %v1075
  %v1078 = vcvt.s32.f32 %v1076
  %1079 = vmin.xlane.f32.xlu0 %v1078
  %v1080 = vpop.xlane.xlu0 %1079
  %vm1081 = vcmp.eq.f32.partialorder %v1078, %v1080
  %v1082 = vsel %vm1081, %v1077, inf
  %1083 = vmin.xlane.f32.xlu0 %v1082
  %v1084 = vpop.xlane.xlu0 %1083
  %v1085 = vcvt.f32.s32 %v1084
  %v1086 = vcvt.f32.s32 %v1080
  %v1087 = vshll.u32 %v1086, 16
  %v1088 = vadd.s32 %v1087, %v1085
  %vm1089 = vcmp.eq.s32.totalorder %v119, %v1088
  %v1090 = vsel %vm1089, 1, 0
  %v1091 = vcvt.s32.f32 %v1090
  %v1092 = vpack.c.bf16 %v1091, %v1091
  %v1094 = vsel %vm133, %v1091, 0
  %1096 = vmatprep.subr.mxu0 0.0
  %1097 = vmatpush1.msra.mxu0 %v57
  %1098 = vmatprep.subr.mxu0 0.0
  %1099 = vmatpush1.msra.mxu0 %v58
  %1100 = vmatprep.subr.mxu0 0.0
  %1101 = vmatpush1.msra.mxu0 %v59
  %1102 = vmatprep.subr.mxu0 0.0
  %1103 = vmatpush1.msra.mxu0 %v60
  %1104 = vmatprep.subr.mxu0 0.0
  %1105 = vmatpush1.msra.mxu0 0.0
  %1106 = vmatprep.subr.mxu0 0.0
  %1107 = vmatpush1.msra.mxu0 0.0
  %1108 = vmatprep.subr.mxu0 0.0
  %1109 = vmatpush1.msra.mxu0 0.0
  %1110 = vmatprep.subr.mxu0 0.0
  %1111 = vmatpush1.msra.mxu0 0.0
  %1112 = vmatprep.subr.mxu0 0.0
  %1113 = vmatpush1.msra.mxu0 0.0
  %1114 = vmatprep.subr.mxu0 0.0
  %1115 = vmatpush1.msra.mxu0 0.0
  %1116 = vmatprep.subr.mxu0 0.0
  %1117 = vmatpush1.msra.mxu0 0.0
  %1118 = vmatprep.subr.mxu0 0.0
  %1119 = vmatpush1.msra.mxu0 0.0
  %1120 = vmatprep.subr.mxu0 0.0
  %1121 = vmatpush1.msra.mxu0 0.0
  %1122 = vmatprep.subr.mxu0 0.0
  %1123 = vmatpush1.msra.mxu0 0.0
  %1124 = vmatprep.subr.mxu0 0.0
  %1125 = vmatpush1.msra.mxu0 0.0
  %1126 = vmatprep.subr.mxu0 0.0
  %1127 = vmatpush1.msra.mxu0 0.0
  %1128 = vmatprep.subr.mxu0 0.0
  %1129 = vmatpush1.msra.mxu0 0.0
  %1130 = vmatprep.subr.mxu0 0.0
  %1131 = vmatpush1.msra.mxu0 0.0
  %1132 = vmatprep.subr.mxu0 0.0
  %1133 = vmatpush1.msra.mxu0 0.0
  %1134 = vmatprep.subr.mxu0 0.0
  %1135 = vmatpush1.msra.mxu0 0.0
  %1136 = vmatprep.subr.mxu0 0.0
  %1137 = vmatpush1.msra.mxu0 0.0
  %1138 = vmatprep.subr.mxu0 0.0
  %1139 = vmatpush1.msra.mxu0 0.0
  %1140 = vmatprep.subr.mxu0 0.0
  %1141 = vmatpush1.msra.mxu0 0.0
  %1142 = vmatprep.subr.mxu0 0.0
  %1143 = vmatpush1.msra.mxu0 0.0
  %1144 = vmatprep.subr.mxu0 0.0
  %1145 = vmatpush1.msra.mxu0 0.0
  %1146 = vmatprep.subr.mxu0 0.0
  %1147 = vmatpush1.msra.mxu0 0.0
  %1148 = vmatprep.subr.mxu0 0.0
  %1149 = vmatpush1.msra.mxu0 0.0
  %1150 = vmatprep.subr.mxu0 0.0
  %1151 = vmatpush1.msra.mxu0 0.0
  %1152 = vmatprep.subr.mxu0 0.0
  %1153 = vmatpush1.msra.mxu0 0.0
  %1154 = vmatprep.subr.mxu0 0.0
  %1155 = vmatpush1.msra.mxu0 0.0
  %1156 = vmatprep.subr.mxu0 0.0
  %1157 = vmatpush1.msra.mxu0 0.0
  %1158 = vmatprep.subr.mxu0 0.0
  %1159 = vmatpush1.msra.mxu0 0.0
  %1160 = vmatprep.mubr.f32.mxu0 0.0
  %1161 = vmatmul.mubr.f32.gmra.mrb[0].mxu0 %v1094
  %v1162 = vpop.f32.mrb[0].mxu0
  %v1163 = vadd.f32 0.0, %v1162
  %v1164 = vpop.f32.mrb[0].mxu0
  %1165 = vdwg.mxu0
  %s1166 = scalar_lea.vmem %s15, 4
  %1167 = vst.msk [vmem:[%s1166] sm:$0x3] %vm462, %v1163
  %1168 = vmatprep.subr.bf16.mxu0 0
  %1169 = vmatpush1.bf16.msra.mxu0 %v129
  %1170 = vmatprep.subr.bf16.mxu0 0
  %1171 = vmatpush1.bf16.msra.mxu0 %v130
  %1172 = vmatprep.subr.bf16.mxu0 0
  %1173 = vmatpush1.bf16.msra.mxu0 0
  %1174 = vmatprep.subr.bf16.mxu0 0
  %1175 = vmatpush1.bf16.msra.mxu0 0
  %1176 = vmatprep.subr.bf16.mxu0 0
  %1177 = vmatpush1.bf16.msra.mxu0 0
  %1178 = vmatprep.subr.bf16.mxu0 0
  %1179 = vmatpush1.bf16.msra.mxu0 0
  %1180 = vmatprep.subr.bf16.mxu0 0
  %1181 = vmatpush1.bf16.msra.mxu0 0
  %1182 = vmatprep.subr.bf16.mxu0 0
  %1183 = vmatpush1.bf16.msra.mxu0 0
  %1184 = vmatprep.subr.bf16.mxu0 0
  %1185 = vmatpush1.bf16.msra.mxu0 0
  %1186 = vmatprep.subr.bf16.mxu0 0
  %1187 = vmatpush1.bf16.msra.mxu0 0
  %1188 = vmatprep.subr.bf16.mxu0 0
  %1189 = vmatpush1.bf16.msra.mxu0 0
  %1190 = vmatprep.subr.bf16.mxu0 0
  %1191 = vmatpush1.bf16.msra.mxu0 0
  %1192 = vmatprep.subr.bf16.mxu0 0
  %1193 = vmatpush1.bf16.msra.mxu0 0
  %1194 = vmatprep.subr.bf16.mxu0 0
  %1195 = vmatpush1.bf16.msra.mxu0 0
  %1196 = vmatprep.subr.bf16.mxu0 0
  %1197 = vmatpush1.bf16.msra.mxu0 0
  %1198 = vmatprep.subr.bf16.mxu0 0
  %1199 = vmatpush1.bf16.msra.mxu0 0
  %1200 = vmatprep.mubr.bf16.mxu0 0
  %1201 = vmatmul.mubr.bf16.gmra.mrb[0].mxu0 %v942
  %v1202 = vpop.f32.mrb[0].mxu0
  %v1203 = vadd.f32 0.0, %v1202
  %v1204 = vpop.f32.mrb[0].mxu0
  %v1205 = vpop.f32.mrb[0].mxu0
  %v1206 = vpop.f32.mrb[0].mxu0
  %1207 = vdwg.mxu0
  %v1209 = vsel %vm133, %v1092, 0
  %1211 = vmatprep.subr.bf16.mxu0 0
  %1212 = vmatpush1.bf16.msra.mxu0 %v512
  %1213 = vmatprep.subr.bf16.mxu0 0
  %1214 = vmatpush1.bf16.msra.mxu0 %v513
  %1215 = vmatprep.subr.bf16.mxu0 0
  %1216 = vmatpush1.bf16.msra.mxu0 0
  %1217 = vmatprep.subr.bf16.mxu0 0
  %1218 = vmatpush1.bf16.msra.mxu0 0
  %1219 = vmatprep.subr.bf16.mxu0 0
  %1220 = vmatpush1.bf16.msra.mxu0 0
  %1221 = vmatprep.subr.bf16.mxu0 0
  %1222 = vmatpush1.bf16.msra.mxu0 0
  %1223 = vmatprep.subr.bf16.mxu0 0
  %1224 = vmatpush1.bf16.msra.mxu0 0
  %1225 = vmatprep.subr.bf16.mxu0 0
  %1226 = vmatpush1.bf16.msra.mxu0 0
  %1227 = vmatprep.subr.bf16.mxu0 0
  %1228 = vmatpush1.bf16.msra.mxu0 0
  %1229 = vmatprep.subr.bf16.mxu0 0
  %1230 = vmatpush1.bf16.msra.mxu0 0
  %1231 = vmatprep.subr.bf16.mxu0 0
  %1232 = vmatpush1.bf16.msra.mxu0 0
  %1233 = vmatprep.subr.bf16.mxu0 0
  %1234 = vmatpush1.bf16.msra.mxu0 0
  %1235 = vmatprep.subr.bf16.mxu0 0
  %1236 = vmatpush1.bf16.msra.mxu0 0
  %1237 = vmatprep.subr.bf16.mxu0 0
  %1238 = vmatpush1.bf16.msra.mxu0 0
  %1239 = vmatprep.subr.bf16.mxu0 0
  %1240 = vmatpush1.bf16.msra.mxu0 0
  %1241 = vmatprep.subr.bf16.mxu0 0
  %1242 = vmatpush1.bf16.msra.mxu0 0
  %1243 = vmatprep.mubr.bf16.mxu0 0
  %1244 = vmatmul.mubr.bf16.gmra.mrb[0].mxu0 %v1209
  %v1245 = vpop.f32.mrb[0].mxu0
  %v1246 = vadd.f32 %v1203, %v1245
  %v1247 = vpop.f32.mrb[0].mxu0
  %v1248 = vpop.f32.mrb[0].mxu0
  %v1249 = vpop.f32.mrb[0].mxu0
  %1250 = vdwg.mxu0
  %v1251 = vadd.f32 %v1246, %v74
  %v1252 = vxor.u32 %v1251, 2147483648
  %v1253 = vmul.f32 %v1252, 1.442695
  %v1254 = vpow.pop %v1253
  %v1255 = vadd.f32 %v1254, 1.0
  %v1256 = vrcp.pop %v1255
  %v1257 = vmul.f32 1.0, %v1256
  %v1258 = vmul.f32 %v1257, 2.0
  %v1259 = vsub.f32 %v1258, 1.0
  %v1260 = vmul.f32 %v1257, %v924
  %1262 = vrot.lane.b32.xlu0 %v1259, 64
  %v1263 = vpop.permute.xlu0 %1262
  %v1265 = vmul.f32 %v1257, %v1263
  %1267 = vrot.lane.b32.xlu0 %v1265, 32
  %v1268 = vpop.permute.xlu0 %1267
  %v1270 = vadd.f32 %v1260, %v1268
  %v1271 = vtanh.pop %v1270
  %1273 = vrot.lane.b32.xlu0 %v1271, 64
  %v1274 = vpop.permute.xlu0 %1273
  %v1276 = vmul.f32 %v1257, %v1274
  %1278 = vrot.lane.b32.xlu0 %v1276, 32
  %v1279 = vpop.permute.xlu0 %1278
  %s1281 = scalar_lea.vmem %s14, 6
  %1282 = vst.msk [vmem:[%s1281] sm:$0x3] %vm208, %v1279
  %v1283 = vpack.c.bf16 %v1276, %v1276
  %1285 = vrot.lane.b32.xlu0 %v1283, 32
  %v1286 = vpop.permute.xlu0 %1285
  %v1288 = vsel %vm133, %v1286, 0
  %1290 = vmatprep.subr.bf16.mxu0 0
  %1291 = vmatpush1.bf16.msra.mxu0 %v222
  %1292 = vmatprep.subr.bf16.mxu0 0
  %1293 = vmatpush1.bf16.msra.mxu0 %v223
  %1294 = vmatprep.subr.bf16.mxu0 0
  %1295 = vmatpush1.bf16.msra.mxu0 0
  %1296 = vmatprep.subr.bf16.mxu0 0
  %1297 = vmatpush1.bf16.msra.mxu0 0
  %1298 = vmatprep.subr.bf16.mxu0 0
  %1299 = vmatpush1.bf16.msra.mxu0 0
  %1300 = vmatprep.subr.bf16.mxu0 0
  %1301 = vmatpush1.bf16.msra.mxu0 0
  %1302 = vmatprep.subr.bf16.mxu0 0
  %1303 = vmatpush1.bf16.msra.mxu0 0
  %1304 = vmatprep.subr.bf16.mxu0 0
  %1305 = vmatpush1.bf16.msra.mxu0 0
  %1306 = vmatprep.subr.bf16.mxu0 0
  %1307 = vmatpush1.bf16.msra.mxu0 0
  %1308 = vmatprep.subr.bf16.mxu0 0
  %1309 = vmatpush1.bf16.msra.mxu0 0
  %1310 = vmatprep.subr.bf16.mxu0 0
  %1311 = vmatpush1.bf16.msra.mxu0 0
  %1312 = vmatprep.subr.bf16.mxu0 0
  %1313 = vmatpush1.bf16.msra.mxu0 0
  %1314 = vmatprep.subr.bf16.mxu0 0
  %1315 = vmatpush1.bf16.msra.mxu0 0
  %1316 = vmatprep.subr.bf16.mxu0 0
  %1317 = vmatpush1.bf16.msra.mxu0 0
  %1318 = vmatprep.subr.bf16.mxu0 0
  %1319 = vmatpush1.bf16.msra.mxu0 0
  %1320 = vmatprep.subr.bf16.mxu0 0
  %1321 = vmatpush1.bf16.msra.mxu0 0
  %1322 = vmatprep.mubr.bf16.mxu0 0
  %1323 = vmatmul.mubr.bf16.gmra.mrb[0].mxu0 %v1288
  %v1324 = vpop.f32.mrb[0].mxu0
  %v1325 = vadd.f32 %v81, %v1324
  %v1326 = vpop.f32.mrb[0].mxu0
  %v1327 = vpop.f32.mrb[0].mxu0
  %v1328 = vpop.f32.mrb[0].mxu0
  %1329 = vdwg.mxu0
  %v1330 = vsel %vm208, %v1325, 0.0
  %1331 = vadd.xlane.f32.xlu0 %v1330
  %v1332 = vpop.xlane.xlu0 %1331
  %v1333 = vmul.f32 %v1325, %v1325
  %v1334 = vsel %vm208, %v1333, 0.0
  %1335 = vadd.xlane.f32.xlu0 %v1334
  %v1336 = vpop.xlane.xlu0 %1335
  %v1337 = vmul.f32 %v1332, 0.03125
  %v1338 = vmul.f32 %v1336, 0.03125
  %v1339 = vmul.f32 %v1337, %v1337
  %v1340 = vsub.f32 %v1338, %v1339
  %v1341 = vmax.f32 %v1340, 0.0
  %v1342 = vsub.f32 %v1325, %v1337
  %v1343 = vadd.f32 %v1341, 1e-05
  %v1344 = vrsqrt.pop %v1343
  %v1345 = vmul.f32 %v1342, %v1344
  %v1346 = vmul.f32 %v1345, %v88
  %v1347 = vadd.f32 %v1346, %v95
  %vm1348 = vcmp.gt.f32.partialorder %v1347, 0.0
  %v1349 = vmul.f32 %v1347, 0.3
  %v1350 = vsel %vm1348, %v1347, %v1349
  %v1351 = vpack.c.bf16 %v1350, %v1350
  %v1353 = vsel %vm133, %v1351, 0
  %1355 = vmatprep.subr.bf16.mxu0 0
  %1356 = vmatpush1.bf16.msra.mxu0 %v299
  %1357 = vmatprep.subr.bf16.mxu0 0
  %1358 = vmatpush1.bf16.msra.mxu0 %v300
  %1359 = vmatprep.subr.bf16.mxu0 0
  %1360 = vmatpush1.bf16.msra.mxu0 0
  %1361 = vmatprep.subr.bf16.mxu0 0
  %1362 = vmatpush1.bf16.msra.mxu0 0
  %1363 = vmatprep.subr.bf16.mxu0 0
  %1364 = vmatpush1.bf16.msra.mxu0 0
  %1365 = vmatprep.subr.bf16.mxu0 0
  %1366 = vmatpush1.bf16.msra.mxu0 0
  %1367 = vmatprep.subr.bf16.mxu0 0
  %1368 = vmatpush1.bf16.msra.mxu0 0
  %1369 = vmatprep.subr.bf16.mxu0 0
  %1370 = vmatpush1.bf16.msra.mxu0 0
  %1371 = vmatprep.subr.bf16.mxu0 0
  %1372 = vmatpush1.bf16.msra.mxu0 0
  %1373 = vmatprep.subr.bf16.mxu0 0
  %1374 = vmatpush1.bf16.msra.mxu0 0
  %1375 = vmatprep.subr.bf16.mxu0 0
  %1376 = vmatpush1.bf16.msra.mxu0 0
  %1377 = vmatprep.subr.bf16.mxu0 0
  %1378 = vmatpush1.bf16.msra.mxu0 0
  %1379 = vmatprep.subr.bf16.mxu0 0
  %1380 = vmatpush1.bf16.msra.mxu0 0
  %1381 = vmatprep.subr.bf16.mxu0 0
  %1382 = vmatpush1.bf16.msra.mxu0 0
  %1383 = vmatprep.subr.bf16.mxu0 0
  %1384 = vmatpush1.bf16.msra.mxu0 0
  %1385 = vmatprep.subr.bf16.mxu0 0
  %1386 = vmatpush1.bf16.msra.mxu0 0
  %1387 = vmatprep.mubr.bf16.mxu0 0
  %1388 = vmatmul.mubr.bf16.gmra.mrb[0].mxu0 %v1353
  %v1389 = vpop.f32.mrb[0].mxu0
  %v1390 = vadd.f32 %v102, %v1389
  %v1391 = vpop.f32.mrb[0].mxu0
  %v1392 = vpop.f32.mrb[0].mxu0
  %v1393 = vpop.f32.mrb[0].mxu0
  %1394 = vdwg.mxu0
  %v1395 = vsel %vm208, %v1390, 0.0
  %1396 = vadd.xlane.f32.xlu0 %v1395
  %v1397 = vpop.xlane.xlu0 %1396
  %v1398 = vmul.f32 %v1390, %v1390
  %v1399 = vsel %vm208, %v1398, 0.0
  %1400 = vadd.xlane.f32.xlu0 %v1399
  %v1401 = vpop.xlane.xlu0 %1400
  %v1402 = vmul.f32 %v1397, 0.03125
  %v1403 = vmul.f32 %v1401, 0.03125
  %v1404 = vmul.f32 %v1402, %v1402
  %v1405 = vsub.f32 %v1403, %v1404
  %v1406 = vmax.f32 %v1405, 0.0
  %v1407 = vsub.f32 %v1390, %v1402
  %v1408 = vadd.f32 %v1406, 1e-05
  %v1409 = vrsqrt.pop %v1408
  %v1410 = vmul.f32 %v1407, %v1409
  %v1411 = vmul.f32 %v1410, %v109
  %v1412 = vadd.f32 %v1411, %v116
  %s1413 = scalar_lea.vmem %s13, 6
  %1414 = vst.msk [vmem:[%s1413] sm:$0x3] %vm208, %v1412
  %v1415 = vsel %vm208, %v1412, -inf
  %1416 = vmax.xlane.f32.xlu0 %v1415
  %v1417 = vpop.xlane.xlu0 %1416
  %vm1418 = vcmp.ge.f32.partialorder %v1412, %v1417
  %v1419 = vsel %vm1418, %v119, 32
  %v1420 = vsel %vm208, %v1419, 2147483647
  %v1421 = vand.u32 %v1420, 65535
  %v1422 = vshra.s32 %v1420, 16
  %v1423 = vcvt.s32.f32 %v1421
  %v1424 = vcvt.s32.f32 %v1422
  %1425 = vmin.xlane.f32.xlu0 %v1424
  %v1426 = vpop.xlane.xlu0 %1425
  %vm1427 = vcmp.eq.f32.partialorder %v1424, %v1426
  %v1428 = vsel %vm1427, %v1423, inf
  %1429 = vmin.xlane.f32.xlu0 %v1428
  %v1430 = vpop.xlane.xlu0 %1429
  %v1431 = vcvt.f32.s32 %v1430
  %v1432 = vcvt.f32.s32 %v1426
  %v1433 = vshll.u32 %v1432, 16
  %v1434 = vadd.s32 %v1433, %v1431
  %vm1435 = vcmp.eq.s32.totalorder %v119, %v1434
  %v1436 = vsel %vm1435, 1, 0
  %v1437 = vcvt.s32.f32 %v1436
  %v1438 = vpack.c.bf16 %v1437, %v1437
  %v1440 = vsel %vm133, %v1437, 0
  %1442 = vmatprep.subr.mxu0 0.0
  %1443 = vmatpush1.msra.mxu0 %v57
  %1444 = vmatprep.subr.mxu0 0.0
  %1445 = vmatpush1.msra.mxu0 %v58
  %1446 = vmatprep.subr.mxu0 0.0
  %1447 = vmatpush1.msra.mxu0 %v59
  %1448 = vmatprep.subr.mxu0 0.0
  %1449 = vmatpush1.msra.mxu0 %v60
  %1450 = vmatprep.subr.mxu0 0.0
  %1451 = vmatpush1.msra.mxu0 0.0
  %1452 = vmatprep.subr.mxu0 0.0
  %1453 = vmatpush1.msra.mxu0 0.0
  %1454 = vmatprep.subr.mxu0 0.0
  %1455 = vmatpush1.msra.mxu0 0.0
  %1456 = vmatprep.subr.mxu0 0.0
  %1457 = vmatpush1.msra.mxu0 0.0
  %1458 = vmatprep.subr.mxu0 0.0
  %1459 = vmatpush1.msra.mxu0 0.0
  %1460 = vmatprep.subr.mxu0 0.0
  %1461 = vmatpush1.msra.mxu0 0.0
  %1462 = vmatprep.subr.mxu0 0.0
  %1463 = vmatpush1.msra.mxu0 0.0
  %1464 = vmatprep.subr.mxu0 0.0
  %1465 = vmatpush1.msra.mxu0 0.0
  %1466 = vmatprep.subr.mxu0 0.0
  %1467 = vmatpush1.msra.mxu0 0.0
  %1468 = vmatprep.subr.mxu0 0.0
  %1469 = vmatpush1.msra.mxu0 0.0
  %1470 = vmatprep.subr.mxu0 0.0
  %1471 = vmatpush1.msra.mxu0 0.0
  %1472 = vmatprep.subr.mxu0 0.0
  %1473 = vmatpush1.msra.mxu0 0.0
  %1474 = vmatprep.subr.mxu0 0.0
  %1475 = vmatpush1.msra.mxu0 0.0
  %1476 = vmatprep.subr.mxu0 0.0
  %1477 = vmatpush1.msra.mxu0 0.0
  %1478 = vmatprep.subr.mxu0 0.0
  %1479 = vmatpush1.msra.mxu0 0.0
  %1480 = vmatprep.subr.mxu0 0.0
  %1481 = vmatpush1.msra.mxu0 0.0
  %1482 = vmatprep.subr.mxu0 0.0
  %1483 = vmatpush1.msra.mxu0 0.0
  %1484 = vmatprep.subr.mxu0 0.0
  %1485 = vmatpush1.msra.mxu0 0.0
  %1486 = vmatprep.subr.mxu0 0.0
  %1487 = vmatpush1.msra.mxu0 0.0
  %1488 = vmatprep.subr.mxu0 0.0
  %1489 = vmatpush1.msra.mxu0 0.0
  %1490 = vmatprep.subr.mxu0 0.0
  %1491 = vmatpush1.msra.mxu0 0.0
  %1492 = vmatprep.subr.mxu0 0.0
  %1493 = vmatpush1.msra.mxu0 0.0
  %1494 = vmatprep.subr.mxu0 0.0
  %1495 = vmatpush1.msra.mxu0 0.0
  %1496 = vmatprep.subr.mxu0 0.0
  %1497 = vmatpush1.msra.mxu0 0.0
  %1498 = vmatprep.subr.mxu0 0.0
  %1499 = vmatpush1.msra.mxu0 0.0
  %1500 = vmatprep.subr.mxu0 0.0
  %1501 = vmatpush1.msra.mxu0 0.0
  %1502 = vmatprep.subr.mxu0 0.0
  %1503 = vmatpush1.msra.mxu0 0.0
  %1504 = vmatprep.subr.mxu0 0.0
  %1505 = vmatpush1.msra.mxu0 0.0
  %1506 = vmatprep.mubr.f32.mxu0 0.0
  %1507 = vmatmul.mubr.f32.gmra.mrb[0].mxu0 %v1440
  %v1508 = vpop.f32.mrb[0].mxu0
  %v1509 = vadd.f32 0.0, %v1508
  %v1510 = vpop.f32.mrb[0].mxu0
  %1511 = vdwg.mxu0
  %s1512 = scalar_lea.vmem %s15, 6
  %1513 = vst.msk [vmem:[%s1512] sm:$0x3] %vm462, %v1509
  %1514 = vmatprep.subr.bf16.mxu0 0
  %1515 = vmatpush1.bf16.msra.mxu0 %v129
  %1516 = vmatprep.subr.bf16.mxu0 0
  %1517 = vmatpush1.bf16.msra.mxu0 %v130
  %1518 = vmatprep.subr.bf16.mxu0 0
  %1519 = vmatpush1.bf16.msra.mxu0 0
  %1520 = vmatprep.subr.bf16.mxu0 0
  %1521 = vmatpush1.bf16.msra.mxu0 0
  %1522 = vmatprep.subr.bf16.mxu0 0
  %1523 = vmatpush1.bf16.msra.mxu0 0
  %1524 = vmatprep.subr.bf16.mxu0 0
  %1525 = vmatpush1.bf16.msra.mxu0 0
  %1526 = vmatprep.subr.bf16.mxu0 0
  %1527 = vmatpush1.bf16.msra.mxu0 0
  %1528 = vmatprep.subr.bf16.mxu0 0
  %1529 = vmatpush1.bf16.msra.mxu0 0
  %1530 = vmatprep.subr.bf16.mxu0 0
  %1531 = vmatpush1.bf16.msra.mxu0 0
  %1532 = vmatprep.subr.bf16.mxu0 0
  %1533 = vmatpush1.bf16.msra.mxu0 0
  %1534 = vmatprep.subr.bf16.mxu0 0
  %1535 = vmatpush1.bf16.msra.mxu0 0
  %1536 = vmatprep.subr.bf16.mxu0 0
  %1537 = vmatpush1.bf16.msra.mxu0 0
  %1538 = vmatprep.subr.bf16.mxu0 0
  %1539 = vmatpush1.bf16.msra.mxu0 0
  %1540 = vmatprep.subr.bf16.mxu0 0
  %1541 = vmatpush1.bf16.msra.mxu0 0
  %1542 = vmatprep.subr.bf16.mxu0 0
  %1543 = vmatpush1.bf16.msra.mxu0 0
  %1544 = vmatprep.subr.bf16.mxu0 0
  %1545 = vmatpush1.bf16.msra.mxu0 0
  %1546 = vmatprep.mubr.bf16.mxu0 0
  %1547 = vmatmul.mubr.bf16.gmra.mrb[0].mxu0 %v1288
  %v1548 = vpop.f32.mrb[0].mxu0
  %v1549 = vadd.f32 0.0, %v1548
  %v1550 = vpop.f32.mrb[0].mxu0
  %v1551 = vpop.f32.mrb[0].mxu0
  %v1552 = vpop.f32.mrb[0].mxu0
  %1553 = vdwg.mxu0
  %v1555 = vsel %vm133, %v1438, 0
  %1557 = vmatprep.subr.bf16.mxu0 0
  %1558 = vmatpush1.bf16.msra.mxu0 %v512
  %1559 = vmatprep.subr.bf16.mxu0 0
  %1560 = vmatpush1.bf16.msra.mxu0 %v513
  %1561 = vmatprep.subr.bf16.mxu0 0
  %1562 = vmatpush1.bf16.msra.mxu0 0
  %1563 = vmatprep.subr.bf16.mxu0 0
  %1564 = vmatpush1.bf16.msra.mxu0 0
  %1565 = vmatprep.subr.bf16.mxu0 0
  %1566 = vmatpush1.bf16.msra.mxu0 0
  %1567 = vmatprep.subr.bf16.mxu0 0
  %1568 = vmatpush1.bf16.msra.mxu0 0
  %1569 = vmatprep.subr.bf16.mxu0 0
  %1570 = vmatpush1.bf16.msra.mxu0 0
  %1571 = vmatprep.subr.bf16.mxu0 0
  %1572 = vmatpush1.bf16.msra.mxu0 0
  %1573 = vmatprep.subr.bf16.mxu0 0
  %1574 = vmatpush1.bf16.msra.mxu0 0
  %1575 = vmatprep.subr.bf16.mxu0 0
  %1576 = vmatpush1.bf16.msra.mxu0 0
  %1577 = vmatprep.subr.bf16.mxu0 0
  %1578 = vmatpush1.bf16.msra.mxu0 0
  %1579 = vmatprep.subr.bf16.mxu0 0
  %1580 = vmatpush1.bf16.msra.mxu0 0
  %1581 = vmatprep.subr.bf16.mxu0 0
  %1582 = vmatpush1.bf16.msra.mxu0 0
  %1583 = vmatprep.subr.bf16.mxu0 0
  %1584 = vmatpush1.bf16.msra.mxu0 0
  %1585 = vmatprep.subr.bf16.mxu0 0
  %1586 = vmatpush1.bf16.msra.mxu0 0
  %1587 = vmatprep.subr.bf16.mxu0 0
  %1588 = vmatpush1.bf16.msra.mxu0 0
  %1589 = vmatprep.mubr.bf16.mxu0 0
  %1590 = vmatmul.mubr.bf16.gmra.mrb[0].mxu0 %v1555
  %v1591 = vpop.f32.mrb[0].mxu0
  %v1592 = vadd.f32 %v1549, %v1591
  %v1593 = vpop.f32.mrb[0].mxu0
  %v1594 = vpop.f32.mrb[0].mxu0
  %v1595 = vpop.f32.mrb[0].mxu0
  %1596 = vdwg.mxu0
  %v1597 = vadd.f32 %v1592, %v74
  %v1598 = vxor.u32 %v1597, 2147483648
  %v1599 = vmul.f32 %v1598, 1.442695
  %v1600 = vpow.pop %v1599
  %v1601 = vadd.f32 %v1600, 1.0
  %v1602 = vrcp.pop %v1601
  %v1603 = vmul.f32 1.0, %v1602
  %v1604 = vmul.f32 %v1603, 2.0
  %v1605 = vsub.f32 %v1604, 1.0
  %v1606 = vmul.f32 %v1603, %v1270
  %1608 = vrot.lane.b32.xlu0 %v1605, 64
  %v1609 = vpop.permute.xlu0 %1608
  %v1611 = vmul.f32 %v1603, %v1609
  %1613 = vrot.lane.b32.xlu0 %v1611, 32
  %v1614 = vpop.permute.xlu0 %1613
  %v1616 = vadd.f32 %v1606, %v1614
  %v1617 = vtanh.pop %v1616
  %1619 = vrot.lane.b32.xlu0 %v1617, 64
  %v1620 = vpop.permute.xlu0 %1619
  %v1622 = vmul.f32 %v1603, %v1620
  %1624 = vrot.lane.b32.xlu0 %v1622, 32
  %v1625 = vpop.permute.xlu0 %1624
  %s1627 = scalar_lea.vmem %s14, 8
  %1628 = vst.msk [vmem:[%s1627] sm:$0x3] %vm208, %v1625
  %v1629 = vpack.c.bf16 %v1622, %v1622
  %1631 = vrot.lane.b32.xlu0 %v1629, 32
  %v1632 = vpop.permute.xlu0 %1631
  %v1634 = vsel %vm133, %v1632, 0
  %1636 = vmatprep.subr.bf16.mxu0 0
  %1637 = vmatpush1.bf16.msra.mxu0 %v222
  %1638 = vmatprep.subr.bf16.mxu0 0
  %1639 = vmatpush1.bf16.msra.mxu0 %v223
  %1640 = vmatprep.subr.bf16.mxu0 0
  %1641 = vmatpush1.bf16.msra.mxu0 0
  %1642 = vmatprep.subr.bf16.mxu0 0
  %1643 = vmatpush1.bf16.msra.mxu0 0
  %1644 = vmatprep.subr.bf16.mxu0 0
  %1645 = vmatpush1.bf16.msra.mxu0 0
  %1646 = vmatprep.subr.bf16.mxu0 0
  %1647 = vmatpush1.bf16.msra.mxu0 0
  %1648 = vmatprep.subr.bf16.mxu0 0
  %1649 = vmatpush1.bf16.msra.mxu0 0
  %1650 = vmatprep.subr.bf16.mxu0 0
  %1651 = vmatpush1.bf16.msra.mxu0 0
  %1652 = vmatprep.subr.bf16.mxu0 0
  %1653 = vmatpush1.bf16.msra.mxu0 0
  %1654 = vmatprep.subr.bf16.mxu0 0
  %1655 = vmatpush1.bf16.msra.mxu0 0
  %1656 = vmatprep.subr.bf16.mxu0 0
  %1657 = vmatpush1.bf16.msra.mxu0 0
  %1658 = vmatprep.subr.bf16.mxu0 0
  %1659 = vmatpush1.bf16.msra.mxu0 0
  %1660 = vmatprep.subr.bf16.mxu0 0
  %1661 = vmatpush1.bf16.msra.mxu0 0
  %1662 = vmatprep.subr.bf16.mxu0 0
  %1663 = vmatpush1.bf16.msra.mxu0 0
  %1664 = vmatprep.subr.bf16.mxu0 0
  %1665 = vmatpush1.bf16.msra.mxu0 0
  %1666 = vmatprep.subr.bf16.mxu0 0
  %1667 = vmatpush1.bf16.msra.mxu0 0
  %1668 = vmatprep.mubr.bf16.mxu0 0
  %1669 = vmatmul.mubr.bf16.gmra.mrb[0].mxu0 %v1634
  %v1670 = vpop.f32.mrb[0].mxu0
  %v1671 = vadd.f32 %v81, %v1670
  %v1672 = vpop.f32.mrb[0].mxu0
  %v1673 = vpop.f32.mrb[0].mxu0
  %v1674 = vpop.f32.mrb[0].mxu0
  %1675 = vdwg.mxu0
  %v1676 = vsel %vm208, %v1671, 0.0
  %1677 = vadd.xlane.f32.xlu0 %v1676
  %v1678 = vpop.xlane.xlu0 %1677
  %v1679 = vmul.f32 %v1671, %v1671
  %v1680 = vsel %vm208, %v1679, 0.0
  %1681 = vadd.xlane.f32.xlu0 %v1680
  %v1682 = vpop.xlane.xlu0 %1681
  %v1683 = vmul.f32 %v1678, 0.03125
  %v1684 = vmul.f32 %v1682, 0.03125
  %v1685 = vmul.f32 %v1683, %v1683
  %v1686 = vsub.f32 %v1684, %v1685
  %v1687 = vmax.f32 %v1686, 0.0
  %v1688 = vsub.f32 %v1671, %v1683
  %v1689 = vadd.f32 %v1687, 1e-05
  %v1690 = vrsqrt.pop %v1689
  %v1691 = vmul.f32 %v1688, %v1690
  %v1692 = vmul.f32 %v1691, %v88
  %v1693 = vadd.f32 %v1692, %v95
  %vm1694 = vcmp.gt.f32.partialorder %v1693, 0.0
  %v1695 = vmul.f32 %v1693, 0.3
  %v1696 = vsel %vm1694, %v1693, %v1695
  %v1697 = vpack.c.bf16 %v1696, %v1696
  %v1699 = vsel %vm133, %v1697, 0
  %1701 = vmatprep.subr.bf16.mxu0 0
  %1702 = vmatpush1.bf16.msra.mxu0 %v299
  %1703 = vmatprep.subr.bf16.mxu0 0
  %1704 = vmatpush1.bf16.msra.mxu0 %v300
  %1705 = vmatprep.subr.bf16.mxu0 0
  %1706 = vmatpush1.bf16.msra.mxu0 0
  %1707 = vmatprep.subr.bf16.mxu0 0
  %1708 = vmatpush1.bf16.msra.mxu0 0
  %1709 = vmatprep.subr.bf16.mxu0 0
  %1710 = vmatpush1.bf16.msra.mxu0 0
  %1711 = vmatprep.subr.bf16.mxu0 0
  %1712 = vmatpush1.bf16.msra.mxu0 0
  %1713 = vmatprep.subr.bf16.mxu0 0
  %1714 = vmatpush1.bf16.msra.mxu0 0
  %1715 = vmatprep.subr.bf16.mxu0 0
  %1716 = vmatpush1.bf16.msra.mxu0 0
  %1717 = vmatprep.subr.bf16.mxu0 0
  %1718 = vmatpush1.bf16.msra.mxu0 0
  %1719 = vmatprep.subr.bf16.mxu0 0
  %1720 = vmatpush1.bf16.msra.mxu0 0
  %1721 = vmatprep.subr.bf16.mxu0 0
  %1722 = vmatpush1.bf16.msra.mxu0 0
  %1723 = vmatprep.subr.bf16.mxu0 0
  %1724 = vmatpush1.bf16.msra.mxu0 0
  %1725 = vmatprep.subr.bf16.mxu0 0
  %1726 = vmatpush1.bf16.msra.mxu0 0
  %1727 = vmatprep.subr.bf16.mxu0 0
  %1728 = vmatpush1.bf16.msra.mxu0 0
  %1729 = vmatprep.subr.bf16.mxu0 0
  %1730 = vmatpush1.bf16.msra.mxu0 0
  %1731 = vmatprep.subr.bf16.mxu0 0
  %1732 = vmatpush1.bf16.msra.mxu0 0
  %1733 = vmatprep.mubr.bf16.mxu0 0
  %1734 = vmatmul.mubr.bf16.gmra.mrb[0].mxu0 %v1699
  %v1735 = vpop.f32.mrb[0].mxu0
  %v1736 = vadd.f32 %v102, %v1735
  %v1737 = vpop.f32.mrb[0].mxu0
  %v1738 = vpop.f32.mrb[0].mxu0
  %v1739 = vpop.f32.mrb[0].mxu0
  %1740 = vdwg.mxu0
  %v1741 = vsel %vm208, %v1736, 0.0
  %1742 = vadd.xlane.f32.xlu0 %v1741
  %v1743 = vpop.xlane.xlu0 %1742
  %v1744 = vmul.f32 %v1736, %v1736
  %v1745 = vsel %vm208, %v1744, 0.0
  %1746 = vadd.xlane.f32.xlu0 %v1745
  %v1747 = vpop.xlane.xlu0 %1746
  %v1748 = vmul.f32 %v1743, 0.03125
  %v1749 = vmul.f32 %v1747, 0.03125
  %v1750 = vmul.f32 %v1748, %v1748
  %v1751 = vsub.f32 %v1749, %v1750
  %v1752 = vmax.f32 %v1751, 0.0
  %v1753 = vsub.f32 %v1736, %v1748
  %v1754 = vadd.f32 %v1752, 1e-05
  %v1755 = vrsqrt.pop %v1754
  %v1756 = vmul.f32 %v1753, %v1755
  %v1757 = vmul.f32 %v1756, %v109
  %v1758 = vadd.f32 %v1757, %v116
  %s1759 = scalar_lea.vmem %s13, 8
  %1760 = vst.msk [vmem:[%s1759] sm:$0x3] %vm208, %v1758
  %v1761 = vsel %vm208, %v1758, -inf
  %1762 = vmax.xlane.f32.xlu0 %v1761
  %v1763 = vpop.xlane.xlu0 %1762
  %vm1764 = vcmp.ge.f32.partialorder %v1758, %v1763
  %v1765 = vsel %vm1764, %v119, 32
  %v1766 = vsel %vm208, %v1765, 2147483647
  %v1767 = vand.u32 %v1766, 65535
  %v1768 = vshra.s32 %v1766, 16
  %v1769 = vcvt.s32.f32 %v1767
  %v1770 = vcvt.s32.f32 %v1768
  %1771 = vmin.xlane.f32.xlu0 %v1770
  %v1772 = vpop.xlane.xlu0 %1771
  %vm1773 = vcmp.eq.f32.partialorder %v1770, %v1772
  %v1774 = vsel %vm1773, %v1769, inf
  %1775 = vmin.xlane.f32.xlu0 %v1774
  %v1776 = vpop.xlane.xlu0 %1775
  %v1777 = vcvt.f32.s32 %v1776
  %v1778 = vcvt.f32.s32 %v1772
  %v1779 = vshll.u32 %v1778, 16
  %v1780 = vadd.s32 %v1779, %v1777
  %vm1781 = vcmp.eq.s32.totalorder %v119, %v1780
  %v1782 = vsel %vm1781, 1, 0
  %v1783 = vcvt.s32.f32 %v1782
  %v1784 = vpack.c.bf16 %v1783, %v1783
  %v1786 = vsel %vm133, %v1783, 0
  %1788 = vmatprep.subr.mxu0 0.0
  %1789 = vmatpush1.msra.mxu0 %v57
  %1790 = vmatprep.subr.mxu0 0.0
  %1791 = vmatpush1.msra.mxu0 %v58
  %1792 = vmatprep.subr.mxu0 0.0
  %1793 = vmatpush1.msra.mxu0 %v59
  %1794 = vmatprep.subr.mxu0 0.0
  %1795 = vmatpush1.msra.mxu0 %v60
  %1796 = vmatprep.subr.mxu0 0.0
  %1797 = vmatpush1.msra.mxu0 0.0
  %1798 = vmatprep.subr.mxu0 0.0
  %1799 = vmatpush1.msra.mxu0 0.0
  %1800 = vmatprep.subr.mxu0 0.0
  %1801 = vmatpush1.msra.mxu0 0.0
  %1802 = vmatprep.subr.mxu0 0.0
  %1803 = vmatpush1.msra.mxu0 0.0
  %1804 = vmatprep.subr.mxu0 0.0
  %1805 = vmatpush1.msra.mxu0 0.0
  %1806 = vmatprep.subr.mxu0 0.0
  %1807 = vmatpush1.msra.mxu0 0.0
  %1808 = vmatprep.subr.mxu0 0.0
  %1809 = vmatpush1.msra.mxu0 0.0
  %1810 = vmatprep.subr.mxu0 0.0
  %1811 = vmatpush1.msra.mxu0 0.0
  %1812 = vmatprep.subr.mxu0 0.0
  %1813 = vmatpush1.msra.mxu0 0.0
  %1814 = vmatprep.subr.mxu0 0.0
  %1815 = vmatpush1.msra.mxu0 0.0
  %1816 = vmatprep.subr.mxu0 0.0
  %1817 = vmatpush1.msra.mxu0 0.0
  %1818 = vmatprep.subr.mxu0 0.0
  %1819 = vmatpush1.msra.mxu0 0.0
  %1820 = vmatprep.subr.mxu0 0.0
  %1821 = vmatpush1.msra.mxu0 0.0
  %1822 = vmatprep.subr.mxu0 0.0
  %1823 = vmatpush1.msra.mxu0 0.0
  %1824 = vmatprep.subr.mxu0 0.0
  %1825 = vmatpush1.msra.mxu0 0.0
  %1826 = vmatprep.subr.mxu0 0.0
  %1827 = vmatpush1.msra.mxu0 0.0
  %1828 = vmatprep.subr.mxu0 0.0
  %1829 = vmatpush1.msra.mxu0 0.0
  %1830 = vmatprep.subr.mxu0 0.0
  %1831 = vmatpush1.msra.mxu0 0.0
  %1832 = vmatprep.subr.mxu0 0.0
  %1833 = vmatpush1.msra.mxu0 0.0
  %1834 = vmatprep.subr.mxu0 0.0
  %1835 = vmatpush1.msra.mxu0 0.0
  %1836 = vmatprep.subr.mxu0 0.0
  %1837 = vmatpush1.msra.mxu0 0.0
  %1838 = vmatprep.subr.mxu0 0.0
  %1839 = vmatpush1.msra.mxu0 0.0
  %1840 = vmatprep.subr.mxu0 0.0
  %1841 = vmatpush1.msra.mxu0 0.0
  %1842 = vmatprep.subr.mxu0 0.0
  %1843 = vmatpush1.msra.mxu0 0.0
  %1844 = vmatprep.subr.mxu0 0.0
  %1845 = vmatpush1.msra.mxu0 0.0
  %1846 = vmatprep.subr.mxu0 0.0
  %1847 = vmatpush1.msra.mxu0 0.0
  %1848 = vmatprep.subr.mxu0 0.0
  %1849 = vmatpush1.msra.mxu0 0.0
  %1850 = vmatprep.subr.mxu0 0.0
  %1851 = vmatpush1.msra.mxu0 0.0
  %1852 = vmatprep.mubr.f32.mxu0 0.0
  %1853 = vmatmul.mubr.f32.gmra.mrb[0].mxu0 %v1786
  %v1854 = vpop.f32.mrb[0].mxu0
  %v1855 = vadd.f32 0.0, %v1854
  %v1856 = vpop.f32.mrb[0].mxu0
  %1857 = vdwg.mxu0
  %s1858 = scalar_lea.vmem %s15, 8
  %1859 = vst.msk [vmem:[%s1858] sm:$0x3] %vm462, %v1855
  %1860 = vmatprep.subr.bf16.mxu0 0
  %1861 = vmatpush1.bf16.msra.mxu0 %v129
  %1862 = vmatprep.subr.bf16.mxu0 0
  %1863 = vmatpush1.bf16.msra.mxu0 %v130
  %1864 = vmatprep.subr.bf16.mxu0 0
  %1865 = vmatpush1.bf16.msra.mxu0 0
  %1866 = vmatprep.subr.bf16.mxu0 0
  %1867 = vmatpush1.bf16.msra.mxu0 0
  %1868 = vmatprep.subr.bf16.mxu0 0
  %1869 = vmatpush1.bf16.msra.mxu0 0
  %1870 = vmatprep.subr.bf16.mxu0 0
  %1871 = vmatpush1.bf16.msra.mxu0 0
  %1872 = vmatprep.subr.bf16.mxu0 0
  %1873 = vmatpush1.bf16.msra.mxu0 0
  %1874 = vmatprep.subr.bf16.mxu0 0
  %1875 = vmatpush1.bf16.msra.mxu0 0
  %1876 = vmatprep.subr.bf16.mxu0 0
  %1877 = vmatpush1.bf16.msra.mxu0 0
  %1878 = vmatprep.subr.bf16.mxu0 0
  %1879 = vmatpush1.bf16.msra.mxu0 0
  %1880 = vmatprep.subr.bf16.mxu0 0
  %1881 = vmatpush1.bf16.msra.mxu0 0
  %1882 = vmatprep.subr.bf16.mxu0 0
  %1883 = vmatpush1.bf16.msra.mxu0 0
  %1884 = vmatprep.subr.bf16.mxu0 0
  %1885 = vmatpush1.bf16.msra.mxu0 0
  %1886 = vmatprep.subr.bf16.mxu0 0
  %1887 = vmatpush1.bf16.msra.mxu0 0
  %1888 = vmatprep.subr.bf16.mxu0 0
  %1889 = vmatpush1.bf16.msra.mxu0 0
  %1890 = vmatprep.subr.bf16.mxu0 0
  %1891 = vmatpush1.bf16.msra.mxu0 0
  %1892 = vmatprep.mubr.bf16.mxu0 0
  %1893 = vmatmul.mubr.bf16.gmra.mrb[0].mxu0 %v1634
  %v1894 = vpop.f32.mrb[0].mxu0
  %v1895 = vadd.f32 0.0, %v1894
  %v1896 = vpop.f32.mrb[0].mxu0
  %v1897 = vpop.f32.mrb[0].mxu0
  %v1898 = vpop.f32.mrb[0].mxu0
  %1899 = vdwg.mxu0
  %v1901 = vsel %vm133, %v1784, 0
  %1903 = vmatprep.subr.bf16.mxu0 0
  %1904 = vmatpush1.bf16.msra.mxu0 %v512
  %1905 = vmatprep.subr.bf16.mxu0 0
  %1906 = vmatpush1.bf16.msra.mxu0 %v513
  %1907 = vmatprep.subr.bf16.mxu0 0
  %1908 = vmatpush1.bf16.msra.mxu0 0
  %1909 = vmatprep.subr.bf16.mxu0 0
  %1910 = vmatpush1.bf16.msra.mxu0 0
  %1911 = vmatprep.subr.bf16.mxu0 0
  %1912 = vmatpush1.bf16.msra.mxu0 0
  %1913 = vmatprep.subr.bf16.mxu0 0
  %1914 = vmatpush1.bf16.msra.mxu0 0
  %1915 = vmatprep.subr.bf16.mxu0 0
  %1916 = vmatpush1.bf16.msra.mxu0 0
  %1917 = vmatprep.subr.bf16.mxu0 0
  %1918 = vmatpush1.bf16.msra.mxu0 0
  %1919 = vmatprep.subr.bf16.mxu0 0
  %1920 = vmatpush1.bf16.msra.mxu0 0
  %1921 = vmatprep.subr.bf16.mxu0 0
  %1922 = vmatpush1.bf16.msra.mxu0 0
  %1923 = vmatprep.subr.bf16.mxu0 0
  %1924 = vmatpush1.bf16.msra.mxu0 0
  %1925 = vmatprep.subr.bf16.mxu0 0
  %1926 = vmatpush1.bf16.msra.mxu0 0
  %1927 = vmatprep.subr.bf16.mxu0 0
  %1928 = vmatpush1.bf16.msra.mxu0 0
  %1929 = vmatprep.subr.bf16.mxu0 0
  %1930 = vmatpush1.bf16.msra.mxu0 0
  %1931 = vmatprep.subr.bf16.mxu0 0
  %1932 = vmatpush1.bf16.msra.mxu0 0
  %1933 = vmatprep.subr.bf16.mxu0 0
  %1934 = vmatpush1.bf16.msra.mxu0 0
  %1935 = vmatprep.mubr.bf16.mxu0 0
  %1936 = vmatmul.mubr.bf16.gmra.mrb[0].mxu0 %v1901
  %v1937 = vpop.f32.mrb[0].mxu0
  %v1938 = vadd.f32 %v1895, %v1937
  %v1939 = vpop.f32.mrb[0].mxu0
  %v1940 = vpop.f32.mrb[0].mxu0
  %v1941 = vpop.f32.mrb[0].mxu0
  %1942 = vdwg.mxu0
  %v1943 = vadd.f32 %v1938, %v74
  %v1944 = vxor.u32 %v1943, 2147483648
  %v1945 = vmul.f32 %v1944, 1.442695
  %v1946 = vpow.pop %v1945
  %v1947 = vadd.f32 %v1946, 1.0
  %v1948 = vrcp.pop %v1947
  %v1949 = vmul.f32 1.0, %v1948
  %v1950 = vmul.f32 %v1949, 2.0
  %v1951 = vsub.f32 %v1950, 1.0
  %v1952 = vmul.f32 %v1949, %v1616
  %1954 = vrot.lane.b32.xlu0 %v1951, 64
  %v1955 = vpop.permute.xlu0 %1954
  %v1957 = vmul.f32 %v1949, %v1955
  %1959 = vrot.lane.b32.xlu0 %v1957, 32
  %v1960 = vpop.permute.xlu0 %1959
  %v1962 = vadd.f32 %v1952, %v1960
  %v1963 = vtanh.pop %v1962
  %1965 = vrot.lane.b32.xlu0 %v1963, 64
  %v1966 = vpop.permute.xlu0 %1965
  %v1968 = vmul.f32 %v1949, %v1966
  %1970 = vrot.lane.b32.xlu0 %v1968, 32
  %v1971 = vpop.permute.xlu0 %1970
  %s1973 = scalar_lea.vmem %s14, 10
  %1974 = vst.msk [vmem:[%s1973] sm:$0x3] %vm208, %v1971
  %v1975 = vpack.c.bf16 %v1968, %v1968
  %1977 = vrot.lane.b32.xlu0 %v1975, 32
  %v1978 = vpop.permute.xlu0 %1977
  %v1980 = vsel %vm133, %v1978, 0
  %1982 = vmatprep.subr.bf16.mxu0 0
  %1983 = vmatpush1.bf16.msra.mxu0 %v222
  %1984 = vmatprep.subr.bf16.mxu0 0
  %1985 = vmatpush1.bf16.msra.mxu0 %v223
  %1986 = vmatprep.subr.bf16.mxu0 0
  %1987 = vmatpush1.bf16.msra.mxu0 0
  %1988 = vmatprep.subr.bf16.mxu0 0
  %1989 = vmatpush1.bf16.msra.mxu0 0
  %1990 = vmatprep.subr.bf16.mxu0 0
  %1991 = vmatpush1.bf16.msra.mxu0 0
  %1992 = vmatprep.subr.bf16.mxu0 0
  %1993 = vmatpush1.bf16.msra.mxu0 0
  %1994 = vmatprep.subr.bf16.mxu0 0
  %1995 = vmatpush1.bf16.msra.mxu0 0
  %1996 = vmatprep.subr.bf16.mxu0 0
  %1997 = vmatpush1.bf16.msra.mxu0 0
  %1998 = vmatprep.subr.bf16.mxu0 0
  %1999 = vmatpush1.bf16.msra.mxu0 0
  %2000 = vmatprep.subr.bf16.mxu0 0
  %2001 = vmatpush1.bf16.msra.mxu0 0
  %2002 = vmatprep.subr.bf16.mxu0 0
  %2003 = vmatpush1.bf16.msra.mxu0 0
  %2004 = vmatprep.subr.bf16.mxu0 0
  %2005 = vmatpush1.bf16.msra.mxu0 0
  %2006 = vmatprep.subr.bf16.mxu0 0
  %2007 = vmatpush1.bf16.msra.mxu0 0
  %2008 = vmatprep.subr.bf16.mxu0 0
  %2009 = vmatpush1.bf16.msra.mxu0 0
  %2010 = vmatprep.subr.bf16.mxu0 0
  %2011 = vmatpush1.bf16.msra.mxu0 0
  %2012 = vmatprep.subr.bf16.mxu0 0
  %2013 = vmatpush1.bf16.msra.mxu0 0
  %2014 = vmatprep.mubr.bf16.mxu0 0
  %2015 = vmatmul.mubr.bf16.gmra.mrb[0].mxu0 %v1980
  %v2016 = vpop.f32.mrb[0].mxu0
  %v2017 = vadd.f32 %v81, %v2016
  %v2018 = vpop.f32.mrb[0].mxu0
  %v2019 = vpop.f32.mrb[0].mxu0
  %v2020 = vpop.f32.mrb[0].mxu0
  %2021 = vdwg.mxu0
  %v2022 = vsel %vm208, %v2017, 0.0
  %2023 = vadd.xlane.f32.xlu0 %v2022
  %v2024 = vpop.xlane.xlu0 %2023
  %v2025 = vmul.f32 %v2017, %v2017
  %v2026 = vsel %vm208, %v2025, 0.0
  %2027 = vadd.xlane.f32.xlu0 %v2026
  %v2028 = vpop.xlane.xlu0 %2027
  %v2029 = vmul.f32 %v2024, 0.03125
  %v2030 = vmul.f32 %v2028, 0.03125
  %v2031 = vmul.f32 %v2029, %v2029
  %v2032 = vsub.f32 %v2030, %v2031
  %v2033 = vmax.f32 %v2032, 0.0
  %v2034 = vsub.f32 %v2017, %v2029
  %v2035 = vadd.f32 %v2033, 1e-05
  %v2036 = vrsqrt.pop %v2035
  %v2037 = vmul.f32 %v2034, %v2036
  %v2038 = vmul.f32 %v2037, %v88
  %v2039 = vadd.f32 %v2038, %v95
  %vm2040 = vcmp.gt.f32.partialorder %v2039, 0.0
  %v2041 = vmul.f32 %v2039, 0.3
  %v2042 = vsel %vm2040, %v2039, %v2041
  %v2043 = vpack.c.bf16 %v2042, %v2042
  %v2045 = vsel %vm133, %v2043, 0
  %2047 = vmatprep.subr.bf16.mxu0 0
  %2048 = vmatpush1.bf16.msra.mxu0 %v299
  %2049 = vmatprep.subr.bf16.mxu0 0
  %2050 = vmatpush1.bf16.msra.mxu0 %v300
  %2051 = vmatprep.subr.bf16.mxu0 0
  %2052 = vmatpush1.bf16.msra.mxu0 0
  %2053 = vmatprep.subr.bf16.mxu0 0
  %2054 = vmatpush1.bf16.msra.mxu0 0
  %2055 = vmatprep.subr.bf16.mxu0 0
  %2056 = vmatpush1.bf16.msra.mxu0 0
  %2057 = vmatprep.subr.bf16.mxu0 0
  %2058 = vmatpush1.bf16.msra.mxu0 0
  %2059 = vmatprep.subr.bf16.mxu0 0
  %2060 = vmatpush1.bf16.msra.mxu0 0
  %2061 = vmatprep.subr.bf16.mxu0 0
  %2062 = vmatpush1.bf16.msra.mxu0 0
  %2063 = vmatprep.subr.bf16.mxu0 0
  %2064 = vmatpush1.bf16.msra.mxu0 0
  %2065 = vmatprep.subr.bf16.mxu0 0
  %2066 = vmatpush1.bf16.msra.mxu0 0
  %2067 = vmatprep.subr.bf16.mxu0 0
  %2068 = vmatpush1.bf16.msra.mxu0 0
  %2069 = vmatprep.subr.bf16.mxu0 0
  %2070 = vmatpush1.bf16.msra.mxu0 0
  %2071 = vmatprep.subr.bf16.mxu0 0
  %2072 = vmatpush1.bf16.msra.mxu0 0
  %2073 = vmatprep.subr.bf16.mxu0 0
  %2074 = vmatpush1.bf16.msra.mxu0 0
  %2075 = vmatprep.subr.bf16.mxu0 0
  %2076 = vmatpush1.bf16.msra.mxu0 0
  %2077 = vmatprep.subr.bf16.mxu0 0
  %2078 = vmatpush1.bf16.msra.mxu0 0
  %2079 = vmatprep.mubr.bf16.mxu0 0
  %2080 = vmatmul.mubr.bf16.gmra.mrb[0].mxu0 %v2045
  %v2081 = vpop.f32.mrb[0].mxu0
  %v2082 = vadd.f32 %v102, %v2081
  %v2083 = vpop.f32.mrb[0].mxu0
  %v2084 = vpop.f32.mrb[0].mxu0
  %v2085 = vpop.f32.mrb[0].mxu0
  %2086 = vdwg.mxu0
  %v2087 = vsel %vm208, %v2082, 0.0
  %2088 = vadd.xlane.f32.xlu0 %v2087
  %v2089 = vpop.xlane.xlu0 %2088
  %v2090 = vmul.f32 %v2082, %v2082
  %v2091 = vsel %vm208, %v2090, 0.0
  %2092 = vadd.xlane.f32.xlu0 %v2091
  %v2093 = vpop.xlane.xlu0 %2092
  %v2094 = vmul.f32 %v2089, 0.03125
  %v2095 = vmul.f32 %v2093, 0.03125
  %v2096 = vmul.f32 %v2094, %v2094
  %v2097 = vsub.f32 %v2095, %v2096
  %v2098 = vmax.f32 %v2097, 0.0
  %v2099 = vsub.f32 %v2082, %v2094
  %v2100 = vadd.f32 %v2098, 1e-05
  %v2101 = vrsqrt.pop %v2100
  %v2102 = vmul.f32 %v2099, %v2101
  %v2103 = vmul.f32 %v2102, %v109
  %v2104 = vadd.f32 %v2103, %v116
  %s2105 = scalar_lea.vmem %s13, 10
  %2106 = vst.msk [vmem:[%s2105] sm:$0x3] %vm208, %v2104
  %v2107 = vsel %vm208, %v2104, -inf
  %2108 = vmax.xlane.f32.xlu0 %v2107
  %v2109 = vpop.xlane.xlu0 %2108
  %vm2110 = vcmp.ge.f32.partialorder %v2104, %v2109
  %v2111 = vsel %vm2110, %v119, 32
  %v2112 = vsel %vm208, %v2111, 2147483647
  %v2113 = vand.u32 %v2112, 65535
  %v2114 = vshra.s32 %v2112, 16
  %v2115 = vcvt.s32.f32 %v2113
  %v2116 = vcvt.s32.f32 %v2114
  %2117 = vmin.xlane.f32.xlu0 %v2116
  %v2118 = vpop.xlane.xlu0 %2117
  %vm2119 = vcmp.eq.f32.partialorder %v2116, %v2118
  %v2120 = vsel %vm2119, %v2115, inf
  %2121 = vmin.xlane.f32.xlu0 %v2120
  %v2122 = vpop.xlane.xlu0 %2121
  %v2123 = vcvt.f32.s32 %v2122
  %v2124 = vcvt.f32.s32 %v2118
  %v2125 = vshll.u32 %v2124, 16
  %v2126 = vadd.s32 %v2125, %v2123
  %vm2127 = vcmp.eq.s32.totalorder %v119, %v2126
  %v2128 = vsel %vm2127, 1, 0
  %v2129 = vcvt.s32.f32 %v2128
  %v2130 = vpack.c.bf16 %v2129, %v2129
  %v2132 = vsel %vm133, %v2129, 0
  %2134 = vmatprep.subr.mxu0 0.0
  %2135 = vmatpush1.msra.mxu0 %v57
  %2136 = vmatprep.subr.mxu0 0.0
  %2137 = vmatpush1.msra.mxu0 %v58
  %2138 = vmatprep.subr.mxu0 0.0
  %2139 = vmatpush1.msra.mxu0 %v59
  %2140 = vmatprep.subr.mxu0 0.0
  %2141 = vmatpush1.msra.mxu0 %v60
  %2142 = vmatprep.subr.mxu0 0.0
  %2143 = vmatpush1.msra.mxu0 0.0
  %2144 = vmatprep.subr.mxu0 0.0
  %2145 = vmatpush1.msra.mxu0 0.0
  %2146 = vmatprep.subr.mxu0 0.0
  %2147 = vmatpush1.msra.mxu0 0.0
  %2148 = vmatprep.subr.mxu0 0.0
  %2149 = vmatpush1.msra.mxu0 0.0
  %2150 = vmatprep.subr.mxu0 0.0
  %2151 = vmatpush1.msra.mxu0 0.0
  %2152 = vmatprep.subr.mxu0 0.0
  %2153 = vmatpush1.msra.mxu0 0.0
  %2154 = vmatprep.subr.mxu0 0.0
  %2155 = vmatpush1.msra.mxu0 0.0
  %2156 = vmatprep.subr.mxu0 0.0
  %2157 = vmatpush1.msra.mxu0 0.0
  %2158 = vmatprep.subr.mxu0 0.0
  %2159 = vmatpush1.msra.mxu0 0.0
  %2160 = vmatprep.subr.mxu0 0.0
  %2161 = vmatpush1.msra.mxu0 0.0
  %2162 = vmatprep.subr.mxu0 0.0
  %2163 = vmatpush1.msra.mxu0 0.0
  %2164 = vmatprep.subr.mxu0 0.0
  %2165 = vmatpush1.msra.mxu0 0.0
  %2166 = vmatprep.subr.mxu0 0.0
  %2167 = vmatpush1.msra.mxu0 0.0
  %2168 = vmatprep.subr.mxu0 0.0
  %2169 = vmatpush1.msra.mxu0 0.0
  %2170 = vmatprep.subr.mxu0 0.0
  %2171 = vmatpush1.msra.mxu0 0.0
  %2172 = vmatprep.subr.mxu0 0.0
  %2173 = vmatpush1.msra.mxu0 0.0
  %2174 = vmatprep.subr.mxu0 0.0
  %2175 = vmatpush1.msra.mxu0 0.0
  %2176 = vmatprep.subr.mxu0 0.0
  %2177 = vmatpush1.msra.mxu0 0.0
  %2178 = vmatprep.subr.mxu0 0.0
  %2179 = vmatpush1.msra.mxu0 0.0
  %2180 = vmatprep.subr.mxu0 0.0
  %2181 = vmatpush1.msra.mxu0 0.0
  %2182 = vmatprep.subr.mxu0 0.0
  %2183 = vmatpush1.msra.mxu0 0.0
  %2184 = vmatprep.subr.mxu0 0.0
  %2185 = vmatpush1.msra.mxu0 0.0
  %2186 = vmatprep.subr.mxu0 0.0
  %2187 = vmatpush1.msra.mxu0 0.0
  %2188 = vmatprep.subr.mxu0 0.0
  %2189 = vmatpush1.msra.mxu0 0.0
  %2190 = vmatprep.subr.mxu0 0.0
  %2191 = vmatpush1.msra.mxu0 0.0
  %2192 = vmatprep.subr.mxu0 0.0
  %2193 = vmatpush1.msra.mxu0 0.0
  %2194 = vmatprep.subr.mxu0 0.0
  %2195 = vmatpush1.msra.mxu0 0.0
  %2196 = vmatprep.subr.mxu0 0.0
  %2197 = vmatpush1.msra.mxu0 0.0
  %2198 = vmatprep.mubr.f32.mxu0 0.0
  %2199 = vmatmul.mubr.f32.gmra.mrb[0].mxu0 %v2132
  %v2200 = vpop.f32.mrb[0].mxu0
  %v2201 = vadd.f32 0.0, %v2200
  %v2202 = vpop.f32.mrb[0].mxu0
  %2203 = vdwg.mxu0
  %s2204 = scalar_lea.vmem %s15, 10
  %2205 = vst.msk [vmem:[%s2204] sm:$0x3] %vm462, %v2201
  %2206 = vmatprep.subr.bf16.mxu0 0
  %2207 = vmatpush1.bf16.msra.mxu0 %v129
  %2208 = vmatprep.subr.bf16.mxu0 0
  %2209 = vmatpush1.bf16.msra.mxu0 %v130
  %2210 = vmatprep.subr.bf16.mxu0 0
  %2211 = vmatpush1.bf16.msra.mxu0 0
  %2212 = vmatprep.subr.bf16.mxu0 0
  %2213 = vmatpush1.bf16.msra.mxu0 0
  %2214 = vmatprep.subr.bf16.mxu0 0
  %2215 = vmatpush1.bf16.msra.mxu0 0
  %2216 = vmatprep.subr.bf16.mxu0 0
  %2217 = vmatpush1.bf16.msra.mxu0 0
  %2218 = vmatprep.subr.bf16.mxu0 0
  %2219 = vmatpush1.bf16.msra.mxu0 0
  %2220 = vmatprep.subr.bf16.mxu0 0
  %2221 = vmatpush1.bf16.msra.mxu0 0
  %2222 = vmatprep.subr.bf16.mxu0 0
  %2223 = vmatpush1.bf16.msra.mxu0 0
  %2224 = vmatprep.subr.bf16.mxu0 0
  %2225 = vmatpush1.bf16.msra.mxu0 0
  %2226 = vmatprep.subr.bf16.mxu0 0
  %2227 = vmatpush1.bf16.msra.mxu0 0
  %2228 = vmatprep.subr.bf16.mxu0 0
  %2229 = vmatpush1.bf16.msra.mxu0 0
  %2230 = vmatprep.subr.bf16.mxu0 0
  %2231 = vmatpush1.bf16.msra.mxu0 0
  %2232 = vmatprep.subr.bf16.mxu0 0
  %2233 = vmatpush1.bf16.msra.mxu0 0
  %2234 = vmatprep.subr.bf16.mxu0 0
  %2235 = vmatpush1.bf16.msra.mxu0 0
  %2236 = vmatprep.subr.bf16.mxu0 0
  %2237 = vmatpush1.bf16.msra.mxu0 0
  %2238 = vmatprep.mubr.bf16.mxu0 0
  %2239 = vmatmul.mubr.bf16.gmra.mrb[0].mxu0 %v1980
  %v2240 = vpop.f32.mrb[0].mxu0
  %v2241 = vadd.f32 0.0, %v2240
  %v2242 = vpop.f32.mrb[0].mxu0
  %v2243 = vpop.f32.mrb[0].mxu0
  %v2244 = vpop.f32.mrb[0].mxu0
  %2245 = vdwg.mxu0
  %v2247 = vsel %vm133, %v2130, 0
  %2249 = vmatprep.subr.bf16.mxu0 0
  %2250 = vmatpush1.bf16.msra.mxu0 %v512
  %2251 = vmatprep.subr.bf16.mxu0 0
  %2252 = vmatpush1.bf16.msra.mxu0 %v513
  %2253 = vmatprep.subr.bf16.mxu0 0
  %2254 = vmatpush1.bf16.msra.mxu0 0
  %2255 = vmatprep.subr.bf16.mxu0 0
  %2256 = vmatpush1.bf16.msra.mxu0 0
  %2257 = vmatprep.subr.bf16.mxu0 0
  %2258 = vmatpush1.bf16.msra.mxu0 0
  %2259 = vmatprep.subr.bf16.mxu0 0
  %2260 = vmatpush1.bf16.msra.mxu0 0
  %2261 = vmatprep.subr.bf16.mxu0 0
  %2262 = vmatpush1.bf16.msra.mxu0 0
  %2263 = vmatprep.subr.bf16.mxu0 0
  %2264 = vmatpush1.bf16.msra.mxu0 0
  %2265 = vmatprep.subr.bf16.mxu0 0
  %2266 = vmatpush1.bf16.msra.mxu0 0
  %2267 = vmatprep.subr.bf16.mxu0 0
  %2268 = vmatpush1.bf16.msra.mxu0 0
  %2269 = vmatprep.subr.bf16.mxu0 0
  %2270 = vmatpush1.bf16.msra.mxu0 0
  %2271 = vmatprep.subr.bf16.mxu0 0
  %2272 = vmatpush1.bf16.msra.mxu0 0
  %2273 = vmatprep.subr.bf16.mxu0 0
  %2274 = vmatpush1.bf16.msra.mxu0 0
  %2275 = vmatprep.subr.bf16.mxu0 0
  %2276 = vmatpush1.bf16.msra.mxu0 0
  %2277 = vmatprep.subr.bf16.mxu0 0
  %2278 = vmatpush1.bf16.msra.mxu0 0
  %2279 = vmatprep.subr.bf16.mxu0 0
  %2280 = vmatpush1.bf16.msra.mxu0 0
  %2281 = vmatprep.mubr.bf16.mxu0 0
  %2282 = vmatmul.mubr.bf16.gmra.mrb[0].mxu0 %v2247
  %v2283 = vpop.f32.mrb[0].mxu0
  %v2284 = vadd.f32 %v2241, %v2283
  %v2285 = vpop.f32.mrb[0].mxu0
  %v2286 = vpop.f32.mrb[0].mxu0
  %v2287 = vpop.f32.mrb[0].mxu0
  %2288 = vdwg.mxu0
  %v2289 = vadd.f32 %v2284, %v74
  %v2290 = vxor.u32 %v2289, 2147483648
  %v2291 = vmul.f32 %v2290, 1.442695
  %v2292 = vpow.pop %v2291
  %v2293 = vadd.f32 %v2292, 1.0
  %v2294 = vrcp.pop %v2293
  %v2295 = vmul.f32 1.0, %v2294
  %v2296 = vmul.f32 %v2295, 2.0
  %v2297 = vsub.f32 %v2296, 1.0
  %v2298 = vmul.f32 %v2295, %v1962
  %2300 = vrot.lane.b32.xlu0 %v2297, 64
  %v2301 = vpop.permute.xlu0 %2300
  %v2303 = vmul.f32 %v2295, %v2301
  %2305 = vrot.lane.b32.xlu0 %v2303, 32
  %v2306 = vpop.permute.xlu0 %2305
  %v2308 = vadd.f32 %v2298, %v2306
  %v2309 = vtanh.pop %v2308
  %2311 = vrot.lane.b32.xlu0 %v2309, 64
  %v2312 = vpop.permute.xlu0 %2311
  %v2314 = vmul.f32 %v2295, %v2312
  %2316 = vrot.lane.b32.xlu0 %v2314, 32
  %v2317 = vpop.permute.xlu0 %2316
  %s2319 = scalar_lea.vmem %s14, 12
  %2320 = vst.msk [vmem:[%s2319] sm:$0x3] %vm208, %v2317
  %v2321 = vpack.c.bf16 %v2314, %v2314
  %2323 = vrot.lane.b32.xlu0 %v2321, 32
  %v2324 = vpop.permute.xlu0 %2323
  %v2326 = vsel %vm133, %v2324, 0
  %2328 = vmatprep.subr.bf16.mxu0 0
  %2329 = vmatpush1.bf16.msra.mxu0 %v222
  %2330 = vmatprep.subr.bf16.mxu0 0
  %2331 = vmatpush1.bf16.msra.mxu0 %v223
  %2332 = vmatprep.subr.bf16.mxu0 0
  %2333 = vmatpush1.bf16.msra.mxu0 0
  %2334 = vmatprep.subr.bf16.mxu0 0
  %2335 = vmatpush1.bf16.msra.mxu0 0
  %2336 = vmatprep.subr.bf16.mxu0 0
  %2337 = vmatpush1.bf16.msra.mxu0 0
  %2338 = vmatprep.subr.bf16.mxu0 0
  %2339 = vmatpush1.bf16.msra.mxu0 0
  %2340 = vmatprep.subr.bf16.mxu0 0
  %2341 = vmatpush1.bf16.msra.mxu0 0
  %2342 = vmatprep.subr.bf16.mxu0 0
  %2343 = vmatpush1.bf16.msra.mxu0 0
  %2344 = vmatprep.subr.bf16.mxu0 0
  %2345 = vmatpush1.bf16.msra.mxu0 0
  %2346 = vmatprep.subr.bf16.mxu0 0
  %2347 = vmatpush1.bf16.msra.mxu0 0
  %2348 = vmatprep.subr.bf16.mxu0 0
  %2349 = vmatpush1.bf16.msra.mxu0 0
  %2350 = vmatprep.subr.bf16.mxu0 0
  %2351 = vmatpush1.bf16.msra.mxu0 0
  %2352 = vmatprep.subr.bf16.mxu0 0
  %2353 = vmatpush1.bf16.msra.mxu0 0
  %2354 = vmatprep.subr.bf16.mxu0 0
  %2355 = vmatpush1.bf16.msra.mxu0 0
  %2356 = vmatprep.subr.bf16.mxu0 0
  %2357 = vmatpush1.bf16.msra.mxu0 0
  %2358 = vmatprep.subr.bf16.mxu0 0
  %2359 = vmatpush1.bf16.msra.mxu0 0
  %2360 = vmatprep.mubr.bf16.mxu0 0
  %2361 = vmatmul.mubr.bf16.gmra.mrb[0].mxu0 %v2326
  %v2362 = vpop.f32.mrb[0].mxu0
  %v2363 = vadd.f32 %v81, %v2362
  %v2364 = vpop.f32.mrb[0].mxu0
  %v2365 = vpop.f32.mrb[0].mxu0
  %v2366 = vpop.f32.mrb[0].mxu0
  %2367 = vdwg.mxu0
  %v2368 = vsel %vm208, %v2363, 0.0
  %2369 = vadd.xlane.f32.xlu0 %v2368
  %v2370 = vpop.xlane.xlu0 %2369
  %v2371 = vmul.f32 %v2363, %v2363
  %v2372 = vsel %vm208, %v2371, 0.0
  %2373 = vadd.xlane.f32.xlu0 %v2372
  %v2374 = vpop.xlane.xlu0 %2373
  %v2375 = vmul.f32 %v2370, 0.03125
  %v2376 = vmul.f32 %v2374, 0.03125
  %v2377 = vmul.f32 %v2375, %v2375
  %v2378 = vsub.f32 %v2376, %v2377
  %v2379 = vmax.f32 %v2378, 0.0
  %v2380 = vsub.f32 %v2363, %v2375
  %v2381 = vadd.f32 %v2379, 1e-05
  %v2382 = vrsqrt.pop %v2381
  %v2383 = vmul.f32 %v2380, %v2382
  %v2384 = vmul.f32 %v2383, %v88
  %v2385 = vadd.f32 %v2384, %v95
  %vm2386 = vcmp.gt.f32.partialorder %v2385, 0.0
  %v2387 = vmul.f32 %v2385, 0.3
  %v2388 = vsel %vm2386, %v2385, %v2387
  %v2389 = vpack.c.bf16 %v2388, %v2388
  %v2391 = vsel %vm133, %v2389, 0
  %2393 = vmatprep.subr.bf16.mxu0 0
  %2394 = vmatpush1.bf16.msra.mxu0 %v299
  %2395 = vmatprep.subr.bf16.mxu0 0
  %2396 = vmatpush1.bf16.msra.mxu0 %v300
  %2397 = vmatprep.subr.bf16.mxu0 0
  %2398 = vmatpush1.bf16.msra.mxu0 0
  %2399 = vmatprep.subr.bf16.mxu0 0
  %2400 = vmatpush1.bf16.msra.mxu0 0
  %2401 = vmatprep.subr.bf16.mxu0 0
  %2402 = vmatpush1.bf16.msra.mxu0 0
  %2403 = vmatprep.subr.bf16.mxu0 0
  %2404 = vmatpush1.bf16.msra.mxu0 0
  %2405 = vmatprep.subr.bf16.mxu0 0
  %2406 = vmatpush1.bf16.msra.mxu0 0
  %2407 = vmatprep.subr.bf16.mxu0 0
  %2408 = vmatpush1.bf16.msra.mxu0 0
  %2409 = vmatprep.subr.bf16.mxu0 0
  %2410 = vmatpush1.bf16.msra.mxu0 0
  %2411 = vmatprep.subr.bf16.mxu0 0
  %2412 = vmatpush1.bf16.msra.mxu0 0
  %2413 = vmatprep.subr.bf16.mxu0 0
  %2414 = vmatpush1.bf16.msra.mxu0 0
  %2415 = vmatprep.subr.bf16.mxu0 0
  %2416 = vmatpush1.bf16.msra.mxu0 0
  %2417 = vmatprep.subr.bf16.mxu0 0
  %2418 = vmatpush1.bf16.msra.mxu0 0
  %2419 = vmatprep.subr.bf16.mxu0 0
  %2420 = vmatpush1.bf16.msra.mxu0 0
  %2421 = vmatprep.subr.bf16.mxu0 0
  %2422 = vmatpush1.bf16.msra.mxu0 0
  %2423 = vmatprep.subr.bf16.mxu0 0
  %2424 = vmatpush1.bf16.msra.mxu0 0
  %2425 = vmatprep.mubr.bf16.mxu0 0
  %2426 = vmatmul.mubr.bf16.gmra.mrb[0].mxu0 %v2391
  %v2427 = vpop.f32.mrb[0].mxu0
  %v2428 = vadd.f32 %v102, %v2427
  %v2429 = vpop.f32.mrb[0].mxu0
  %v2430 = vpop.f32.mrb[0].mxu0
  %v2431 = vpop.f32.mrb[0].mxu0
  %2432 = vdwg.mxu0
  %v2433 = vsel %vm208, %v2428, 0.0
  %2434 = vadd.xlane.f32.xlu0 %v2433
  %v2435 = vpop.xlane.xlu0 %2434
  %v2436 = vmul.f32 %v2428, %v2428
  %v2437 = vsel %vm208, %v2436, 0.0
  %2438 = vadd.xlane.f32.xlu0 %v2437
  %v2439 = vpop.xlane.xlu0 %2438
  %v2440 = vmul.f32 %v2435, 0.03125
  %v2441 = vmul.f32 %v2439, 0.03125
  %v2442 = vmul.f32 %v2440, %v2440
  %v2443 = vsub.f32 %v2441, %v2442
  %v2444 = vmax.f32 %v2443, 0.0
  %v2445 = vsub.f32 %v2428, %v2440
  %v2446 = vadd.f32 %v2444, 1e-05
  %v2447 = vrsqrt.pop %v2446
  %v2448 = vmul.f32 %v2445, %v2447
  %v2449 = vmul.f32 %v2448, %v109
  %v2450 = vadd.f32 %v2449, %v116
  %s2451 = scalar_lea.vmem %s13, 12
  %2452 = vst.msk [vmem:[%s2451] sm:$0x3] %vm208, %v2450
  %v2453 = vsel %vm208, %v2450, -inf
  %2454 = vmax.xlane.f32.xlu0 %v2453
  %v2455 = vpop.xlane.xlu0 %2454
  %vm2456 = vcmp.ge.f32.partialorder %v2450, %v2455
  %v2457 = vsel %vm2456, %v119, 32
  %v2458 = vsel %vm208, %v2457, 2147483647
  %v2459 = vand.u32 %v2458, 65535
  %v2460 = vshra.s32 %v2458, 16
  %v2461 = vcvt.s32.f32 %v2459
  %v2462 = vcvt.s32.f32 %v2460
  %2463 = vmin.xlane.f32.xlu0 %v2462
  %v2464 = vpop.xlane.xlu0 %2463
  %vm2465 = vcmp.eq.f32.partialorder %v2462, %v2464
  %v2466 = vsel %vm2465, %v2461, inf
  %2467 = vmin.xlane.f32.xlu0 %v2466
  %v2468 = vpop.xlane.xlu0 %2467
  %v2469 = vcvt.f32.s32 %v2468
  %v2470 = vcvt.f32.s32 %v2464
  %v2471 = vshll.u32 %v2470, 16
  %v2472 = vadd.s32 %v2471, %v2469
  %vm2473 = vcmp.eq.s32.totalorder %v119, %v2472
  %v2474 = vsel %vm2473, 1, 0
  %v2475 = vcvt.s32.f32 %v2474
  %v2476 = vpack.c.bf16 %v2475, %v2475
  %v2478 = vsel %vm133, %v2475, 0
  %2480 = vmatprep.subr.mxu0 0.0
  %2481 = vmatpush1.msra.mxu0 %v57
  %2482 = vmatprep.subr.mxu0 0.0
  %2483 = vmatpush1.msra.mxu0 %v58
  %2484 = vmatprep.subr.mxu0 0.0
  %2485 = vmatpush1.msra.mxu0 %v59
  %2486 = vmatprep.subr.mxu0 0.0
  %2487 = vmatpush1.msra.mxu0 %v60
  %2488 = vmatprep.subr.mxu0 0.0
  %2489 = vmatpush1.msra.mxu0 0.0
  %2490 = vmatprep.subr.mxu0 0.0
  %2491 = vmatpush1.msra.mxu0 0.0
  %2492 = vmatprep.subr.mxu0 0.0
  %2493 = vmatpush1.msra.mxu0 0.0
  %2494 = vmatprep.subr.mxu0 0.0
  %2495 = vmatpush1.msra.mxu0 0.0
  %2496 = vmatprep.subr.mxu0 0.0
  %2497 = vmatpush1.msra.mxu0 0.0
  %2498 = vmatprep.subr.mxu0 0.0
  %2499 = vmatpush1.msra.mxu0 0.0
  %2500 = vmatprep.subr.mxu0 0.0
  %2501 = vmatpush1.msra.mxu0 0.0
  %2502 = vmatprep.subr.mxu0 0.0
  %2503 = vmatpush1.msra.mxu0 0.0
  %2504 = vmatprep.subr.mxu0 0.0
  %2505 = vmatpush1.msra.mxu0 0.0
  %2506 = vmatprep.subr.mxu0 0.0
  %2507 = vmatpush1.msra.mxu0 0.0
  %2508 = vmatprep.subr.mxu0 0.0
  %2509 = vmatpush1.msra.mxu0 0.0
  %2510 = vmatprep.subr.mxu0 0.0
  %2511 = vmatpush1.msra.mxu0 0.0
  %2512 = vmatprep.subr.mxu0 0.0
  %2513 = vmatpush1.msra.mxu0 0.0
  %2514 = vmatprep.subr.mxu0 0.0
  %2515 = vmatpush1.msra.mxu0 0.0
  %2516 = vmatprep.subr.mxu0 0.0
  %2517 = vmatpush1.msra.mxu0 0.0
  %2518 = vmatprep.subr.mxu0 0.0
  %2519 = vmatpush1.msra.mxu0 0.0
  %2520 = vmatprep.subr.mxu0 0.0
  %2521 = vmatpush1.msra.mxu0 0.0
  %2522 = vmatprep.subr.mxu0 0.0
  %2523 = vmatpush1.msra.mxu0 0.0
  %2524 = vmatprep.subr.mxu0 0.0
  %2525 = vmatpush1.msra.mxu0 0.0
  %2526 = vmatprep.subr.mxu0 0.0
  %2527 = vmatpush1.msra.mxu0 0.0
  %2528 = vmatprep.subr.mxu0 0.0
  %2529 = vmatpush1.msra.mxu0 0.0
  %2530 = vmatprep.subr.mxu0 0.0
  %2531 = vmatpush1.msra.mxu0 0.0
  %2532 = vmatprep.subr.mxu0 0.0
  %2533 = vmatpush1.msra.mxu0 0.0
  %2534 = vmatprep.subr.mxu0 0.0
  %2535 = vmatpush1.msra.mxu0 0.0
  %2536 = vmatprep.subr.mxu0 0.0
  %2537 = vmatpush1.msra.mxu0 0.0
  %2538 = vmatprep.subr.mxu0 0.0
  %2539 = vmatpush1.msra.mxu0 0.0
  %2540 = vmatprep.subr.mxu0 0.0
  %2541 = vmatpush1.msra.mxu0 0.0
  %2542 = vmatprep.subr.mxu0 0.0
  %2543 = vmatpush1.msra.mxu0 0.0
  %2544 = vmatprep.mubr.f32.mxu0 0.0
  %2545 = vmatmul.mubr.f32.gmra.mrb[0].mxu0 %v2478
  %v2546 = vpop.f32.mrb[0].mxu0
  %v2547 = vadd.f32 0.0, %v2546
  %v2548 = vpop.f32.mrb[0].mxu0
  %2549 = vdwg.mxu0
  %s2550 = scalar_lea.vmem %s15, 12
  %2551 = vst.msk [vmem:[%s2550] sm:$0x3] %vm462, %v2547
  %2552 = vmatprep.subr.bf16.mxu0 0
  %2553 = vmatpush1.bf16.msra.mxu0 %v129
  %2554 = vmatprep.subr.bf16.mxu0 0
  %2555 = vmatpush1.bf16.msra.mxu0 %v130
  %2556 = vmatprep.subr.bf16.mxu0 0
  %2557 = vmatpush1.bf16.msra.mxu0 0
  %2558 = vmatprep.subr.bf16.mxu0 0
  %2559 = vmatpush1.bf16.msra.mxu0 0
  %2560 = vmatprep.subr.bf16.mxu0 0
  %2561 = vmatpush1.bf16.msra.mxu0 0
  %2562 = vmatprep.subr.bf16.mxu0 0
  %2563 = vmatpush1.bf16.msra.mxu0 0
  %2564 = vmatprep.subr.bf16.mxu0 0
  %2565 = vmatpush1.bf16.msra.mxu0 0
  %2566 = vmatprep.subr.bf16.mxu0 0
  %2567 = vmatpush1.bf16.msra.mxu0 0
  %2568 = vmatprep.subr.bf16.mxu0 0
  %2569 = vmatpush1.bf16.msra.mxu0 0
  %2570 = vmatprep.subr.bf16.mxu0 0
  %2571 = vmatpush1.bf16.msra.mxu0 0
  %2572 = vmatprep.subr.bf16.mxu0 0
  %2573 = vmatpush1.bf16.msra.mxu0 0
  %2574 = vmatprep.subr.bf16.mxu0 0
  %2575 = vmatpush1.bf16.msra.mxu0 0
  %2576 = vmatprep.subr.bf16.mxu0 0
  %2577 = vmatpush1.bf16.msra.mxu0 0
  %2578 = vmatprep.subr.bf16.mxu0 0
  %2579 = vmatpush1.bf16.msra.mxu0 0
  %2580 = vmatprep.subr.bf16.mxu0 0
  %2581 = vmatpush1.bf16.msra.mxu0 0
  %2582 = vmatprep.subr.bf16.mxu0 0
  %2583 = vmatpush1.bf16.msra.mxu0 0
  %2584 = vmatprep.mubr.bf16.mxu0 0
  %2585 = vmatmul.mubr.bf16.gmra.mrb[0].mxu0 %v2326
  %v2586 = vpop.f32.mrb[0].mxu0
  %v2587 = vadd.f32 0.0, %v2586
  %v2588 = vpop.f32.mrb[0].mxu0
  %v2589 = vpop.f32.mrb[0].mxu0
  %v2590 = vpop.f32.mrb[0].mxu0
  %2591 = vdwg.mxu0
  %v2593 = vsel %vm133, %v2476, 0
  %2595 = vmatprep.subr.bf16.mxu0 0
  %2596 = vmatpush1.bf16.msra.mxu0 %v512
  %2597 = vmatprep.subr.bf16.mxu0 0
  %2598 = vmatpush1.bf16.msra.mxu0 %v513
  %2599 = vmatprep.subr.bf16.mxu0 0
  %2600 = vmatpush1.bf16.msra.mxu0 0
  %2601 = vmatprep.subr.bf16.mxu0 0
  %2602 = vmatpush1.bf16.msra.mxu0 0
  %2603 = vmatprep.subr.bf16.mxu0 0
  %2604 = vmatpush1.bf16.msra.mxu0 0
  %2605 = vmatprep.subr.bf16.mxu0 0
  %2606 = vmatpush1.bf16.msra.mxu0 0
  %2607 = vmatprep.subr.bf16.mxu0 0
  %2608 = vmatpush1.bf16.msra.mxu0 0
  %2609 = vmatprep.subr.bf16.mxu0 0
  %2610 = vmatpush1.bf16.msra.mxu0 0
  %2611 = vmatprep.subr.bf16.mxu0 0
  %2612 = vmatpush1.bf16.msra.mxu0 0
  %2613 = vmatprep.subr.bf16.mxu0 0
  %2614 = vmatpush1.bf16.msra.mxu0 0
  %2615 = vmatprep.subr.bf16.mxu0 0
  %2616 = vmatpush1.bf16.msra.mxu0 0
  %2617 = vmatprep.subr.bf16.mxu0 0
  %2618 = vmatpush1.bf16.msra.mxu0 0
  %2619 = vmatprep.subr.bf16.mxu0 0
  %2620 = vmatpush1.bf16.msra.mxu0 0
  %2621 = vmatprep.subr.bf16.mxu0 0
  %2622 = vmatpush1.bf16.msra.mxu0 0
  %2623 = vmatprep.subr.bf16.mxu0 0
  %2624 = vmatpush1.bf16.msra.mxu0 0
  %2625 = vmatprep.subr.bf16.mxu0 0
  %2626 = vmatpush1.bf16.msra.mxu0 0
  %2627 = vmatprep.mubr.bf16.mxu0 0
  %2628 = vmatmul.mubr.bf16.gmra.mrb[0].mxu0 %v2593
  %v2629 = vpop.f32.mrb[0].mxu0
  %v2630 = vadd.f32 %v2587, %v2629
  %v2631 = vpop.f32.mrb[0].mxu0
  %v2632 = vpop.f32.mrb[0].mxu0
  %v2633 = vpop.f32.mrb[0].mxu0
  %2634 = vdwg.mxu0
  %v2635 = vadd.f32 %v2630, %v74
  %v2636 = vxor.u32 %v2635, 2147483648
  %v2637 = vmul.f32 %v2636, 1.442695
  %v2638 = vpow.pop %v2637
  %v2639 = vadd.f32 %v2638, 1.0
  %v2640 = vrcp.pop %v2639
  %v2641 = vmul.f32 1.0, %v2640
  %v2642 = vmul.f32 %v2641, 2.0
  %v2643 = vsub.f32 %v2642, 1.0
  %v2644 = vmul.f32 %v2641, %v2308
  %2646 = vrot.lane.b32.xlu0 %v2643, 64
  %v2647 = vpop.permute.xlu0 %2646
  %v2649 = vmul.f32 %v2641, %v2647
  %2651 = vrot.lane.b32.xlu0 %v2649, 32
  %v2652 = vpop.permute.xlu0 %2651
  %v2654 = vadd.f32 %v2644, %v2652
  %v2655 = vtanh.pop %v2654
  %2657 = vrot.lane.b32.xlu0 %v2655, 64
  %v2658 = vpop.permute.xlu0 %2657
  %v2660 = vmul.f32 %v2641, %v2658
  %2662 = vrot.lane.b32.xlu0 %v2660, 32
  %v2663 = vpop.permute.xlu0 %2662
  %s2665 = scalar_lea.vmem %s14, 14
  %2666 = vst.msk [vmem:[%s2665] sm:$0x3] %vm208, %v2663
  %v2667 = vpack.c.bf16 %v2660, %v2660
  %2669 = vrot.lane.b32.xlu0 %v2667, 32
  %v2670 = vpop.permute.xlu0 %2669
  %v2672 = vsel %vm133, %v2670, 0
  %2674 = vmatprep.subr.bf16.mxu0 0
  %2675 = vmatpush1.bf16.msra.mxu0 %v222
  %2676 = vmatprep.subr.bf16.mxu0 0
  %2677 = vmatpush1.bf16.msra.mxu0 %v223
  %2678 = vmatprep.subr.bf16.mxu0 0
  %2679 = vmatpush1.bf16.msra.mxu0 0
  %2680 = vmatprep.subr.bf16.mxu0 0
  %2681 = vmatpush1.bf16.msra.mxu0 0
  %2682 = vmatprep.subr.bf16.mxu0 0
  %2683 = vmatpush1.bf16.msra.mxu0 0
  %2684 = vmatprep.subr.bf16.mxu0 0
  %2685 = vmatpush1.bf16.msra.mxu0 0
  %2686 = vmatprep.subr.bf16.mxu0 0
  %2687 = vmatpush1.bf16.msra.mxu0 0
  %2688 = vmatprep.subr.bf16.mxu0 0
  %2689 = vmatpush1.bf16.msra.mxu0 0
  %2690 = vmatprep.subr.bf16.mxu0 0
  %2691 = vmatpush1.bf16.msra.mxu0 0
  %2692 = vmatprep.subr.bf16.mxu0 0
  %2693 = vmatpush1.bf16.msra.mxu0 0
  %2694 = vmatprep.subr.bf16.mxu0 0
  %2695 = vmatpush1.bf16.msra.mxu0 0
  %2696 = vmatprep.subr.bf16.mxu0 0
  %2697 = vmatpush1.bf16.msra.mxu0 0
  %2698 = vmatprep.subr.bf16.mxu0 0
  %2699 = vmatpush1.bf16.msra.mxu0 0
  %2700 = vmatprep.subr.bf16.mxu0 0
  %2701 = vmatpush1.bf16.msra.mxu0 0
  %2702 = vmatprep.subr.bf16.mxu0 0
  %2703 = vmatpush1.bf16.msra.mxu0 0
  %2704 = vmatprep.subr.bf16.mxu0 0
  %2705 = vmatpush1.bf16.msra.mxu0 0
  %2706 = vmatprep.mubr.bf16.mxu0 0
  %2707 = vmatmul.mubr.bf16.gmra.mrb[0].mxu0 %v2672
  %v2708 = vpop.f32.mrb[0].mxu0
  %v2709 = vadd.f32 %v81, %v2708
  %v2710 = vpop.f32.mrb[0].mxu0
  %v2711 = vpop.f32.mrb[0].mxu0
  %v2712 = vpop.f32.mrb[0].mxu0
  %2713 = vdwg.mxu0
  %v2714 = vsel %vm208, %v2709, 0.0
  %2715 = vadd.xlane.f32.xlu0 %v2714
  %v2716 = vpop.xlane.xlu0 %2715
  %v2717 = vmul.f32 %v2709, %v2709
  %v2718 = vsel %vm208, %v2717, 0.0
  %2719 = vadd.xlane.f32.xlu0 %v2718
  %v2720 = vpop.xlane.xlu0 %2719
  %v2721 = vmul.f32 %v2716, 0.03125
  %v2722 = vmul.f32 %v2720, 0.03125
  %v2723 = vmul.f32 %v2721, %v2721
  %v2724 = vsub.f32 %v2722, %v2723
  %v2725 = vmax.f32 %v2724, 0.0
  %v2726 = vsub.f32 %v2709, %v2721
  %v2727 = vadd.f32 %v2725, 1e-05
  %v2728 = vrsqrt.pop %v2727
  %v2729 = vmul.f32 %v2726, %v2728
  %v2730 = vmul.f32 %v2729, %v88
  %v2731 = vadd.f32 %v2730, %v95
  %vm2732 = vcmp.gt.f32.partialorder %v2731, 0.0
  %v2733 = vmul.f32 %v2731, 0.3
  %v2734 = vsel %vm2732, %v2731, %v2733
  %v2735 = vpack.c.bf16 %v2734, %v2734
  %v2737 = vsel %vm133, %v2735, 0
  %2739 = vmatprep.subr.bf16.mxu0 0
  %2740 = vmatpush1.bf16.msra.mxu0 %v299
  %2741 = vmatprep.subr.bf16.mxu0 0
  %2742 = vmatpush1.bf16.msra.mxu0 %v300
  %2743 = vmatprep.subr.bf16.mxu0 0
  %2744 = vmatpush1.bf16.msra.mxu0 0
  %2745 = vmatprep.subr.bf16.mxu0 0
  %2746 = vmatpush1.bf16.msra.mxu0 0
  %2747 = vmatprep.subr.bf16.mxu0 0
  %2748 = vmatpush1.bf16.msra.mxu0 0
  %2749 = vmatprep.subr.bf16.mxu0 0
  %2750 = vmatpush1.bf16.msra.mxu0 0
  %2751 = vmatprep.subr.bf16.mxu0 0
  %2752 = vmatpush1.bf16.msra.mxu0 0
  %2753 = vmatprep.subr.bf16.mxu0 0
  %2754 = vmatpush1.bf16.msra.mxu0 0
  %2755 = vmatprep.subr.bf16.mxu0 0
  %2756 = vmatpush1.bf16.msra.mxu0 0
  %2757 = vmatprep.subr.bf16.mxu0 0
  %2758 = vmatpush1.bf16.msra.mxu0 0
  %2759 = vmatprep.subr.bf16.mxu0 0
  %2760 = vmatpush1.bf16.msra.mxu0 0
  %2761 = vmatprep.subr.bf16.mxu0 0
  %2762 = vmatpush1.bf16.msra.mxu0 0
  %2763 = vmatprep.subr.bf16.mxu0 0
  %2764 = vmatpush1.bf16.msra.mxu0 0
  %2765 = vmatprep.subr.bf16.mxu0 0
  %2766 = vmatpush1.bf16.msra.mxu0 0
  %2767 = vmatprep.subr.bf16.mxu0 0
  %2768 = vmatpush1.bf16.msra.mxu0 0
  %2769 = vmatprep.subr.bf16.mxu0 0
  %2770 = vmatpush1.bf16.msra.mxu0 0
  %2771 = vmatprep.mubr.bf16.mxu0 0
  %2772 = vmatmul.mubr.bf16.gmra.mrb[0].mxu0 %v2737
  %v2773 = vpop.f32.mrb[0].mxu0
  %v2774 = vadd.f32 %v102, %v2773
  %v2775 = vpop.f32.mrb[0].mxu0
  %v2776 = vpop.f32.mrb[0].mxu0
  %v2777 = vpop.f32.mrb[0].mxu0
  %2778 = vdwg.mxu0
  %v2779 = vsel %vm208, %v2774, 0.0
  %2780 = vadd.xlane.f32.xlu0 %v2779
  %v2781 = vpop.xlane.xlu0 %2780
  %v2782 = vmul.f32 %v2774, %v2774
  %v2783 = vsel %vm208, %v2782, 0.0
  %2784 = vadd.xlane.f32.xlu0 %v2783
  %v2785 = vpop.xlane.xlu0 %2784
  %v2786 = vmul.f32 %v2781, 0.03125
  %v2787 = vmul.f32 %v2785, 0.03125
  %v2788 = vmul.f32 %v2786, %v2786
  %v2789 = vsub.f32 %v2787, %v2788
  %v2790 = vmax.f32 %v2789, 0.0
  %v2791 = vsub.f32 %v2774, %v2786
  %v2792 = vadd.f32 %v2790, 1e-05
  %v2793 = vrsqrt.pop %v2792
  %v2794 = vmul.f32 %v2791, %v2793
  %v2795 = vmul.f32 %v2794, %v109
  %v2796 = vadd.f32 %v2795, %v116
  %s2797 = scalar_lea.vmem %s13, 14
  %2798 = vst.msk [vmem:[%s2797] sm:$0x3] %vm208, %v2796
  %v2799 = vsel %vm208, %v2796, -inf
  %2800 = vmax.xlane.f32.xlu0 %v2799
  %v2801 = vpop.xlane.xlu0 %2800
  %vm2802 = vcmp.ge.f32.partialorder %v2796, %v2801
  %v2803 = vsel %vm2802, %v119, 32
  %v2804 = vsel %vm208, %v2803, 2147483647
  %v2805 = vand.u32 %v2804, 65535
  %v2806 = vshra.s32 %v2804, 16
  %v2807 = vcvt.s32.f32 %v2805
  %v2808 = vcvt.s32.f32 %v2806
  %2809 = vmin.xlane.f32.xlu0 %v2808
  %v2810 = vpop.xlane.xlu0 %2809
  %vm2811 = vcmp.eq.f32.partialorder %v2808, %v2810
  %v2812 = vsel %vm2811, %v2807, inf
  %2813 = vmin.xlane.f32.xlu0 %v2812
  %v2814 = vpop.xlane.xlu0 %2813
  %v2815 = vcvt.f32.s32 %v2814
  %v2816 = vcvt.f32.s32 %v2810
  %v2817 = vshll.u32 %v2816, 16
  %v2818 = vadd.s32 %v2817, %v2815
  %vm2819 = vcmp.eq.s32.totalorder %v119, %v2818
  %v2820 = vsel %vm2819, 1, 0
  %v2821 = vcvt.s32.f32 %v2820
  %v2823 = vsel %vm133, %v2821, 0
  %2825 = vmatprep.subr.mxu0 0.0
  %2826 = vmatpush1.msra.mxu0 %v57
  %2827 = vmatprep.subr.mxu0 0.0
  %2828 = vmatpush1.msra.mxu0 %v58
  %2829 = vmatprep.subr.mxu0 0.0
  %2830 = vmatpush1.msra.mxu0 %v59
  %2831 = vmatprep.subr.mxu0 0.0
  %2832 = vmatpush1.msra.mxu0 %v60
  %2833 = vmatprep.subr.mxu0 0.0
  %2834 = vmatpush1.msra.mxu0 0.0
  %2835 = vmatprep.subr.mxu0 0.0
  %2836 = vmatpush1.msra.mxu0 0.0
  %2837 = vmatprep.subr.mxu0 0.0
  %2838 = vmatpush1.msra.mxu0 0.0
  %2839 = vmatprep.subr.mxu0 0.0
  %2840 = vmatpush1.msra.mxu0 0.0
  %2841 = vmatprep.subr.mxu0 0.0
  %2842 = vmatpush1.msra.mxu0 0.0
  %2843 = vmatprep.subr.mxu0 0.0
  %2844 = vmatpush1.msra.mxu0 0.0
  %2845 = vmatprep.subr.mxu0 0.0
  %2846 = vmatpush1.msra.mxu0 0.0
  %2847 = vmatprep.subr.mxu0 0.0
  %2848 = vmatpush1.msra.mxu0 0.0
  %2849 = vmatprep.subr.mxu0 0.0
  %2850 = vmatpush1.msra.mxu0 0.0
  %2851 = vmatprep.subr.mxu0 0.0
  %2852 = vmatpush1.msra.mxu0 0.0
  %2853 = vmatprep.subr.mxu0 0.0
  %2854 = vmatpush1.msra.mxu0 0.0
  %2855 = vmatprep.subr.mxu0 0.0
  %2856 = vmatpush1.msra.mxu0 0.0
  %2857 = vmatprep.subr.mxu0 0.0
  %2858 = vmatpush1.msra.mxu0 0.0
  %2859 = vmatprep.subr.mxu0 0.0
  %2860 = vmatpush1.msra.mxu0 0.0
  %2861 = vmatprep.subr.mxu0 0.0
  %2862 = vmatpush1.msra.mxu0 0.0
  %2863 = vmatprep.subr.mxu0 0.0
  %2864 = vmatpush1.msra.mxu0 0.0
  %2865 = vmatprep.subr.mxu0 0.0
  %2866 = vmatpush1.msra.mxu0 0.0
  %2867 = vmatprep.subr.mxu0 0.0
  %2868 = vmatpush1.msra.mxu0 0.0
  %2869 = vmatprep.subr.mxu0 0.0
  %2870 = vmatpush1.msra.mxu0 0.0
  %2871 = vmatprep.subr.mxu0 0.0
  %2872 = vmatpush1.msra.mxu0 0.0
  %2873 = vmatprep.subr.mxu0 0.0
  %2874 = vmatpush1.msra.mxu0 0.0
  %2875 = vmatprep.subr.mxu0 0.0
  %2876 = vmatpush1.msra.mxu0 0.0
  %2877 = vmatprep.subr.mxu0 0.0
  %2878 = vmatpush1.msra.mxu0 0.0
  %2879 = vmatprep.subr.mxu0 0.0
  %2880 = vmatpush1.msra.mxu0 0.0
  %2881 = vmatprep.subr.mxu0 0.0
  %2882 = vmatpush1.msra.mxu0 0.0
  %2883 = vmatprep.subr.mxu0 0.0
  %2884 = vmatpush1.msra.mxu0 0.0
  %2885 = vmatprep.subr.mxu0 0.0
  %2886 = vmatpush1.msra.mxu0 0.0
  %2887 = vmatprep.subr.mxu0 0.0
  %2888 = vmatpush1.msra.mxu0 0.0
  %2889 = vmatprep.mubr.f32.mxu0 0.0
  %2890 = vmatmul.mubr.f32.gmra.mrb[0].mxu0 %v2823
  %v2891 = vpop.f32.mrb[0].mxu0
  %v2892 = vadd.f32 0.0, %v2891
  %v2893 = vpop.f32.mrb[0].mxu0
  %2894 = vdwg.mxu0
  %s2895 = scalar_lea.vmem %s15, 14
  %2896 = vst.msk [vmem:[%s2895] sm:$0x3] %vm462, %v2892
  %vm2897 = vcmask 7168
  %v2898 = vsel %vm2897, %v384, %v742
  %vm2899 = vcmask 15360
  %v2900 = vsel %vm2899, %v2898, %v1088
  %vm2901 = vcmask 23552
  %v2902 = vsel %vm2901, %v2900, %v1434
  %vm2903 = vcmask 31744
  %v2904 = vsel %vm2903, %v2902, %v1780
  %vm2905 = vcmask 39936
  %v2906 = vsel %vm2905, %v2904, %v2126
  %vm2907 = vcmask 48128
  %v2908 = vsel %vm2907, %v2906, %v2472
  %vm2909 = vcmask 56320
  %v2910 = vsel %vm2909, %v2908, %v2818
  %vm2911 = vcmask 58368
  %2912 = vst.msk [vmem:[%s16] sm:$0x3] %vm2911, %v2910
  // Predicated region
  $region54: #{decoder_forward.1} parent=0 // pred_check
    _
  $region55: #{decoder_forward.1} parent=0 // pred_check_branch
    %2914 = sbr.rel (0) target = $region57
  $region56: #{decoder_forward.1} parent=0 // pred_region
    _
  $region57: #{decoder_forward.1} parent=0 // pred_fallthru
    _
  // Predicated region
  $region58: #{decoder_forward.1} parent=0 // pred_check
    _
  $region59: #{decoder_forward.1} parent=0 // pred_check_branch
    %2916 = sbr.rel (0) target = $region61
  $region60: #{decoder_forward.1} parent=0 // pred_region
    _
  $region61: #{decoder_forward.1} parent=0 // pred_fallthru
    _
  // Predicated region
  $region62: #{decoder_forward.1} parent=0 // pred_check
    _
  $region63: #{decoder_forward.1} parent=0 // pred_check_branch
    %2918 = sbr.rel (0) target = $region65
  $region64: #{decoder_forward.1} parent=0 // pred_region
    _
  $region65: #{decoder_forward.1} parent=0 // pred_fallthru
    _
  // Predicated region
  $region66: #{decoder_forward.1} parent=0 // pred_check
    _
  $region67: #{decoder_forward.1} parent=0 // pred_check_branch
    %2920 = sbr.rel (0) target = $region69
  $region68: #{decoder_forward.1} parent=0 // pred_region
    _
  $region69: #{decoder_forward.1} parent=0 // pred_fallthru
    _
  // Predicated region
  $region70: #{decoder_forward.1} parent=0 // pred_check
    _
  $region71: #{decoder_forward.1} parent=0 // pred_check_branch
    %2922 = sbr.rel (0) target = $region73
  $region72: #{decoder_forward.1} parent=0 // pred_region
    _
  $region73: #{decoder_forward.1} parent=0 // pred_fallthru
    _
  // Predicated region
  $region74: #{decoder_forward.1} parent=0 // pred_check
    _
  $region75: #{decoder_forward.1} parent=0 // pred_check_branch
    %2924 = sbr.rel (0) target = $region77
  $region76: #{decoder_forward.1} parent=0 // pred_region
    _
  $region77: #{decoder_forward.1} parent=0 // pred_fallthru
    _
  // Predicated region
  $region78: #{decoder_forward.1} parent=0 // pred_check
    _
  $region79: #{decoder_forward.1} parent=0 // pred_check_branch
    %2926 = sbr.rel (0) target = $region81
  $region80: #{decoder_forward.1} parent=0 // pred_region
    _
  $region81: #{decoder_forward.1} parent=0 // pred_fallthru
    _
  // Predicated region
  $region82: #{decoder_forward.1} parent=0 // pred_check
    _
  $region83: #{decoder_forward.1} parent=0 // pred_check_branch
    %2928 = sbr.rel (0) target = $region85
  $region84: #{decoder_forward.1} parent=0 // pred_region
    _
  $region85: #{decoder_forward.1} parent=0 // pred_fallthru
    _

</llo_original>
